<compile_context>
chip_gen: v7x
topology: tpu7x:2x2x1
jax: 0.10.0
libtpu: 0.0.40
codegen_flags: <defaults>
</compile_context>

<pallas_src>
import functools

import jax
import jax.numpy as jnp
from jax import lax
from jax.experimental import pallas as pl
from jax.experimental.pallas import tpu as pltpu

LANE = 128
SUBLANE = 8
VMEM_LIMIT = 32 * 1024 * 1024  # > v5e's 16 MiB scoped default, <= v6e/v7x defaults


def _round_up(x, m):
    return (x + m - 1) // m * m


# ---------------------------------------------------------------------------
# Fused kernel: causal conv -> L-layer LSTM -> fc2 (single pallas_call).
# ---------------------------------------------------------------------------
def _fused_kernel(xp_ref, cw_ref, cb_ref, wih_ref, whh_ref, bg_ref, fcw_ref,
                  fcb_ref, o_ref, h_seq, gx_scr, *, time_unroll):
    # xp_ref : (Tp, Bp, Cp)  f32  time-major input, left time-pad=2, batch/lane padded
    # cw_ref : (K, Cp, Cout) bf16 conv weight per tap (transposed, row-padded)
    # cb_ref : (1, Cout)     f32
    # wih_ref: (L, P, 4P)    bf16 input->gate weights (gate-blocked padded, transposed)
    # whh_ref: (L, P, 4P)    bf16 hidden->gate weights
    # bg_ref : (L, 1, 4P)    f32  b_ih + b_hh (gate-blocked padded)
    # fcw_ref: (P, Op)       bf16 fc2 weight (transposed, padded)
    # fcb_ref: (1, Op)       f32
    # o_ref  : (Bp, Op)      f32  final model output (padded)
    # h_seq  : (Tout, Bp, P) f32  scratch: current layer's output sequence (in-place)
    # gx_scr : (Tout, Bp, 4P)f32  scratch: hoisted x @ W_ih + b for current layer
    Tp, Bp, Cp = xp_ref.shape
    K, _, Cout = cw_ref.shape
    L, P, G = wih_ref.shape                       # G == 4 * P
    Tout = h_seq.shape[0]

    # ---- Phase 1: causal conv as K accumulating shifted-view matmuls -------------
    acc = jnp.zeros((Tout * Bp, Cout), jnp.float32)
    for k in range(K):
        # static slice on the leading (time) axis; reshape is a layout no-op
        # because (Bp, Cp) is already an (8, 128)-aligned f32 tile.
        x_k = xp_ref[k:k + Tout].reshape(Tout * Bp, Cp).astype(jnp.bfloat16)
        acc = acc + jnp.dot(x_k, cw_ref[k], preferred_element_type=jnp.float32)
    conv = (acc + cb_ref[...]).reshape(Tout, Bp, Cout)
    if Cout == P:
        h_seq[...] = conv
    else:  # hidden_size > 128: zero-pad conv channels up to P (128-aligned concat)
        h_seq[...] = jnp.pad(conv, ((0, 0), (0, 0), (0, P - Cout)))

    # ---- Phase 2: LSTM stack -------------------------------------------------------
    h_last = jnp.zeros((Bp, P), jnp.float32)
    for layer in range(L):
        # hoisted input projection: one well-shaped matmul over the whole sequence
        x2d = h_seq[...].reshape(Tout * Bp, P).astype(jnp.bfloat16)
        gx = jnp.dot(x2d, wih_ref[layer], preferred_element_type=jnp.float32)
        gx_scr[...] = (gx + bg_ref[layer]).reshape(Tout, Bp, G)

        whh_l = whh_ref[layer]                      # (P, 4P) bf16, VMEM-resident
        is_last = layer == L - 1

        def step(t, carry, _whh=whh_l, _is_last=is_last):
            h, c = carry
            gates = gx_scr[t] + jnp.dot(h.astype(jnp.bfloat16), _whh,
                                        preferred_element_type=jnp.float32)
            i = jax.nn.sigmoid(gates[:, 0 * P:1 * P])   # lane-aligned gate slices
            f = jax.nn.sigmoid(gates[:, 1 * P:2 * P])
            g = jnp.tanh(gates[:, 2 * P:3 * P])
            o = jax.nn.sigmoid(gates[:, 3 * P:4 * P])
            c_new = f * c + i * g
            h_new = o * jnp.tanh(c_new)
            if not _is_last:          # last layer: only h_T is consumed downstream
                h_seq[t] = h_new
            return h_new, c_new

        h0 = jnp.zeros((Bp, P), jnp.float32)
        c0 = jnp.zeros((Bp, P), jnp.float32)
        h_last, _ = lax.fori_loop(0, Tout, step, (h0, c0), unroll=time_unroll)

    # ---- Phase 3: fused fc2 epilogue on the final hidden state only -----------------
    o_ref[...] = (jnp.dot(h_last.astype(jnp.bfloat16), fcw_ref[...],
                          preferred_element_type=jnp.float32)
                  + fcb_ref[...]).astype(o_ref.dtype)


def _fused_call(xp, cw, cb, wih, whh, bg, fc_w, fc_b, *, t_out, batch, out_size):
    Tp, Bp, Cp = xp.shape
    K, _, Cout = cw.shape
    L, P, G = wih.shape
    Op = fc_w.shape[1]
    unroll = True if t_out <= 16 else 4
    kernel = functools.partial(_fused_kernel, time_unroll=unroll)
    out = pl.pallas_call(
        kernel,
        out_shape=jax.ShapeDtypeStruct((Bp, Op), jnp.float32),
        in_specs=[
            pl.BlockSpec((Tp, Bp, Cp), lambda: (0, 0, 0)),
            pl.BlockSpec((K, Cp, Cout), lambda: (0, 0, 0)),
            pl.BlockSpec((1, Cout), lambda: (0, 0)),
            pl.BlockSpec((L, P, G), lambda: (0, 0, 0)),
            pl.BlockSpec((L, P, G), lambda: (0, 0, 0)),
            pl.BlockSpec((L, 1, G), lambda: (0, 0, 0)),
            pl.BlockSpec((P, Op), lambda: (0, 0)),
            pl.BlockSpec((1, Op), lambda: (0, 0)),
        ],
        out_specs=pl.BlockSpec((Bp, Op), lambda: (0, 0)),
        scratch_shapes=[
            pltpu.VMEM((t_out, Bp, P), jnp.float32),   # layer output sequence (ping in place)
            pltpu.VMEM((t_out, Bp, G), jnp.float32),   # hoisted gate pre-activations
        ],
        compiler_params=pltpu.CompilerParams(vmem_limit_bytes=VMEM_LIMIT),
    )(xp, cw, cb, wih, whh, bg, fc_w, fc_b)
    return out[:batch, :out_size]


# ---------------------------------------------------------------------------
# Weight preparation (padding / transposition / bf16 cast), done in glue.
# ---------------------------------------------------------------------------
def _pad_gate_cols(w, h, p):
    # (rows, 4h) -> (rows, 4p): pad each of the 4 gate blocks (i,f,g,o) to p cols.
    rows = w.shape[0]
    w4 = w.reshape(rows, 4, h)
    w4 = jnp.pad(w4, ((0, 0), (0, 0), (0, p - h)))
    return w4.reshape(rows, 4 * p)


def _prep_lstm_params(params, hidden_size, p):
    wih_l, whh_l, b_l = [], [], []
    for layer in params["lstm"]:
        w_ih = _pad_gate_cols(layer["w_ih"].T, hidden_size, p)             # (Din, 4P)
        w_hh = _pad_gate_cols(layer["w_hh"].T, hidden_size, p)             # (H, 4P)
        bias = _pad_gate_cols((layer["b_ih"] + layer["b_hh"]).reshape(1, -1),
                              hidden_size, p)                              # (1, 4P)
        w_ih = jnp.pad(w_ih, ((0, p - w_ih.shape[0]), (0, 0)))             # rows -> P
        w_hh = jnp.pad(w_hh, ((0, p - w_hh.shape[0]), (0, 0)))
        wih_l.append(w_ih)
        whh_l.append(w_hh)
        b_l.append(bias)
    wih = jnp.stack(wih_l).astype(jnp.bfloat16)     # (L, P, 4P)
    whh = jnp.stack(whh_l).astype(jnp.bfloat16)     # (L, P, 4P)
    bg = jnp.stack(b_l).astype(jnp.float32)         # (L, 1, 4P)
    return wih, whh, bg


# ---------------------------------------------------------------------------
# Full model forward (matches PyTorch LSTMModelDynamic.forward).
# ---------------------------------------------------------------------------
def lstm_model_dynamic(x, params):
    B, T, Cin = x.shape
    conv_w = params["conv_w"]                       # (Cout, Cin, K)
    Cout, _, K = conv_w.shape
    H = params["lstm"][0]["w_hh"].shape[1]
    out_size = params["fc_w"].shape[0]

    pad_left = 2                                    # F.pad(..., (2, 0)) in the module
    Tp = T + pad_left
    Tout = Tp - K + 1                               # = T - 2 for K = 5

    P = max(_round_up(H, LANE), _round_up(Cout, LANE))
    Bp = _round_up(B, SUBLANE)
    Cp = _round_up(Cin, LANE)
    Op = _round_up(out_size, LANE)

    # 1) time-major, left-time-padded, batch/channel padded input
    xp = jnp.transpose(x, (1, 0, 2))                                    # (T, B, Cin)
    xp = jnp.pad(xp, ((pad_left, 0), (0, Bp - B), (0, Cp - Cin)))       # (Tp, Bp, Cp)

    # 2) conv weights per tap, transposed + lane-padded rows
    cw = jnp.transpose(conv_w, (2, 1, 0))                               # (K, Cin, Cout)
    cw = jnp.pad(cw, ((0, 0), (0, Cp - Cin), (0, 0))).astype(jnp.bfloat16)
    cb = params["conv_b"].reshape(1, Cout).astype(jnp.float32)

    # 3) padded / bf16 LSTM + fc weights
    wih, whh, bg = _prep_lstm_params(params, H, P)
    fc_w = jnp.pad(params["fc_w"].T,
                   ((0, P - H), (0, Op - out_size))).astype(jnp.bfloat16)  # (P, Op)
    fc_b = jnp.pad(params["fc_b"], (0, Op - out_size)).reshape(1, Op).astype(jnp.float32)

    # 4) one fused kernel: conv -> LSTM stack -> fc2 (only h_T's projection leaves VMEM)
    return _fused_call(xp, cw, cb, wih, whh, bg, fc_w, fc_b,
                       t_out=Tout, batch=B, out_size=out_size)


def init_params(key, input_size, hidden_size, num_layers, output_size, conv_ch=128, K=5):
    def u(k, shape, scale=0.1):
        return jax.random.uniform(k, shape, jnp.float32, -scale, scale)

    keys = jax.random.split(key, 4 + 4 * num_layers)
    params = {
        "conv_w": u(keys[0], (conv_ch, input_size, K)),
        "conv_b": u(keys[1], (conv_ch,)),
        "fc_w": u(keys[2], (output_size, hidden_size)),
        "fc_b": u(keys[3], (output_size,)),
        "lstm": [],
    }
    for l in range(num_layers):
        din = conv_ch if l == 0 else hidden_size
        kk = keys[4 + 4 * l: 8 + 4 * l]
        params["lstm"].append({
            "w_ih": u(kk[0], (4 * hidden_size, din)),
            "w_hh": u(kk[1], (4 * hidden_size, hidden_size)),
            "b_ih": u(kk[2], (4 * hidden_size,)),
            "b_hh": u(kk[3], (4 * hidden_size,)),
        })
    return params


if __name__ == "__main__":
    B, T = 2, 8
    input_size, hidden_size, num_layers, output_size = 4, 32, 2, 12

    key = jax.random.PRNGKey(0)
    k_x, k_p = jax.random.split(key)
    x = jax.random.normal(k_x, (B, T, input_size), jnp.float32)   # (batch, seq, features)
    params = init_params(k_p, input_size, hidden_size, num_layers, output_size)

    fwd = jax.jit(lstm_model_dynamic)
    out = jax.block_until_ready(fwd(x, params))
    assert out.shape == (B, output_size), out.shape
    assert out.dtype == jnp.float32
    print("KERNEL_OK")
</pallas_src>

<mosaic_0001>
module attributes {stable_mosaic.version = 11 : i64} {
  func.func @_fused_kernel(%arg0: memref<10x8x128xf32, #tpu.memory_space<vmem>>, %arg1: memref<5x128x128xbf16, #tpu.memory_space<vmem>>, %arg2: memref<1x128xf32, #tpu.memory_space<vmem>>, %arg3: memref<2x128x512xbf16, #tpu.memory_space<vmem>>, %arg4: memref<2x128x512xbf16, #tpu.memory_space<vmem>>, %arg5: memref<2x1x512xf32, #tpu.memory_space<vmem>>, %arg6: memref<128x128xbf16, #tpu.memory_space<vmem>>, %arg7: memref<1x128xf32, #tpu.memory_space<vmem>>, %arg8: memref<8x128xf32, #tpu.memory_space<vmem>>, %arg9: memref<6x8x128xf32, #tpu.memory_space<vmem>>, %arg10: memref<6x8x512xf32, #tpu.memory_space<vmem>>) attributes {dimension_semantics = [], scalar_prefetch = 0 : i64, scratch_operands = 2 : i64, tpu.core_type = #tpu.core_type<tc>} {
    %cst = arith.constant 0.000000e+00 : f32
    %0 = vector.broadcast %cst : f32 to vector<48x128xf32>
    %c0 = arith.constant 0 : index
    %c0_0 = arith.constant 0 : index
    %c0_1 = arith.constant 0 : index
    %1 = vector.load %arg0[%c0, %c0_0, %c0_1] : memref<10x8x128xf32, #tpu.memory_space<vmem>>, vector<6x8x128xf32>
    %2 = vector.shape_cast %1 : vector<6x8x128xf32> to vector<48x128xf32>
    %3 = arith.truncf %2 : vector<48x128xf32> to vector<48x128xbf16>
    %c0_2 = arith.constant 0 : index
    %c0_3 = arith.constant 0 : index
    %c0_4 = arith.constant 0 : index
    %4 = vector.load %arg1[%c0_2, %c0_3, %c0_4] : memref<5x128x128xbf16, #tpu.memory_space<vmem>>, vector<1x128x128xbf16>
    %5 = vector.shape_cast %4 : vector<1x128x128xbf16> to vector<128x128xbf16>
    %cst_5 = arith.constant dense<0.000000e+00> : vector<48x128xf32>
    %6 = tpu.matmul %3, %5, %cst_5 {dimension_numbers = #tpu.dot_dimension_numbers<[1], [0], [0], [1], [0, 0, 1, 1], [], []>} : vector<48x128xbf16>, vector<128x128xbf16>, vector<48x128xf32> -> vector<48x128xf32>
    %7 = arith.addf %0, %6 : vector<48x128xf32>
    %c1 = arith.constant 1 : index
    %c0_6 = arith.constant 0 : index
    %c0_7 = arith.constant 0 : index
    %8 = vector.load %arg0[%c1, %c0_6, %c0_7] : memref<10x8x128xf32, #tpu.memory_space<vmem>>, vector<6x8x128xf32>
    %9 = vector.shape_cast %8 : vector<6x8x128xf32> to vector<48x128xf32>
    %10 = arith.truncf %9 : vector<48x128xf32> to vector<48x128xbf16>
    %c1_8 = arith.constant 1 : index
    %c0_9 = arith.constant 0 : index
    %c0_10 = arith.constant 0 : index
    %11 = vector.load %arg1[%c1_8, %c0_9, %c0_10] : memref<5x128x128xbf16, #tpu.memory_space<vmem>>, vector<1x128x128xbf16>
    %12 = vector.shape_cast %11 : vector<1x128x128xbf16> to vector<128x128xbf16>
    %cst_11 = arith.constant dense<0.000000e+00> : vector<48x128xf32>
    %13 = tpu.matmul %10, %12, %cst_11 {dimension_numbers = #tpu.dot_dimension_numbers<[1], [0], [0], [1], [0, 0, 1, 1], [], []>} : vector<48x128xbf16>, vector<128x128xbf16>, vector<48x128xf32> -> vector<48x128xf32>
    %14 = arith.addf %7, %13 : vector<48x128xf32>
    %c2 = arith.constant 2 : index
    %c0_12 = arith.constant 0 : index
    %c0_13 = arith.constant 0 : index
    %15 = vector.load %arg0[%c2, %c0_12, %c0_13] : memref<10x8x128xf32, #tpu.memory_space<vmem>>, vector<6x8x128xf32>
    %16 = vector.shape_cast %15 : vector<6x8x128xf32> to vector<48x128xf32>
    %17 = arith.truncf %16 : vector<48x128xf32> to vector<48x128xbf16>
    %c2_14 = arith.constant 2 : index
    %c0_15 = arith.constant 0 : index
    %c0_16 = arith.constant 0 : index
    %18 = vector.load %arg1[%c2_14, %c0_15, %c0_16] : memref<5x128x128xbf16, #tpu.memory_space<vmem>>, vector<1x128x128xbf16>
    %19 = vector.shape_cast %18 : vector<1x128x128xbf16> to vector<128x128xbf16>
    %cst_17 = arith.constant dense<0.000000e+00> : vector<48x128xf32>
    %20 = tpu.matmul %17, %19, %cst_17 {dimension_numbers = #tpu.dot_dimension_numbers<[1], [0], [0], [1], [0, 0, 1, 1], [], []>} : vector<48x128xbf16>, vector<128x128xbf16>, vector<48x128xf32> -> vector<48x128xf32>
    %21 = arith.addf %14, %20 : vector<48x128xf32>
    %c3 = arith.constant 3 : index
    %c0_18 = arith.constant 0 : index
    %c0_19 = arith.constant 0 : index
    %22 = vector.load %arg0[%c3, %c0_18, %c0_19] : memref<10x8x128xf32, #tpu.memory_space<vmem>>, vector<6x8x128xf32>
    %23 = vector.shape_cast %22 : vector<6x8x128xf32> to vector<48x128xf32>
    %24 = arith.truncf %23 : vector<48x128xf32> to vector<48x128xbf16>
    %c3_20 = arith.constant 3 : index
    %c0_21 = arith.constant 0 : index
    %c0_22 = arith.constant 0 : index
    %25 = vector.load %arg1[%c3_20, %c0_21, %c0_22] : memref<5x128x128xbf16, #tpu.memory_space<vmem>>, vector<1x128x128xbf16>
    %26 = vector.shape_cast %25 : vector<1x128x128xbf16> to vector<128x128xbf16>
    %cst_23 = arith.constant dense<0.000000e+00> : vector<48x128xf32>
    %27 = tpu.matmul %24, %26, %cst_23 {dimension_numbers = #tpu.dot_dimension_numbers<[1], [0], [0], [1], [0, 0, 1, 1], [], []>} : vector<48x128xbf16>, vector<128x128xbf16>, vector<48x128xf32> -> vector<48x128xf32>
    %28 = arith.addf %21, %27 : vector<48x128xf32>
    %c4 = arith.constant 4 : index
    %c0_24 = arith.constant 0 : index
    %c0_25 = arith.constant 0 : index
    %29 = vector.load %arg0[%c4, %c0_24, %c0_25] : memref<10x8x128xf32, #tpu.memory_space<vmem>>, vector<6x8x128xf32>
    %30 = vector.shape_cast %29 : vector<6x8x128xf32> to vector<48x128xf32>
    %31 = arith.truncf %30 : vector<48x128xf32> to vector<48x128xbf16>
    %c4_26 = arith.constant 4 : index
    %c0_27 = arith.constant 0 : index
    %c0_28 = arith.constant 0 : index
    %32 = vector.load %arg1[%c4_26, %c0_27, %c0_28] : memref<5x128x128xbf16, #tpu.memory_space<vmem>>, vector<1x128x128xbf16>
    %33 = vector.shape_cast %32 : vector<1x128x128xbf16> to vector<128x128xbf16>
    %cst_29 = arith.constant dense<0.000000e+00> : vector<48x128xf32>
    %34 = tpu.matmul %31, %33, %cst_29 {dimension_numbers = #tpu.dot_dimension_numbers<[1], [0], [0], [1], [0, 0, 1, 1], [], []>} : vector<48x128xbf16>, vector<128x128xbf16>, vector<48x128xf32> -> vector<48x128xf32>
    %35 = arith.addf %28, %34 : vector<48x128xf32>
    %c0_30 = arith.constant 0 : index
    %c0_31 = arith.constant 0 : index
    %36 = vector.load %arg2[%c0_30, %c0_31] : memref<1x128xf32, #tpu.memory_space<vmem>>, vector<1x128xf32>
    %37 = vector.broadcast %36 : vector<1x128xf32> to vector<48x128xf32>
    %38 = arith.addf %35, %37 : vector<48x128xf32>
    %39 = vector.shape_cast %38 : vector<48x128xf32> to vector<6x8x128xf32>
    %c0_32 = arith.constant 0 : index
    %c0_33 = arith.constant 0 : index
    %c0_34 = arith.constant 0 : index
    %40 = vector.load %arg9[%c0_32, %c0_33, %c0_34] : memref<6x8x128xf32, #tpu.memory_space<vmem>>, vector<6x8x128xf32>
    tpu.vector_store %arg9[%c0_32, %c0_33, %c0_34], %39 {strides = array<i32>} : memref<6x8x128xf32, #tpu.memory_space<vmem>>, vector<6x8x128xf32>,
    %c0_35 = arith.constant 0 : index
    %c0_36 = arith.constant 0 : index
    %c0_37 = arith.constant 0 : index
    %41 = vector.load %arg9[%c0_35, %c0_36, %c0_37] : memref<6x8x128xf32, #tpu.memory_space<vmem>>, vector<6x8x128xf32>
    %42 = vector.shape_cast %41 : vector<6x8x128xf32> to vector<48x128xf32>
    %43 = arith.truncf %42 : vector<48x128xf32> to vector<48x128xbf16>
    %c0_38 = arith.constant 0 : index
    %c0_39 = arith.constant 0 : index
    %c0_40 = arith.constant 0 : index
    %44 = vector.load %arg3[%c0_38, %c0_39, %c0_40] : memref<2x128x512xbf16, #tpu.memory_space<vmem>>, vector<1x128x512xbf16>
    %45 = vector.shape_cast %44 : vector<1x128x512xbf16> to vector<128x512xbf16>
    %cst_41 = arith.constant dense<0.000000e+00> : vector<48x512xf32>
    %46 = tpu.matmul %43, %45, %cst_41 {dimension_numbers = #tpu.dot_dimension_numbers<[1], [0], [0], [1], [0, 0, 1, 1], [], []>} : vector<48x128xbf16>, vector<128x512xbf16>, vector<48x512xf32> -> vector<48x512xf32>
    %c0_42 = arith.constant 0 : index
    %c0_43 = arith.constant 0 : index
    %c0_44 = arith.constant 0 : index
    %47 = vector.load %arg5[%c0_42, %c0_43, %c0_44] : memref<2x1x512xf32, #tpu.memory_space<vmem>>, vector<1x1x512xf32>
    %48 = vector.shape_cast %47 : vector<1x1x512xf32> to vector<1x512xf32>
    %49 = vector.broadcast %48 : vector<1x512xf32> to vector<48x512xf32>
    %50 = arith.addf %46, %49 : vector<48x512xf32>
    %51 = vector.shape_cast %50 : vector<48x512xf32> to vector<6x8x512xf32>
    %c0_45 = arith.constant 0 : index
    %c0_46 = arith.constant 0 : index
    %c0_47 = arith.constant 0 : index
    %52 = vector.load %arg10[%c0_45, %c0_46, %c0_47] : memref<6x8x512xf32, #tpu.memory_space<vmem>>, vector<6x8x512xf32>
    tpu.vector_store %arg10[%c0_45, %c0_46, %c0_47], %51 {strides = array<i32>} : memref<6x8x512xf32, #tpu.memory_space<vmem>>, vector<6x8x512xf32>,
    %c0_48 = arith.constant 0 : index
    %c0_49 = arith.constant 0 : index
    %c0_50 = arith.constant 0 : index
    %53 = vector.load %arg4[%c0_48, %c0_49, %c0_50] : memref<2x128x512xbf16, #tpu.memory_space<vmem>>, vector<1x128x512xbf16>
    %54 = vector.shape_cast %53 : vector<1x128x512xbf16> to vector<128x512xbf16>
    %cst_51 = arith.constant 0.000000e+00 : f32
    %55 = vector.broadcast %cst_51 : f32 to vector<8x128xf32>
    %cst_52 = arith.constant 0.000000e+00 : f32
    %56 = vector.broadcast %cst_52 : f32 to vector<8x128xf32>
    %c0_i32 = arith.constant 0 : i32
    %57 = arith.index_cast %c0_i32 : i32 to index
    %c0_53 = arith.constant 0 : index
    %c0_54 = arith.constant 0 : index
    %58 = vector.load %arg10[%57, %c0_53, %c0_54] : memref<6x8x512xf32, #tpu.memory_space<vmem>>, vector<1x8x512xf32>
    %59 = vector.shape_cast %58 : vector<1x8x512xf32> to vector<8x512xf32>
    %60 = arith.truncf %55 : vector<8x128xf32> to vector<8x128xbf16>
    %cst_55 = arith.constant dense<0.000000e+00> : vector<8x512xf32>
    %61 = tpu.matmul %60, %54, %cst_55 {dimension_numbers = #tpu.dot_dimension_numbers<[1], [0], [0], [1], [0, 0, 1, 1], [], []>} : vector<8x128xbf16>, vector<128x512xbf16>, vector<8x512xf32> -> vector<8x512xf32>
    %62 = arith.addf %59, %61 : vector<8x512xf32>
    %63 = vector.extract_strided_slice %62 {offsets = [0, 0], sizes = [8, 128], strides = [1, 1]} : vector<8x512xf32> to vector<8x128xf32>
    %64 = arith.negf %63 : vector<8x128xf32>
    %65 = math.exp %64 : vector<8x128xf32>
    %cst_56 = arith.constant 1.000000e+00 : f32
    %66 = vector.broadcast %cst_56 : f32 to vector<8x128xf32>
    %67 = arith.addf %66, %65 : vector<8x128xf32>
    %68 = arith.divf %66, %67 : vector<8x128xf32>
    %69 = vector.extract_strided_slice %62 {offsets = [0, 128], sizes = [8, 128], strides = [1, 1]} : vector<8x512xf32> to vector<8x128xf32>
    %70 = arith.negf %69 : vector<8x128xf32>
    %71 = math.exp %70 : vector<8x128xf32>
    %cst_57 = arith.constant 1.000000e+00 : f32
    %72 = vector.broadcast %cst_57 : f32 to vector<8x128xf32>
    %73 = arith.addf %72, %71 : vector<8x128xf32>
    %74 = arith.divf %72, %73 : vector<8x128xf32>
    %75 = vector.extract_strided_slice %62 {offsets = [0, 256], sizes = [8, 128], strides = [1, 1]} : vector<8x512xf32> to vector<8x128xf32>
    %76 = math.tanh %75 : vector<8x128xf32>
    %77 = vector.extract_strided_slice %62 {offsets = [0, 384], sizes = [8, 128], strides = [1, 1]} : vector<8x512xf32> to vector<8x128xf32>
    %78 = arith.negf %77 : vector<8x128xf32>
    %79 = math.exp %78 : vector<8x128xf32>
    %cst_58 = arith.constant 1.000000e+00 : f32
    %80 = vector.broadcast %cst_58 : f32 to vector<8x128xf32>
    %81 = arith.addf %80, %79 : vector<8x128xf32>
    %82 = arith.divf %80, %81 : vector<8x128xf32>
    %83 = arith.mulf %74, %56 : vector<8x128xf32>
    %84 = arith.mulf %68, %76 : vector<8x128xf32>
    %85 = arith.addf %83, %84 : vector<8x128xf32>
    %86 = math.tanh %85 : vector<8x128xf32>
    %87 = arith.mulf %82, %86 : vector<8x128xf32>
    %88 = arith.index_cast %c0_i32 : i32 to index
    %c0_59 = arith.constant 0 : index
    %c0_60 = arith.constant 0 : index
    %89 = vector.load %arg9[%88, %c0_59, %c0_60] : memref<6x8x128xf32, #tpu.memory_space<vmem>>, vector<1x8x128xf32>
    %90 = vector.shape_cast %89 : vector<1x8x128xf32> to vector<8x128xf32>
    %91 = vector.shape_cast %87 : vector<8x128xf32> to vector<1x8x128xf32>
    tpu.vector_store %arg9[%88, %c0_59, %c0_60], %91 {strides = array<i32>} : memref<6x8x128xf32, #tpu.memory_space<vmem>>, vector<1x8x128xf32>,
    %c1_i32 = arith.constant 1 : i32
    %92 = arith.index_cast %c1_i32 : i32 to index
    %c0_61 = arith.constant 0 : index
    %c0_62 = arith.constant 0 : index
    %93 = vector.load %arg10[%92, %c0_61, %c0_62] : memref<6x8x512xf32, #tpu.memory_space<vmem>>, vector<1x8x512xf32>
    %94 = vector.shape_cast %93 : vector<1x8x512xf32> to vector<8x512xf32>
    %95 = arith.truncf %87 : vector<8x128xf32> to vector<8x128xbf16>
    %cst_63 = arith.constant dense<0.000000e+00> : vector<8x512xf32>
    %96 = tpu.matmul %95, %54, %cst_63 {dimension_numbers = #tpu.dot_dimension_numbers<[1], [0], [0], [1], [0, 0, 1, 1], [], []>} : vector<8x128xbf16>, vector<128x512xbf16>, vector<8x512xf32> -> vector<8x512xf32>
    %97 = arith.addf %94, %96 : vector<8x512xf32>
    %98 = vector.extract_strided_slice %97 {offsets = [0, 0], sizes = [8, 128], strides = [1, 1]} : vector<8x512xf32> to vector<8x128xf32>
    %99 = arith.negf %98 : vector<8x128xf32>
    %100 = math.exp %99 : vector<8x128xf32>
    %cst_64 = arith.constant 1.000000e+00 : f32
    %101 = vector.broadcast %cst_64 : f32 to vector<8x128xf32>
    %102 = arith.addf %101, %100 : vector<8x128xf32>
    %103 = arith.divf %101, %102 : vector<8x128xf32>
    %104 = vector.extract_strided_slice %97 {offsets = [0, 128], sizes = [8, 128], strides = [1, 1]} : vector<8x512xf32> to vector<8x128xf32>
    %105 = arith.negf %104 : vector<8x128xf32>
    %106 = math.exp %105 : vector<8x128xf32>
    %cst_65 = arith.constant 1.000000e+00 : f32
    %107 = vector.broadcast %cst_65 : f32 to vector<8x128xf32>
    %108 = arith.addf %107, %106 : vector<8x128xf32>
    %109 = arith.divf %107, %108 : vector<8x128xf32>
    %110 = vector.extract_strided_slice %97 {offsets = [0, 256], sizes = [8, 128], strides = [1, 1]} : vector<8x512xf32> to vector<8x128xf32>
    %111 = math.tanh %110 : vector<8x128xf32>
    %112 = vector.extract_strided_slice %97 {offsets = [0, 384], sizes = [8, 128], strides = [1, 1]} : vector<8x512xf32> to vector<8x128xf32>
    %113 = arith.negf %112 : vector<8x128xf32>
    %114 = math.exp %113 : vector<8x128xf32>
    %cst_66 = arith.constant 1.000000e+00 : f32
    %115 = vector.broadcast %cst_66 : f32 to vector<8x128xf32>
    %116 = arith.addf %115, %114 : vector<8x128xf32>
    %117 = arith.divf %115, %116 : vector<8x128xf32>
    %118 = arith.mulf %109, %85 : vector<8x128xf32>
    %119 = arith.mulf %103, %111 : vector<8x128xf32>
    %120 = arith.addf %118, %119 : vector<8x128xf32>
    %121 = math.tanh %120 : vector<8x128xf32>
    %122 = arith.mulf %117, %121 : vector<8x128xf32>
    %123 = arith.index_cast %c1_i32 : i32 to index
    %c0_67 = arith.constant 0 : index
    %c0_68 = arith.constant 0 : index
    %124 = vector.load %arg9[%123, %c0_67, %c0_68] : memref<6x8x128xf32, #tpu.memory_space<vmem>>, vector<1x8x128xf32>
    %125 = vector.shape_cast %124 : vector<1x8x128xf32> to vector<8x128xf32>
    %126 = vector.shape_cast %122 : vector<8x128xf32> to vector<1x8x128xf32>
    tpu.vector_store %arg9[%123, %c0_67, %c0_68], %126 {strides = array<i32>} : memref<6x8x128xf32, #tpu.memory_space<vmem>>, vector<1x8x128xf32>,
    %c2_i32 = arith.constant 2 : i32
    %127 = arith.index_cast %c2_i32 : i32 to index
    %c0_69 = arith.constant 0 : index
    %c0_70 = arith.constant 0 : index
    %128 = vector.load %arg10[%127, %c0_69, %c0_70] : memref<6x8x512xf32, #tpu.memory_space<vmem>>, vector<1x8x512xf32>
    %129 = vector.shape_cast %128 : vector<1x8x512xf32> to vector<8x512xf32>
    %130 = arith.truncf %122 : vector<8x128xf32> to vector<8x128xbf16>
    %cst_71 = arith.constant dense<0.000000e+00> : vector<8x512xf32>
    %131 = tpu.matmul %130, %54, %cst_71 {dimension_numbers = #tpu.dot_dimension_numbers<[1], [0], [0], [1], [0, 0, 1, 1], [], []>} : vector<8x128xbf16>, vector<128x512xbf16>, vector<8x512xf32> -> vector<8x512xf32>
    %132 = arith.addf %129, %131 : vector<8x512xf32>
    %133 = vector.extract_strided_slice %132 {offsets = [0, 0], sizes = [8, 128], strides = [1, 1]} : vector<8x512xf32> to vector<8x128xf32>
    %134 = arith.negf %133 : vector<8x128xf32>
    %135 = math.exp %134 : vector<8x128xf32>
    %cst_72 = arith.constant 1.000000e+00 : f32
    %136 = vector.broadcast %cst_72 : f32 to vector<8x128xf32>
    %137 = arith.addf %136, %135 : vector<8x128xf32>
    %138 = arith.divf %136, %137 : vector<8x128xf32>
    %139 = vector.extract_strided_slice %132 {offsets = [0, 128], sizes = [8, 128], strides = [1, 1]} : vector<8x512xf32> to vector<8x128xf32>
    %140 = arith.negf %139 : vector<8x128xf32>
    %141 = math.exp %140 : vector<8x128xf32>
    %cst_73 = arith.constant 1.000000e+00 : f32
    %142 = vector.broadcast %cst_73 : f32 to vector<8x128xf32>
    %143 = arith.addf %142, %141 : vector<8x128xf32>
    %144 = arith.divf %142, %143 : vector<8x128xf32>
    %145 = vector.extract_strided_slice %132 {offsets = [0, 256], sizes = [8, 128], strides = [1, 1]} : vector<8x512xf32> to vector<8x128xf32>
    %146 = math.tanh %145 : vector<8x128xf32>
    %147 = vector.extract_strided_slice %132 {offsets = [0, 384], sizes = [8, 128], strides = [1, 1]} : vector<8x512xf32> to vector<8x128xf32>
    %148 = arith.negf %147 : vector<8x128xf32>
    %149 = math.exp %148 : vector<8x128xf32>
    %cst_74 = arith.constant 1.000000e+00 : f32
    %150 = vector.broadcast %cst_74 : f32 to vector<8x128xf32>
    %151 = arith.addf %150, %149 : vector<8x128xf32>
    %152 = arith.divf %150, %151 : vector<8x128xf32>
    %153 = arith.mulf %144, %120 : vector<8x128xf32>
    %154 = arith.mulf %138, %146 : vector<8x128xf32>
    %155 = arith.addf %153, %154 : vector<8x128xf32>
    %156 = math.tanh %155 : vector<8x128xf32>
    %157 = arith.mulf %152, %156 : vector<8x128xf32>
    %158 = arith.index_cast %c2_i32 : i32 to index
    %c0_75 = arith.constant 0 : index
    %c0_76 = arith.constant 0 : index
    %159 = vector.load %arg9[%158, %c0_75, %c0_76] : memref<6x8x128xf32, #tpu.memory_space<vmem>>, vector<1x8x128xf32>
    %160 = vector.shape_cast %159 : vector<1x8x128xf32> to vector<8x128xf32>
    %161 = vector.shape_cast %157 : vector<8x128xf32> to vector<1x8x128xf32>
    tpu.vector_store %arg9[%158, %c0_75, %c0_76], %161 {strides = array<i32>} : memref<6x8x128xf32, #tpu.memory_space<vmem>>, vector<1x8x128xf32>,
    %c3_i32 = arith.constant 3 : i32
    %162 = arith.index_cast %c3_i32 : i32 to index
    %c0_77 = arith.constant 0 : index
    %c0_78 = arith.constant 0 : index
    %163 = vector.load %arg10[%162, %c0_77, %c0_78] : memref<6x8x512xf32, #tpu.memory_space<vmem>>, vector<1x8x512xf32>
    %164 = vector.shape_cast %163 : vector<1x8x512xf32> to vector<8x512xf32>
    %165 = arith.truncf %157 : vector<8x128xf32> to vector<8x128xbf16>
    %cst_79 = arith.constant dense<0.000000e+00> : vector<8x512xf32>
    %166 = tpu.matmul %165, %54, %cst_79 {dimension_numbers = #tpu.dot_dimension_numbers<[1], [0], [0], [1], [0, 0, 1, 1], [], []>} : vector<8x128xbf16>, vector<128x512xbf16>, vector<8x512xf32> -> vector<8x512xf32>
    %167 = arith.addf %164, %166 : vector<8x512xf32>
    %168 = vector.extract_strided_slice %167 {offsets = [0, 0], sizes = [8, 128], strides = [1, 1]} : vector<8x512xf32> to vector<8x128xf32>
    %169 = arith.negf %168 : vector<8x128xf32>
    %170 = math.exp %169 : vector<8x128xf32>
    %cst_80 = arith.constant 1.000000e+00 : f32
    %171 = vector.broadcast %cst_80 : f32 to vector<8x128xf32>
    %172 = arith.addf %171, %170 : vector<8x128xf32>
    %173 = arith.divf %171, %172 : vector<8x128xf32>
    %174 = vector.extract_strided_slice %167 {offsets = [0, 128], sizes = [8, 128], strides = [1, 1]} : vector<8x512xf32> to vector<8x128xf32>
    %175 = arith.negf %174 : vector<8x128xf32>
    %176 = math.exp %175 : vector<8x128xf32>
    %cst_81 = arith.constant 1.000000e+00 : f32
    %177 = vector.broadcast %cst_81 : f32 to vector<8x128xf32>
    %178 = arith.addf %177, %176 : vector<8x128xf32>
    %179 = arith.divf %177, %178 : vector<8x128xf32>
    %180 = vector.extract_strided_slice %167 {offsets = [0, 256], sizes = [8, 128], strides = [1, 1]} : vector<8x512xf32> to vector<8x128xf32>
    %181 = math.tanh %180 : vector<8x128xf32>
    %182 = vector.extract_strided_slice %167 {offsets = [0, 384], sizes = [8, 128], strides = [1, 1]} : vector<8x512xf32> to vector<8x128xf32>
    %183 = arith.negf %182 : vector<8x128xf32>
    %184 = math.exp %183 : vector<8x128xf32>
    %cst_82 = arith.constant 1.000000e+00 : f32
    %185 = vector.broadcast %cst_82 : f32 to vector<8x128xf32>
    %186 = arith.addf %185, %184 : vector<8x128xf32>
    %187 = arith.divf %185, %186 : vector<8x128xf32>
    %188 = arith.mulf %179, %155 : vector<8x128xf32>
    %189 = arith.mulf %173, %181 : vector<8x128xf32>
    %190 = arith.addf %188, %189 : vector<8x128xf32>
    %191 = math.tanh %190 : vector<8x128xf32>
    %192 = arith.mulf %187, %191 : vector<8x128xf32>
    %193 = arith.index_cast %c3_i32 : i32 to index
    %c0_83 = arith.constant 0 : index
    %c0_84 = arith.constant 0 : index
    %194 = vector.load %arg9[%193, %c0_83, %c0_84] : memref<6x8x128xf32, #tpu.memory_space<vmem>>, vector<1x8x128xf32>
    %195 = vector.shape_cast %194 : vector<1x8x128xf32> to vector<8x128xf32>
    %196 = vector.shape_cast %192 : vector<8x128xf32> to vector<1x8x128xf32>
    tpu.vector_store %arg9[%193, %c0_83, %c0_84], %196 {strides = array<i32>} : memref<6x8x128xf32, #tpu.memory_space<vmem>>, vector<1x8x128xf32>,
    %c4_i32 = arith.constant 4 : i32
    %197 = arith.index_cast %c4_i32 : i32 to index
    %c0_85 = arith.constant 0 : index
    %c0_86 = arith.constant 0 : index
    %198 = vector.load %arg10[%197, %c0_85, %c0_86] : memref<6x8x512xf32, #tpu.memory_space<vmem>>, vector<1x8x512xf32>
    %199 = vector.shape_cast %198 : vector<1x8x512xf32> to vector<8x512xf32>
    %200 = arith.truncf %192 : vector<8x128xf32> to vector<8x128xbf16>
    %cst_87 = arith.constant dense<0.000000e+00> : vector<8x512xf32>
    %201 = tpu.matmul %200, %54, %cst_87 {dimension_numbers = #tpu.dot_dimension_numbers<[1], [0], [0], [1], [0, 0, 1, 1], [], []>} : vector<8x128xbf16>, vector<128x512xbf16>, vector<8x512xf32> -> vector<8x512xf32>
    %202 = arith.addf %199, %201 : vector<8x512xf32>
    %203 = vector.extract_strided_slice %202 {offsets = [0, 0], sizes = [8, 128], strides = [1, 1]} : vector<8x512xf32> to vector<8x128xf32>
    %204 = arith.negf %203 : vector<8x128xf32>
    %205 = math.exp %204 : vector<8x128xf32>
    %cst_88 = arith.constant 1.000000e+00 : f32
    %206 = vector.broadcast %cst_88 : f32 to vector<8x128xf32>
    %207 = arith.addf %206, %205 : vector<8x128xf32>
    %208 = arith.divf %206, %207 : vector<8x128xf32>
    %209 = vector.extract_strided_slice %202 {offsets = [0, 128], sizes = [8, 128], strides = [1, 1]} : vector<8x512xf32> to vector<8x128xf32>
    %210 = arith.negf %209 : vector<8x128xf32>
    %211 = math.exp %210 : vector<8x128xf32>
    %cst_89 = arith.constant 1.000000e+00 : f32
    %212 = vector.broadcast %cst_89 : f32 to vector<8x128xf32>
    %213 = arith.addf %212, %211 : vector<8x128xf32>
    %214 = arith.divf %212, %213 : vector<8x128xf32>
    %215 = vector.extract_strided_slice %202 {offsets = [0, 256], sizes = [8, 128], strides = [1, 1]} : vector<8x512xf32> to vector<8x128xf32>
    %216 = math.tanh %215 : vector<8x128xf32>
    %217 = vector.extract_strided_slice %202 {offsets = [0, 384], sizes = [8, 128], strides = [1, 1]} : vector<8x512xf32> to vector<8x128xf32>
    %218 = arith.negf %217 : vector<8x128xf32>
    %219 = math.exp %218 : vector<8x128xf32>
    %cst_90 = arith.constant 1.000000e+00 : f32
    %220 = vector.broadcast %cst_90 : f32 to vector<8x128xf32>
    %221 = arith.addf %220, %219 : vector<8x128xf32>
    %222 = arith.divf %220, %221 : vector<8x128xf32>
    %223 = arith.mulf %214, %190 : vector<8x128xf32>
    %224 = arith.mulf %208, %216 : vector<8x128xf32>
    %225 = arith.addf %223, %224 : vector<8x128xf32>
    %226 = math.tanh %225 : vector<8x128xf32>
    %227 = arith.mulf %222, %226 : vector<8x128xf32>
    %228 = arith.index_cast %c4_i32 : i32 to index
    %c0_91 = arith.constant 0 : index
    %c0_92 = arith.constant 0 : index
    %229 = vector.load %arg9[%228, %c0_91, %c0_92] : memref<6x8x128xf32, #tpu.memory_space<vmem>>, vector<1x8x128xf32>
    %230 = vector.shape_cast %229 : vector<1x8x128xf32> to vector<8x128xf32>
    %231 = vector.shape_cast %227 : vector<8x128xf32> to vector<1x8x128xf32>
    tpu.vector_store %arg9[%228, %c0_91, %c0_92], %231 {strides = array<i32>} : memref<6x8x128xf32, #tpu.memory_space<vmem>>, vector<1x8x128xf32>,
    %c5_i32 = arith.constant 5 : i32
    %232 = arith.index_cast %c5_i32 : i32 to index
    %c0_93 = arith.constant 0 : index
    %c0_94 = arith.constant 0 : index
    %233 = vector.load %arg10[%232, %c0_93, %c0_94] : memref<6x8x512xf32, #tpu.memory_space<vmem>>, vector<1x8x512xf32>
    %234 = vector.shape_cast %233 : vector<1x8x512xf32> to vector<8x512xf32>
    %235 = arith.truncf %227 : vector<8x128xf32> to vector<8x128xbf16>
    %cst_95 = arith.constant dense<0.000000e+00> : vector<8x512xf32>
    %236 = tpu.matmul %235, %54, %cst_95 {dimension_numbers = #tpu.dot_dimension_numbers<[1], [0], [0], [1], [0, 0, 1, 1], [], []>} : vector<8x128xbf16>, vector<128x512xbf16>, vector<8x512xf32> -> vector<8x512xf32>
    %237 = arith.addf %234, %236 : vector<8x512xf32>
    %238 = vector.extract_strided_slice %237 {offsets = [0, 0], sizes = [8, 128], strides = [1, 1]} : vector<8x512xf32> to vector<8x128xf32>
    %239 = arith.negf %238 : vector<8x128xf32>
    %240 = math.exp %239 : vector<8x128xf32>
    %cst_96 = arith.constant 1.000000e+00 : f32
    %241 = vector.broadcast %cst_96 : f32 to vector<8x128xf32>
    %242 = arith.addf %241, %240 : vector<8x128xf32>
    %243 = arith.divf %241, %242 : vector<8x128xf32>
    %244 = vector.extract_strided_slice %237 {offsets = [0, 128], sizes = [8, 128], strides = [1, 1]} : vector<8x512xf32> to vector<8x128xf32>
    %245 = arith.negf %244 : vector<8x128xf32>
    %246 = math.exp %245 : vector<8x128xf32>
    %cst_97 = arith.constant 1.000000e+00 : f32
    %247 = vector.broadcast %cst_97 : f32 to vector<8x128xf32>
    %248 = arith.addf %247, %246 : vector<8x128xf32>
    %249 = arith.divf %247, %248 : vector<8x128xf32>
    %250 = vector.extract_strided_slice %237 {offsets = [0, 256], sizes = [8, 128], strides = [1, 1]} : vector<8x512xf32> to vector<8x128xf32>
    %251 = math.tanh %250 : vector<8x128xf32>
    %252 = vector.extract_strided_slice %237 {offsets = [0, 384], sizes = [8, 128], strides = [1, 1]} : vector<8x512xf32> to vector<8x128xf32>
    %253 = arith.negf %252 : vector<8x128xf32>
    %254 = math.exp %253 : vector<8x128xf32>
    %cst_98 = arith.constant 1.000000e+00 : f32
    %255 = vector.broadcast %cst_98 : f32 to vector<8x128xf32>
    %256 = arith.addf %255, %254 : vector<8x128xf32>
    %257 = arith.divf %255, %256 : vector<8x128xf32>
    %258 = arith.mulf %249, %225 : vector<8x128xf32>
    %259 = arith.mulf %243, %251 : vector<8x128xf32>
    %260 = arith.addf %258, %259 : vector<8x128xf32>
    %261 = math.tanh %260 : vector<8x128xf32>
    %262 = arith.mulf %257, %261 : vector<8x128xf32>
    %263 = arith.index_cast %c5_i32 : i32 to index
    %c0_99 = arith.constant 0 : index
    %c0_100 = arith.constant 0 : index
    %264 = vector.load %arg9[%263, %c0_99, %c0_100] : memref<6x8x128xf32, #tpu.memory_space<vmem>>, vector<1x8x128xf32>
    %265 = vector.shape_cast %264 : vector<1x8x128xf32> to vector<8x128xf32>
    %266 = vector.shape_cast %262 : vector<8x128xf32> to vector<1x8x128xf32>
    tpu.vector_store %arg9[%263, %c0_99, %c0_100], %266 {strides = array<i32>} : memref<6x8x128xf32, #tpu.memory_space<vmem>>, vector<1x8x128xf32>,
    %c6_i32 = arith.constant 6 : i32
    %c0_101 = arith.constant 0 : index
    %c0_102 = arith.constant 0 : index
    %c0_103 = arith.constant 0 : index
    %267 = vector.load %arg9[%c0_101, %c0_102, %c0_103] : memref<6x8x128xf32, #tpu.memory_space<vmem>>, vector<6x8x128xf32>
    %268 = vector.shape_cast %267 : vector<6x8x128xf32> to vector<48x128xf32>
    %269 = arith.truncf %268 : vector<48x128xf32> to vector<48x128xbf16>
    %c1_104 = arith.constant 1 : index
    %c0_105 = arith.constant 0 : index
    %c0_106 = arith.constant 0 : index
    %270 = vector.load %arg3[%c1_104, %c0_105, %c0_106] : memref<2x128x512xbf16, #tpu.memory_space<vmem>>, vector<1x128x512xbf16>
    %271 = vector.shape_cast %270 : vector<1x128x512xbf16> to vector<128x512xbf16>
    %cst_107 = arith.constant dense<0.000000e+00> : vector<48x512xf32>
    %272 = tpu.matmul %269, %271, %cst_107 {dimension_numbers = #tpu.dot_dimension_numbers<[1], [0], [0], [1], [0, 0, 1, 1], [], []>} : vector<48x128xbf16>, vector<128x512xbf16>, vector<48x512xf32> -> vector<48x512xf32>
    %c1_108 = arith.constant 1 : index
    %c0_109 = arith.constant 0 : index
    %c0_110 = arith.constant 0 : index
    %273 = vector.load %arg5[%c1_108, %c0_109, %c0_110] : memref<2x1x512xf32, #tpu.memory_space<vmem>>, vector<1x1x512xf32>
    %274 = vector.shape_cast %273 : vector<1x1x512xf32> to vector<1x512xf32>
    %275 = vector.broadcast %274 : vector<1x512xf32> to vector<48x512xf32>
    %276 = arith.addf %272, %275 : vector<48x512xf32>
    %277 = vector.shape_cast %276 : vector<48x512xf32> to vector<6x8x512xf32>
    %c0_111 = arith.constant 0 : index
    %c0_112 = arith.constant 0 : index
    %c0_113 = arith.constant 0 : index
    %278 = vector.load %arg10[%c0_111, %c0_112, %c0_113] : memref<6x8x512xf32, #tpu.memory_space<vmem>>, vector<6x8x512xf32>
    tpu.vector_store %arg10[%c0_111, %c0_112, %c0_113], %277 {strides = array<i32>} : memref<6x8x512xf32, #tpu.memory_space<vmem>>, vector<6x8x512xf32>,
    %c1_114 = arith.constant 1 : index
    %c0_115 = arith.constant 0 : index
    %c0_116 = arith.constant 0 : index
    %279 = vector.load %arg4[%c1_114, %c0_115, %c0_116] : memref<2x128x512xbf16, #tpu.memory_space<vmem>>, vector<1x128x512xbf16>
    %280 = vector.shape_cast %279 : vector<1x128x512xbf16> to vector<128x512xbf16>
    %cst_117 = arith.constant 0.000000e+00 : f32
    %281 = vector.broadcast %cst_117 : f32 to vector<8x128xf32>
    %cst_118 = arith.constant 0.000000e+00 : f32
    %282 = vector.broadcast %cst_118 : f32 to vector<8x128xf32>
    %c0_i32_119 = arith.constant 0 : i32
    %283 = arith.index_cast %c0_i32_119 : i32 to index
    %c0_120 = arith.constant 0 : index
    %c0_121 = arith.constant 0 : index
    %284 = vector.load %arg10[%283, %c0_120, %c0_121] : memref<6x8x512xf32, #tpu.memory_space<vmem>>, vector<1x8x512xf32>
    %285 = vector.shape_cast %284 : vector<1x8x512xf32> to vector<8x512xf32>
    %286 = arith.truncf %281 : vector<8x128xf32> to vector<8x128xbf16>
    %cst_122 = arith.constant dense<0.000000e+00> : vector<8x512xf32>
    %287 = tpu.matmul %286, %280, %cst_122 {dimension_numbers = #tpu.dot_dimension_numbers<[1], [0], [0], [1], [0, 0, 1, 1], [], []>} : vector<8x128xbf16>, vector<128x512xbf16>, vector<8x512xf32> -> vector<8x512xf32>
    %288 = arith.addf %285, %287 : vector<8x512xf32>
    %289 = vector.extract_strided_slice %288 {offsets = [0, 0], sizes = [8, 128], strides = [1, 1]} : vector<8x512xf32> to vector<8x128xf32>
    %290 = arith.negf %289 : vector<8x128xf32>
    %291 = math.exp %290 : vector<8x128xf32>
    %cst_123 = arith.constant 1.000000e+00 : f32
    %292 = vector.broadcast %cst_123 : f32 to vector<8x128xf32>
    %293 = arith.addf %292, %291 : vector<8x128xf32>
    %294 = arith.divf %292, %293 : vector<8x128xf32>
    %295 = vector.extract_strided_slice %288 {offsets = [0, 128], sizes = [8, 128], strides = [1, 1]} : vector<8x512xf32> to vector<8x128xf32>
    %296 = arith.negf %295 : vector<8x128xf32>
    %297 = math.exp %296 : vector<8x128xf32>
    %cst_124 = arith.constant 1.000000e+00 : f32
    %298 = vector.broadcast %cst_124 : f32 to vector<8x128xf32>
    %299 = arith.addf %298, %297 : vector<8x128xf32>
    %300 = arith.divf %298, %299 : vector<8x128xf32>
    %301 = vector.extract_strided_slice %288 {offsets = [0, 256], sizes = [8, 128], strides = [1, 1]} : vector<8x512xf32> to vector<8x128xf32>
    %302 = math.tanh %301 : vector<8x128xf32>
    %303 = vector.extract_strided_slice %288 {offsets = [0, 384], sizes = [8, 128], strides = [1, 1]} : vector<8x512xf32> to vector<8x128xf32>
    %304 = arith.negf %303 : vector<8x128xf32>
    %305 = math.exp %304 : vector<8x128xf32>
    %cst_125 = arith.constant 1.000000e+00 : f32
    %306 = vector.broadcast %cst_125 : f32 to vector<8x128xf32>
    %307 = arith.addf %306, %305 : vector<8x128xf32>
    %308 = arith.divf %306, %307 : vector<8x128xf32>
    %309 = arith.mulf %300, %282 : vector<8x128xf32>
    %310 = arith.mulf %294, %302 : vector<8x128xf32>
    %311 = arith.addf %309, %310 : vector<8x128xf32>
    %312 = math.tanh %311 : vector<8x128xf32>
    %313 = arith.mulf %308, %312 : vector<8x128xf32>
    %c1_i32_126 = arith.constant 1 : i32
    %314 = arith.index_cast %c1_i32_126 : i32 to index
    %c0_127 = arith.constant 0 : index
    %c0_128 = arith.constant 0 : index
    %315 = vector.load %arg10[%314, %c0_127, %c0_128] : memref<6x8x512xf32, #tpu.memory_space<vmem>>, vector<1x8x512xf32>
    %316 = vector.shape_cast %315 : vector<1x8x512xf32> to vector<8x512xf32>
    %317 = arith.truncf %313 : vector<8x128xf32> to vector<8x128xbf16>
    %cst_129 = arith.constant dense<0.000000e+00> : vector<8x512xf32>
    %318 = tpu.matmul %317, %280, %cst_129 {dimension_numbers = #tpu.dot_dimension_numbers<[1], [0], [0], [1], [0, 0, 1, 1], [], []>} : vector<8x128xbf16>, vector<128x512xbf16>, vector<8x512xf32> -> vector<8x512xf32>
    %319 = arith.addf %316, %318 : vector<8x512xf32>
    %320 = vector.extract_strided_slice %319 {offsets = [0, 0], sizes = [8, 128], strides = [1, 1]} : vector<8x512xf32> to vector<8x128xf32>
    %321 = arith.negf %320 : vector<8x128xf32>
    %322 = math.exp %321 : vector<8x128xf32>
    %cst_130 = arith.constant 1.000000e+00 : f32
    %323 = vector.broadcast %cst_130 : f32 to vector<8x128xf32>
    %324 = arith.addf %323, %322 : vector<8x128xf32>
    %325 = arith.divf %323, %324 : vector<8x128xf32>
    %326 = vector.extract_strided_slice %319 {offsets = [0, 128], sizes = [8, 128], strides = [1, 1]} : vector<8x512xf32> to vector<8x128xf32>
    %327 = arith.negf %326 : vector<8x128xf32>
    %328 = math.exp %327 : vector<8x128xf32>
    %cst_131 = arith.constant 1.000000e+00 : f32
    %329 = vector.broadcast %cst_131 : f32 to vector<8x128xf32>
    %330 = arith.addf %329, %328 : vector<8x128xf32>
    %331 = arith.divf %329, %330 : vector<8x128xf32>
    %332 = vector.extract_strided_slice %319 {offsets = [0, 256], sizes = [8, 128], strides = [1, 1]} : vector<8x512xf32> to vector<8x128xf32>
    %333 = math.tanh %332 : vector<8x128xf32>
    %334 = vector.extract_strided_slice %319 {offsets = [0, 384], sizes = [8, 128], strides = [1, 1]} : vector<8x512xf32> to vector<8x128xf32>
    %335 = arith.negf %334 : vector<8x128xf32>
    %336 = math.exp %335 : vector<8x128xf32>
    %cst_132 = arith.constant 1.000000e+00 : f32
    %337 = vector.broadcast %cst_132 : f32 to vector<8x128xf32>
    %338 = arith.addf %337, %336 : vector<8x128xf32>
    %339 = arith.divf %337, %338 : vector<8x128xf32>
    %340 = arith.mulf %331, %311 : vector<8x128xf32>
    %341 = arith.mulf %325, %333 : vector<8x128xf32>
    %342 = arith.addf %340, %341 : vector<8x128xf32>
    %343 = math.tanh %342 : vector<8x128xf32>
    %344 = arith.mulf %339, %343 : vector<8x128xf32>
    %c2_i32_133 = arith.constant 2 : i32
    %345 = arith.index_cast %c2_i32_133 : i32 to index
    %c0_134 = arith.constant 0 : index
    %c0_135 = arith.constant 0 : index
    %346 = vector.load %arg10[%345, %c0_134, %c0_135] : memref<6x8x512xf32, #tpu.memory_space<vmem>>, vector<1x8x512xf32>
    %347 = vector.shape_cast %346 : vector<1x8x512xf32> to vector<8x512xf32>
    %348 = arith.truncf %344 : vector<8x128xf32> to vector<8x128xbf16>
    %cst_136 = arith.constant dense<0.000000e+00> : vector<8x512xf32>
    %349 = tpu.matmul %348, %280, %cst_136 {dimension_numbers = #tpu.dot_dimension_numbers<[1], [0], [0], [1], [0, 0, 1, 1], [], []>} : vector<8x128xbf16>, vector<128x512xbf16>, vector<8x512xf32> -> vector<8x512xf32>
    %350 = arith.addf %347, %349 : vector<8x512xf32>
    %351 = vector.extract_strided_slice %350 {offsets = [0, 0], sizes = [8, 128], strides = [1, 1]} : vector<8x512xf32> to vector<8x128xf32>
    %352 = arith.negf %351 : vector<8x128xf32>
    %353 = math.exp %352 : vector<8x128xf32>
    %cst_137 = arith.constant 1.000000e+00 : f32
    %354 = vector.broadcast %cst_137 : f32 to vector<8x128xf32>
    %355 = arith.addf %354, %353 : vector<8x128xf32>
    %356 = arith.divf %354, %355 : vector<8x128xf32>
    %357 = vector.extract_strided_slice %350 {offsets = [0, 128], sizes = [8, 128], strides = [1, 1]} : vector<8x512xf32> to vector<8x128xf32>
    %358 = arith.negf %357 : vector<8x128xf32>
    %359 = math.exp %358 : vector<8x128xf32>
    %cst_138 = arith.constant 1.000000e+00 : f32
    %360 = vector.broadcast %cst_138 : f32 to vector<8x128xf32>
    %361 = arith.addf %360, %359 : vector<8x128xf32>
    %362 = arith.divf %360, %361 : vector<8x128xf32>
    %363 = vector.extract_strided_slice %350 {offsets = [0, 256], sizes = [8, 128], strides = [1, 1]} : vector<8x512xf32> to vector<8x128xf32>
    %364 = math.tanh %363 : vector<8x128xf32>
    %365 = vector.extract_strided_slice %350 {offsets = [0, 384], sizes = [8, 128], strides = [1, 1]} : vector<8x512xf32> to vector<8x128xf32>
    %366 = arith.negf %365 : vector<8x128xf32>
    %367 = math.exp %366 : vector<8x128xf32>
    %cst_139 = arith.constant 1.000000e+00 : f32
    %368 = vector.broadcast %cst_139 : f32 to vector<8x128xf32>
    %369 = arith.addf %368, %367 : vector<8x128xf32>
    %370 = arith.divf %368, %369 : vector<8x128xf32>
    %371 = arith.mulf %362, %342 : vector<8x128xf32>
    %372 = arith.mulf %356, %364 : vector<8x128xf32>
    %373 = arith.addf %371, %372 : vector<8x128xf32>
    %374 = math.tanh %373 : vector<8x128xf32>
    %375 = arith.mulf %370, %374 : vector<8x128xf32>
    %c3_i32_140 = arith.constant 3 : i32
    %376 = arith.index_cast %c3_i32_140 : i32 to index
    %c0_141 = arith.constant 0 : index
    %c0_142 = arith.constant 0 : index
    %377 = vector.load %arg10[%376, %c0_141, %c0_142] : memref<6x8x512xf32, #tpu.memory_space<vmem>>, vector<1x8x512xf32>
    %378 = vector.shape_cast %377 : vector<1x8x512xf32> to vector<8x512xf32>
    %379 = arith.truncf %375 : vector<8x128xf32> to vector<8x128xbf16>
    %cst_143 = arith.constant dense<0.000000e+00> : vector<8x512xf32>
    %380 = tpu.matmul %379, %280, %cst_143 {dimension_numbers = #tpu.dot_dimension_numbers<[1], [0], [0], [1], [0, 0, 1, 1], [], []>} : vector<8x128xbf16>, vector<128x512xbf16>, vector<8x512xf32> -> vector<8x512xf32>
    %381 = arith.addf %378, %380 : vector<8x512xf32>
    %382 = vector.extract_strided_slice %381 {offsets = [0, 0], sizes = [8, 128], strides = [1, 1]} : vector<8x512xf32> to vector<8x128xf32>
    %383 = arith.negf %382 : vector<8x128xf32>
    %384 = math.exp %383 : vector<8x128xf32>
    %cst_144 = arith.constant 1.000000e+00 : f32
    %385 = vector.broadcast %cst_144 : f32 to vector<8x128xf32>
    %386 = arith.addf %385, %384 : vector<8x128xf32>
    %387 = arith.divf %385, %386 : vector<8x128xf32>
    %388 = vector.extract_strided_slice %381 {offsets = [0, 128], sizes = [8, 128], strides = [1, 1]} : vector<8x512xf32> to vector<8x128xf32>
    %389 = arith.negf %388 : vector<8x128xf32>
    %390 = math.exp %389 : vector<8x128xf32>
    %cst_145 = arith.constant 1.000000e+00 : f32
    %391 = vector.broadcast %cst_145 : f32 to vector<8x128xf32>
    %392 = arith.addf %391, %390 : vector<8x128xf32>
    %393 = arith.divf %391, %392 : vector<8x128xf32>
    %394 = vector.extract_strided_slice %381 {offsets = [0, 256], sizes = [8, 128], strides = [1, 1]} : vector<8x512xf32> to vector<8x128xf32>
    %395 = math.tanh %394 : vector<8x128xf32>
    %396 = vector.extract_strided_slice %381 {offsets = [0, 384], sizes = [8, 128], strides = [1, 1]} : vector<8x512xf32> to vector<8x128xf32>
    %397 = arith.negf %396 : vector<8x128xf32>
    %398 = math.exp %397 : vector<8x128xf32>
    %cst_146 = arith.constant 1.000000e+00 : f32
    %399 = vector.broadcast %cst_146 : f32 to vector<8x128xf32>
    %400 = arith.addf %399, %398 : vector<8x128xf32>
    %401 = arith.divf %399, %400 : vector<8x128xf32>
    %402 = arith.mulf %393, %373 : vector<8x128xf32>
    %403 = arith.mulf %387, %395 : vector<8x128xf32>
    %404 = arith.addf %402, %403 : vector<8x128xf32>
    %405 = math.tanh %404 : vector<8x128xf32>
    %406 = arith.mulf %401, %405 : vector<8x128xf32>
    %c4_i32_147 = arith.constant 4 : i32
    %407 = arith.index_cast %c4_i32_147 : i32 to index
    %c0_148 = arith.constant 0 : index
    %c0_149 = arith.constant 0 : index
    %408 = vector.load %arg10[%407, %c0_148, %c0_149] : memref<6x8x512xf32, #tpu.memory_space<vmem>>, vector<1x8x512xf32>
    %409 = vector.shape_cast %408 : vector<1x8x512xf32> to vector<8x512xf32>
    %410 = arith.truncf %406 : vector<8x128xf32> to vector<8x128xbf16>
    %cst_150 = arith.constant dense<0.000000e+00> : vector<8x512xf32>
    %411 = tpu.matmul %410, %280, %cst_150 {dimension_numbers = #tpu.dot_dimension_numbers<[1], [0], [0], [1], [0, 0, 1, 1], [], []>} : vector<8x128xbf16>, vector<128x512xbf16>, vector<8x512xf32> -> vector<8x512xf32>
    %412 = arith.addf %409, %411 : vector<8x512xf32>
    %413 = vector.extract_strided_slice %412 {offsets = [0, 0], sizes = [8, 128], strides = [1, 1]} : vector<8x512xf32> to vector<8x128xf32>
    %414 = arith.negf %413 : vector<8x128xf32>
    %415 = math.exp %414 : vector<8x128xf32>
    %cst_151 = arith.constant 1.000000e+00 : f32
    %416 = vector.broadcast %cst_151 : f32 to vector<8x128xf32>
    %417 = arith.addf %416, %415 : vector<8x128xf32>
    %418 = arith.divf %416, %417 : vector<8x128xf32>
    %419 = vector.extract_strided_slice %412 {offsets = [0, 128], sizes = [8, 128], strides = [1, 1]} : vector<8x512xf32> to vector<8x128xf32>
    %420 = arith.negf %419 : vector<8x128xf32>
    %421 = math.exp %420 : vector<8x128xf32>
    %cst_152 = arith.constant 1.000000e+00 : f32
    %422 = vector.broadcast %cst_152 : f32 to vector<8x128xf32>
    %423 = arith.addf %422, %421 : vector<8x128xf32>
    %424 = arith.divf %422, %423 : vector<8x128xf32>
    %425 = vector.extract_strided_slice %412 {offsets = [0, 256], sizes = [8, 128], strides = [1, 1]} : vector<8x512xf32> to vector<8x128xf32>
    %426 = math.tanh %425 : vector<8x128xf32>
    %427 = vector.extract_strided_slice %412 {offsets = [0, 384], sizes = [8, 128], strides = [1, 1]} : vector<8x512xf32> to vector<8x128xf32>
    %428 = arith.negf %427 : vector<8x128xf32>
    %429 = math.exp %428 : vector<8x128xf32>
    %cst_153 = arith.constant 1.000000e+00 : f32
    %430 = vector.broadcast %cst_153 : f32 to vector<8x128xf32>
    %431 = arith.addf %430, %429 : vector<8x128xf32>
    %432 = arith.divf %430, %431 : vector<8x128xf32>
    %433 = arith.mulf %424, %404 : vector<8x128xf32>
    %434 = arith.mulf %418, %426 : vector<8x128xf32>
    %435 = arith.addf %433, %434 : vector<8x128xf32>
    %436 = math.tanh %435 : vector<8x128xf32>
    %437 = arith.mulf %432, %436 : vector<8x128xf32>
    %c5_i32_154 = arith.constant 5 : i32
    %438 = arith.index_cast %c5_i32_154 : i32 to index
    %c0_155 = arith.constant 0 : index
    %c0_156 = arith.constant 0 : index
    %439 = vector.load %arg10[%438, %c0_155, %c0_156] : memref<6x8x512xf32, #tpu.memory_space<vmem>>, vector<1x8x512xf32>
    %440 = vector.shape_cast %439 : vector<1x8x512xf32> to vector<8x512xf32>
    %441 = arith.truncf %437 : vector<8x128xf32> to vector<8x128xbf16>
    %cst_157 = arith.constant dense<0.000000e+00> : vector<8x512xf32>
    %442 = tpu.matmul %441, %280, %cst_157 {dimension_numbers = #tpu.dot_dimension_numbers<[1], [0], [0], [1], [0, 0, 1, 1], [], []>} : vector<8x128xbf16>, vector<128x512xbf16>, vector<8x512xf32> -> vector<8x512xf32>
    %443 = arith.addf %440, %442 : vector<8x512xf32>
    %444 = vector.extract_strided_slice %443 {offsets = [0, 0], sizes = [8, 128], strides = [1, 1]} : vector<8x512xf32> to vector<8x128xf32>
    %445 = arith.negf %444 : vector<8x128xf32>
    %446 = math.exp %445 : vector<8x128xf32>
    %cst_158 = arith.constant 1.000000e+00 : f32
    %447 = vector.broadcast %cst_158 : f32 to vector<8x128xf32>
    %448 = arith.addf %447, %446 : vector<8x128xf32>
    %449 = arith.divf %447, %448 : vector<8x128xf32>
    %450 = vector.extract_strided_slice %443 {offsets = [0, 128], sizes = [8, 128], strides = [1, 1]} : vector<8x512xf32> to vector<8x128xf32>
    %451 = arith.negf %450 : vector<8x128xf32>
    %452 = math.exp %451 : vector<8x128xf32>
    %cst_159 = arith.constant 1.000000e+00 : f32
    %453 = vector.broadcast %cst_159 : f32 to vector<8x128xf32>
    %454 = arith.addf %453, %452 : vector<8x128xf32>
    %455 = arith.divf %453, %454 : vector<8x128xf32>
    %456 = vector.extract_strided_slice %443 {offsets = [0, 256], sizes = [8, 128], strides = [1, 1]} : vector<8x512xf32> to vector<8x128xf32>
    %457 = math.tanh %456 : vector<8x128xf32>
    %458 = vector.extract_strided_slice %443 {offsets = [0, 384], sizes = [8, 128], strides = [1, 1]} : vector<8x512xf32> to vector<8x128xf32>
    %459 = arith.negf %458 : vector<8x128xf32>
    %460 = math.exp %459 : vector<8x128xf32>
    %cst_160 = arith.constant 1.000000e+00 : f32
    %461 = vector.broadcast %cst_160 : f32 to vector<8x128xf32>
    %462 = arith.addf %461, %460 : vector<8x128xf32>
    %463 = arith.divf %461, %462 : vector<8x128xf32>
    %464 = arith.mulf %455, %435 : vector<8x128xf32>
    %465 = arith.mulf %449, %457 : vector<8x128xf32>
    %466 = arith.addf %464, %465 : vector<8x128xf32>
    %467 = math.tanh %466 : vector<8x128xf32>
    %468 = arith.mulf %463, %467 : vector<8x128xf32>
    %c6_i32_161 = arith.constant 6 : i32
    %469 = arith.truncf %468 : vector<8x128xf32> to vector<8x128xbf16>
    %c0_162 = arith.constant 0 : index
    %c0_163 = arith.constant 0 : index
    %470 = vector.load %arg6[%c0_162, %c0_163] : memref<128x128xbf16, #tpu.memory_space<vmem>>, vector<128x128xbf16>
    %cst_164 = arith.constant dense<0.000000e+00> : vector<8x128xf32>
    %471 = tpu.matmul %469, %470, %cst_164 {dimension_numbers = #tpu.dot_dimension_numbers<[1], [0], [0], [1], [0, 0, 1, 1], [], []>} : vector<8x128xbf16>, vector<128x128xbf16>, vector<8x128xf32> -> vector<8x128xf32>
    %c0_165 = arith.constant 0 : index
    %c0_166 = arith.constant 0 : index
    %472 = vector.load %arg7[%c0_165, %c0_166] : memref<1x128xf32, #tpu.memory_space<vmem>>, vector<1x128xf32>
    %473 = vector.broadcast %472 : vector<1x128xf32> to vector<8x128xf32>
    %474 = arith.addf %471, %473 : vector<8x128xf32>
    %c0_167 = arith.constant 0 : index
    %c0_168 = arith.constant 0 : index
    %475 = vector.load %arg8[%c0_167, %c0_168] : memref<8x128xf32, #tpu.memory_space<vmem>>, vector<8x128xf32>
    tpu.vector_store %arg8[%c0_167, %c0_168], %474 {strides = array<i32>} : memref<8x128xf32, #tpu.memory_space<vmem>>, vector<8x128xf32>,
    return
  }
}

</mosaic_0001>

<llo_original>
// kernel: lstm_model_dynamic.1
$region0: #{lstm_model_dynamic.1}
  #allocation0 [shape = 'u32[]', space=smem, size = 0x4, offset = 0x4, fixed_abs, tag = 'smem constant byte address 0x4 - core index']
  #allocation1 [shape = 'u32[144,128]{1,0:T(1,128)}', space=vmem, size = 0x12000, scoped, tag = 'internal scratch']
  #allocation2 [shape = 'f32[6,8,128]{2,1,0:T(8,128)}', space=vmem, size = 0x6000, scoped, tag = 'scratch operand']
  #allocation3 [shape = 'f32[6,8,512]{2,1,0:T(8,128)}', space=vmem, size = 0x18000, scoped, tag = 'scratch operand']
  %s0 = inlined_call_operand.vmem [shape: f32[10,8,128], index: 0, kind: input, shape index: {}]
  %s1 = inlined_call_operand.vmem [shape: bf16[5,128,128], index: 1, kind: input, shape index: {}]
  %s2 = inlined_call_operand.vmem [shape: f32[1,128], index: 2, kind: input, shape index: {}]
  %s3 = inlined_call_operand.vmem [shape: bf16[2,128,512], index: 3, kind: input, shape index: {}]
  %s4 = inlined_call_operand.vmem [shape: bf16[2,128,512], index: 4, kind: input, shape index: {}]
  %s5 = inlined_call_operand.vmem [shape: f32[2,1,512], index: 5, kind: input, shape index: {}]
  %s6 = inlined_call_operand.vmem [shape: bf16[128,128], index: 6, kind: input, shape index: {}]
  %s7 = inlined_call_operand.vmem [shape: f32[1,128], index: 7, kind: input, shape index: {}]
  %s8 = inlined_call_operand.vmem [shape: f32[8,128], index: 8, kind: output, shape index: {}]
  %s9 = sld [smem:[#allocation0]]
  $region42: #{lstm_model_dynamic.1} parent=0
    _
  %s11 = ssub.s32 1, %s9
  %s12 = scalar_select 0, %s11, %s9
  // Predicated region
  $region2: #{lstm_model_dynamic.1} parent=0 // pred_check
    _
  $region3: #{lstm_model_dynamic.1} parent=0 // pred_check_branch
    %14 = sbr.rel (0) target = $region5
  $region4: #{lstm_model_dynamic.1} parent=0 // pred_region
    _
  $region5: #{lstm_model_dynamic.1} parent=0 // pred_fallthru
    _
  // Predicated region
  $region6: #{lstm_model_dynamic.1} parent=0 // pred_check
    _
  $region7: #{lstm_model_dynamic.1} parent=0 // pred_check_branch
    %16 = sbr.rel (0) target = $region9
  $region8: #{lstm_model_dynamic.1} parent=0 // pred_region
    _
  $region9: #{lstm_model_dynamic.1} parent=0 // pred_fallthru
    _
  // Predicated region
  $region10: #{lstm_model_dynamic.1} parent=0 // pred_check
    _
  $region11: #{lstm_model_dynamic.1} parent=0 // pred_check_branch
    %18 = sbr.rel (0) target = $region13
  $region12: #{lstm_model_dynamic.1} parent=0 // pred_region
    _
  $region13: #{lstm_model_dynamic.1} parent=0 // pred_fallthru
    _
  // Predicated region
  $region14: #{lstm_model_dynamic.1} parent=0 // pred_check
    _
  $region15: #{lstm_model_dynamic.1} parent=0 // pred_check_branch
    %20 = sbr.rel (0) target = $region17
  $region16: #{lstm_model_dynamic.1} parent=0 // pred_region
    _
  $region17: #{lstm_model_dynamic.1} parent=0 // pred_fallthru
    _
  // Predicated region
  $region18: #{lstm_model_dynamic.1} parent=0 // pred_check
    _
  $region19: #{lstm_model_dynamic.1} parent=0 // pred_check_branch
    %22 = sbr.rel (0) target = $region21
  $region20: #{lstm_model_dynamic.1} parent=0 // pred_region
    _
  $region21: #{lstm_model_dynamic.1} parent=0 // pred_fallthru
    _
  // Predicated region
  $region22: #{lstm_model_dynamic.1} parent=0 // pred_check
    _
  $region23: #{lstm_model_dynamic.1} parent=0 // pred_check_branch
    %24 = sbr.rel (0) target = $region25
  $region24: #{lstm_model_dynamic.1} parent=0 // pred_region
    _
  $region25: #{lstm_model_dynamic.1} parent=0 // pred_fallthru
    _
  // Predicated region
  $region26: #{lstm_model_dynamic.1} parent=0 // pred_check
    _
  $region27: #{lstm_model_dynamic.1} parent=0 // pred_check_branch
    %26 = sbr.rel (0) target = $region29
  $region28: #{lstm_model_dynamic.1} parent=0 // pred_region
    _
  $region29: #{lstm_model_dynamic.1} parent=0 // pred_fallthru
    _
  // Predicated region
  $region30: #{lstm_model_dynamic.1} parent=0 // pred_check
    _
  $region31: #{lstm_model_dynamic.1} parent=0 // pred_check_branch
    %28 = sbr.rel (0) target = $region33
  $region32: #{lstm_model_dynamic.1} parent=0 // pred_region
    _
  $region33: #{lstm_model_dynamic.1} parent=0 // pred_fallthru
    _
  %v30 = vld [vmem:[%s0] sm:$0xff]
  %v31 = vld [vmem:[%s0 + $0x8] sm:$0xff]
  %v32 = vld [vmem:[%s0 + $0x10] sm:$0xff]
  %v33 = vld [vmem:[%s0 + $0x18] sm:$0xff]
  %v34 = vld [vmem:[%s0 + $0x20] sm:$0xff]
  %v35 = vld [vmem:[%s0 + $0x28] sm:$0xff]
  %v36 = vpack.c.bf16 %v31, %v30
  %v37 = vpack.c.bf16 %v33, %v32
  %v38 = vpack.c.bf16 %v35, %v34
  %v39 = vld [vmem:[%s1] sm:$0xf]
  %v40 = vld [vmem:[%s1 + $0x4] sm:$0xf]
  %v41 = vld [vmem:[%s1 + $0x8] sm:$0xf]
  %v42 = vld [vmem:[%s1 + $0xc] sm:$0xf]
  %v43 = vld [vmem:[%s1 + $0x10] sm:$0xf]
  %v44 = vld [vmem:[%s1 + $0x14] sm:$0xf]
  %v45 = vld [vmem:[%s1 + $0x18] sm:$0xf]
  %v46 = vld [vmem:[%s1 + $0x1c] sm:$0xf]
  %v47 = vld [vmem:[%s1 + $0x20] sm:$0xf]
  %v48 = vld [vmem:[%s1 + $0x24] sm:$0xf]
  %v49 = vld [vmem:[%s1 + $0x28] sm:$0xf]
  %v50 = vld [vmem:[%s1 + $0x2c] sm:$0xf]
  %v51 = vld [vmem:[%s1 + $0x30] sm:$0xf]
  %v52 = vld [vmem:[%s1 + $0x34] sm:$0xf]
  %v53 = vld [vmem:[%s1 + $0x38] sm:$0xf]
  %v54 = vld [vmem:[%s1 + $0x3c] sm:$0xf]
  %s55 = scalar_lea.vmem %s0, 8
  %v56 = vld [vmem:[%s55] sm:$0xff]
  %v57 = vld [vmem:[%s55 + $0x8] sm:$0xff]
  %v58 = vld [vmem:[%s55 + $0x10] sm:$0xff]
  %v59 = vld [vmem:[%s55 + $0x18] sm:$0xff]
  %v60 = vld [vmem:[%s55 + $0x20] sm:$0xff]
  %v61 = vld [vmem:[%s55 + $0x28] sm:$0xff]
  %v62 = vpack.c.bf16 %v57, %v56
  %v63 = vpack.c.bf16 %v59, %v58
  %v64 = vpack.c.bf16 %v61, %v60
  %s65 = scalar_lea.vmem %s1, 64
  %v66 = vld [vmem:[%s65] sm:$0xf]
  %v67 = vld [vmem:[%s65 + $0x4] sm:$0xf]
  %v68 = vld [vmem:[%s65 + $0x8] sm:$0xf]
  %v69 = vld [vmem:[%s65 + $0xc] sm:$0xf]
  %v70 = vld [vmem:[%s65 + $0x10] sm:$0xf]
  %v71 = vld [vmem:[%s65 + $0x14] sm:$0xf]
  %v72 = vld [vmem:[%s65 + $0x18] sm:$0xf]
  %v73 = vld [vmem:[%s65 + $0x1c] sm:$0xf]
  %v74 = vld [vmem:[%s65 + $0x20] sm:$0xf]
  %v75 = vld [vmem:[%s65 + $0x24] sm:$0xf]
  %v76 = vld [vmem:[%s65 + $0x28] sm:$0xf]
  %v77 = vld [vmem:[%s65 + $0x2c] sm:$0xf]
  %v78 = vld [vmem:[%s65 + $0x30] sm:$0xf]
  %v79 = vld [vmem:[%s65 + $0x34] sm:$0xf]
  %v80 = vld [vmem:[%s65 + $0x38] sm:$0xf]
  %v81 = vld [vmem:[%s65 + $0x3c] sm:$0xf]
  %v98 = vunpack.c.l.b16 %v66
  %v99 = vunpack.c.l.b16 %v67
  %v100 = vunpack.c.l.b16 %v68
  %v101 = vunpack.c.l.b16 %v69
  %v102 = vunpack.c.l.b16 %v70
  %v103 = vunpack.c.l.b16 %v71
  %v104 = vunpack.c.l.b16 %v72
  %v105 = vunpack.c.l.b16 %v73
  %v106 = vunpack.c.l.b16 %v74
  %v107 = vunpack.c.l.b16 %v75
  %v108 = vunpack.c.l.b16 %v76
  %v109 = vunpack.c.l.b16 %v77
  %v110 = vunpack.c.l.b16 %v78
  %v111 = vunpack.c.l.b16 %v79
  %v112 = vunpack.c.l.b16 %v80
  %v113 = vunpack.c.l.b16 %v81
  %v114 = vpack.c.b16 %v99, %v98
  %v115 = vpack.c.b16 %v101, %v100
  %v116 = vpack.c.b16 %v103, %v102
  %v117 = vpack.c.b16 %v105, %v104
  %v118 = vpack.c.b16 %v107, %v106
  %v119 = vpack.c.b16 %v109, %v108
  %v120 = vpack.c.b16 %v111, %v110
  %v121 = vpack.c.b16 %v113, %v112
  %130 = vmatprep.subr.bf16.mxu0 0
  %131 = vmatpush1.bf16.msra.mxu0 %v114
  %132 = vmatprep.subr.bf16.mxu0 0
  %133 = vmatpush1.bf16.msra.mxu0 %v115
  %134 = vmatprep.subr.bf16.mxu0 0
  %135 = vmatpush1.bf16.msra.mxu0 %v116
  %136 = vmatprep.subr.bf16.mxu0 0
  %137 = vmatpush1.bf16.msra.mxu0 %v117
  %138 = vmatprep.subr.bf16.mxu0 0
  %139 = vmatpush1.bf16.msra.mxu0 %v118
  %140 = vmatprep.subr.bf16.mxu0 0
  %141 = vmatpush1.bf16.msra.mxu0 %v119
  %142 = vmatprep.subr.bf16.mxu0 0
  %143 = vmatpush1.bf16.msra.mxu0 %v120
  %144 = vmatprep.subr.bf16.mxu0 0
  %145 = vmatpush1.bf16.msra.mxu0 %v121
  %146 = vmatprep.subr.bf16.mxu0 0
  %147 = vmatpush1.bf16.msra.mxu0 0
  %148 = vmatprep.subr.bf16.mxu0 0
  %149 = vmatpush1.bf16.msra.mxu0 0
  %150 = vmatprep.subr.bf16.mxu0 0
  %151 = vmatpush1.bf16.msra.mxu0 0
  %152 = vmatprep.subr.bf16.mxu0 0
  %153 = vmatpush1.bf16.msra.mxu0 0
  %154 = vmatprep.subr.bf16.mxu0 0
  %155 = vmatpush1.bf16.msra.mxu0 0
  %156 = vmatprep.subr.bf16.mxu0 0
  %157 = vmatpush1.bf16.msra.mxu0 0
  %158 = vmatprep.subr.bf16.mxu0 0
  %159 = vmatpush1.bf16.msra.mxu0 0
  %160 = vmatprep.subr.bf16.mxu0 0
  %161 = vmatpush1.bf16.msra.mxu0 0
  %162 = vmatprep.mubr.bf16.mxu0 0
  %163 = vmatmul.mubr.bf16.gmra.mrb[0].mxu0 %v62
  %v164 = vpop.f32.mrb[0].mxu0
  %v165 = vadd.f32 0.0, %v164
  %v166 = vpop.f32.mrb[0].mxu0
  %v167 = vpop.f32.mrb[0].mxu0
  %v168 = vadd.f32 0.0, %v167
  %v169 = vpop.f32.mrb[0].mxu0
  %170 = vmatprep.mubr.bf16.mxu0 0
  %171 = vmatmul.mubr.bf16.gmra.mrb[0].mxu0 %v63
  %v172 = vpop.f32.mrb[0].mxu0
  %v173 = vadd.f32 0.0, %v172
  %v174 = vpop.f32.mrb[0].mxu0
  %v175 = vpop.f32.mrb[0].mxu0
  %v176 = vadd.f32 0.0, %v175
  %v177 = vpop.f32.mrb[0].mxu0
  %178 = vmatprep.mubr.bf16.mxu0 0
  %179 = vmatmul.mubr.bf16.gmra.mrb[0].mxu0 %v64
  %v180 = vpop.f32.mrb[0].mxu0
  %v181 = vadd.f32 0.0, %v180
  %v182 = vpop.f32.mrb[0].mxu0
  %v183 = vpop.f32.mrb[0].mxu0
  %v184 = vadd.f32 0.0, %v183
  %v185 = vpop.f32.mrb[0].mxu0
  %186 = vdwg.mxu0
  %v203 = vunpack.c.l.b16 %v39
  %v204 = vunpack.c.l.b16 %v40
  %v205 = vunpack.c.l.b16 %v41
  %v206 = vunpack.c.l.b16 %v42
  %v207 = vunpack.c.l.b16 %v43
  %v208 = vunpack.c.l.b16 %v44
  %v209 = vunpack.c.l.b16 %v45
  %v210 = vunpack.c.l.b16 %v46
  %v211 = vunpack.c.l.b16 %v47
  %v212 = vunpack.c.l.b16 %v48
  %v213 = vunpack.c.l.b16 %v49
  %v214 = vunpack.c.l.b16 %v50
  %v215 = vunpack.c.l.b16 %v51
  %v216 = vunpack.c.l.b16 %v52
  %v217 = vunpack.c.l.b16 %v53
  %v218 = vunpack.c.l.b16 %v54
  %v219 = vpack.c.b16 %v204, %v203
  %v220 = vpack.c.b16 %v206, %v205
  %v221 = vpack.c.b16 %v208, %v207
  %v222 = vpack.c.b16 %v210, %v209
  %v223 = vpack.c.b16 %v212, %v211
  %v224 = vpack.c.b16 %v214, %v213
  %v225 = vpack.c.b16 %v216, %v215
  %v226 = vpack.c.b16 %v218, %v217
  %235 = vmatprep.subr.bf16.mxu0 0
  %236 = vmatpush1.bf16.msra.mxu0 %v219
  %237 = vmatprep.subr.bf16.mxu0 0
  %238 = vmatpush1.bf16.msra.mxu0 %v220
  %239 = vmatprep.subr.bf16.mxu0 0
  %240 = vmatpush1.bf16.msra.mxu0 %v221
  %241 = vmatprep.subr.bf16.mxu0 0
  %242 = vmatpush1.bf16.msra.mxu0 %v222
  %243 = vmatprep.subr.bf16.mxu0 0
  %244 = vmatpush1.bf16.msra.mxu0 %v223
  %245 = vmatprep.subr.bf16.mxu0 0
  %246 = vmatpush1.bf16.msra.mxu0 %v224
  %247 = vmatprep.subr.bf16.mxu0 0
  %248 = vmatpush1.bf16.msra.mxu0 %v225
  %249 = vmatprep.subr.bf16.mxu0 0
  %250 = vmatpush1.bf16.msra.mxu0 %v226
  %251 = vmatprep.subr.bf16.mxu0 0
  %252 = vmatpush1.bf16.msra.mxu0 0
  %253 = vmatprep.subr.bf16.mxu0 0
  %254 = vmatpush1.bf16.msra.mxu0 0
  %255 = vmatprep.subr.bf16.mxu0 0
  %256 = vmatpush1.bf16.msra.mxu0 0
  %257 = vmatprep.subr.bf16.mxu0 0
  %258 = vmatpush1.bf16.msra.mxu0 0
  %259 = vmatprep.subr.bf16.mxu0 0
  %260 = vmatpush1.bf16.msra.mxu0 0
  %261 = vmatprep.subr.bf16.mxu0 0
  %262 = vmatpush1.bf16.msra.mxu0 0
  %263 = vmatprep.subr.bf16.mxu0 0
  %264 = vmatpush1.bf16.msra.mxu0 0
  %265 = vmatprep.subr.bf16.mxu0 0
  %266 = vmatpush1.bf16.msra.mxu0 0
  %267 = vmatprep.mubr.bf16.mxu0 0
  %268 = vmatmul.mubr.bf16.gmra.mrb[0].mxu0 %v36
  %v269 = vpop.f32.mrb[0].mxu0
  %v270 = vadd.f32 %v165, %v269
  %v271 = vpop.f32.mrb[0].mxu0
  %v272 = vpop.f32.mrb[0].mxu0
  %v273 = vadd.f32 %v168, %v272
  %v274 = vpop.f32.mrb[0].mxu0
  %275 = vmatprep.mubr.bf16.mxu0 0
  %276 = vmatmul.mubr.bf16.gmra.mrb[0].mxu0 %v37
  %v277 = vpop.f32.mrb[0].mxu0
  %v278 = vadd.f32 %v173, %v277
  %v279 = vpop.f32.mrb[0].mxu0
  %v280 = vpop.f32.mrb[0].mxu0
  %v281 = vadd.f32 %v176, %v280
  %v282 = vpop.f32.mrb[0].mxu0
  %283 = vmatprep.mubr.bf16.mxu0 0
  %284 = vmatmul.mubr.bf16.gmra.mrb[0].mxu0 %v38
  %v285 = vpop.f32.mrb[0].mxu0
  %v286 = vadd.f32 %v181, %v285
  %v287 = vpop.f32.mrb[0].mxu0
  %v288 = vpop.f32.mrb[0].mxu0
  %v289 = vadd.f32 %v184, %v288
  %v290 = vpop.f32.mrb[0].mxu0
  %291 = vdwg.mxu0
  %s292 = scalar_lea.vmem %s0, 16
  %v293 = vld [vmem:[%s292] sm:$0xff]
  %v294 = vld [vmem:[%s292 + $0x8] sm:$0xff]
  %v295 = vld [vmem:[%s292 + $0x10] sm:$0xff]
  %v296 = vld [vmem:[%s292 + $0x18] sm:$0xff]
  %v297 = vld [vmem:[%s292 + $0x20] sm:$0xff]
  %v298 = vld [vmem:[%s292 + $0x28] sm:$0xff]
  %v299 = vpack.c.bf16 %v294, %v293
  %v300 = vpack.c.bf16 %v296, %v295
  %v301 = vpack.c.bf16 %v298, %v297
  %s302 = scalar_lea.vmem %s1, 128
  %v303 = vld [vmem:[%s302] sm:$0xf]
  %v304 = vld [vmem:[%s302 + $0x4] sm:$0xf]
  %v305 = vld [vmem:[%s302 + $0x8] sm:$0xf]
  %v306 = vld [vmem:[%s302 + $0xc] sm:$0xf]
  %v307 = vld [vmem:[%s302 + $0x10] sm:$0xf]
  %v308 = vld [vmem:[%s302 + $0x14] sm:$0xf]
  %v309 = vld [vmem:[%s302 + $0x18] sm:$0xf]
  %v310 = vld [vmem:[%s302 + $0x1c] sm:$0xf]
  %v311 = vld [vmem:[%s302 + $0x20] sm:$0xf]
  %v312 = vld [vmem:[%s302 + $0x24] sm:$0xf]
  %v313 = vld [vmem:[%s302 + $0x28] sm:$0xf]
  %v314 = vld [vmem:[%s302 + $0x2c] sm:$0xf]
  %v315 = vld [vmem:[%s302 + $0x30] sm:$0xf]
  %v316 = vld [vmem:[%s302 + $0x34] sm:$0xf]
  %v317 = vld [vmem:[%s302 + $0x38] sm:$0xf]
  %v318 = vld [vmem:[%s302 + $0x3c] sm:$0xf]
  %v335 = vunpack.c.l.b16 %v303
  %v336 = vunpack.c.l.b16 %v304
  %v337 = vunpack.c.l.b16 %v305
  %v338 = vunpack.c.l.b16 %v306
  %v339 = vunpack.c.l.b16 %v307
  %v340 = vunpack.c.l.b16 %v308
  %v341 = vunpack.c.l.b16 %v309
  %v342 = vunpack.c.l.b16 %v310
  %v343 = vunpack.c.l.b16 %v311
  %v344 = vunpack.c.l.b16 %v312
  %v345 = vunpack.c.l.b16 %v313
  %v346 = vunpack.c.l.b16 %v314
  %v347 = vunpack.c.l.b16 %v315
  %v348 = vunpack.c.l.b16 %v316
  %v349 = vunpack.c.l.b16 %v317
  %v350 = vunpack.c.l.b16 %v318
  %v351 = vpack.c.b16 %v336, %v335
  %v352 = vpack.c.b16 %v338, %v337
  %v353 = vpack.c.b16 %v340, %v339
  %v354 = vpack.c.b16 %v342, %v341
  %v355 = vpack.c.b16 %v344, %v343
  %v356 = vpack.c.b16 %v346, %v345
  %v357 = vpack.c.b16 %v348, %v347
  %v358 = vpack.c.b16 %v350, %v349
  %367 = vmatprep.subr.bf16.mxu0 0
  %368 = vmatpush1.bf16.msra.mxu0 %v351
  %369 = vmatprep.subr.bf16.mxu0 0
  %370 = vmatpush1.bf16.msra.mxu0 %v352
  %371 = vmatprep.subr.bf16.mxu0 0
  %372 = vmatpush1.bf16.msra.mxu0 %v353
  %373 = vmatprep.subr.bf16.mxu0 0
  %374 = vmatpush1.bf16.msra.mxu0 %v354
  %375 = vmatprep.subr.bf16.mxu0 0
  %376 = vmatpush1.bf16.msra.mxu0 %v355
  %377 = vmatprep.subr.bf16.mxu0 0
  %378 = vmatpush1.bf16.msra.mxu0 %v356
  %379 = vmatprep.subr.bf16.mxu0 0
  %380 = vmatpush1.bf16.msra.mxu0 %v357
  %381 = vmatprep.subr.bf16.mxu0 0
  %382 = vmatpush1.bf16.msra.mxu0 %v358
  %383 = vmatprep.subr.bf16.mxu0 0
  %384 = vmatpush1.bf16.msra.mxu0 0
  %385 = vmatprep.subr.bf16.mxu0 0
  %386 = vmatpush1.bf16.msra.mxu0 0
  %387 = vmatprep.subr.bf16.mxu0 0
  %388 = vmatpush1.bf16.msra.mxu0 0
  %389 = vmatprep.subr.bf16.mxu0 0
  %390 = vmatpush1.bf16.msra.mxu0 0
  %391 = vmatprep.subr.bf16.mxu0 0
  %392 = vmatpush1.bf16.msra.mxu0 0
  %393 = vmatprep.subr.bf16.mxu0 0
  %394 = vmatpush1.bf16.msra.mxu0 0
  %395 = vmatprep.subr.bf16.mxu0 0
  %396 = vmatpush1.bf16.msra.mxu0 0
  %397 = vmatprep.subr.bf16.mxu0 0
  %398 = vmatpush1.bf16.msra.mxu0 0
  %399 = vmatprep.mubr.bf16.mxu0 0
  %400 = vmatmul.mubr.bf16.gmra.mrb[0].mxu0 %v299
  %v401 = vpop.f32.mrb[0].mxu0
  %v402 = vadd.f32 0.0, %v401
  %v403 = vpop.f32.mrb[0].mxu0
  %v404 = vpop.f32.mrb[0].mxu0
  %v405 = vadd.f32 0.0, %v404
  %v406 = vpop.f32.mrb[0].mxu0
  %407 = vmatprep.mubr.bf16.mxu0 0
  %408 = vmatmul.mubr.bf16.gmra.mrb[0].mxu0 %v300
  %v409 = vpop.f32.mrb[0].mxu0
  %v410 = vadd.f32 0.0, %v409
  %v411 = vpop.f32.mrb[0].mxu0
  %v412 = vpop.f32.mrb[0].mxu0
  %v413 = vadd.f32 0.0, %v412
  %v414 = vpop.f32.mrb[0].mxu0
  %415 = vmatprep.mubr.bf16.mxu0 0
  %416 = vmatmul.mubr.bf16.gmra.mrb[0].mxu0 %v301
  %v417 = vpop.f32.mrb[0].mxu0
  %v418 = vadd.f32 0.0, %v417
  %v419 = vpop.f32.mrb[0].mxu0
  %v420 = vpop.f32.mrb[0].mxu0
  %v421 = vadd.f32 0.0, %v420
  %v422 = vpop.f32.mrb[0].mxu0
  %423 = vdwg.mxu0
  %v424 = vadd.f32 %v270, %v402
  %v425 = vadd.f32 %v273, %v405
  %v426 = vadd.f32 %v278, %v410
  %v427 = vadd.f32 %v281, %v413
  %v428 = vadd.f32 %v286, %v418
  %v429 = vadd.f32 %v289, %v421
  %s430 = scalar_lea.vmem %s0, 24
  %v431 = vld [vmem:[%s430] sm:$0xff]
  %v432 = vld [vmem:[%s430 + $0x8] sm:$0xff]
  %v433 = vld [vmem:[%s430 + $0x10] sm:$0xff]
  %v434 = vld [vmem:[%s430 + $0x18] sm:$0xff]
  %v435 = vld [vmem:[%s430 + $0x20] sm:$0xff]
  %v436 = vld [vmem:[%s430 + $0x28] sm:$0xff]
  %v437 = vpack.c.bf16 %v432, %v431
  %v438 = vpack.c.bf16 %v434, %v433
  %v439 = vpack.c.bf16 %v436, %v435
  %s440 = scalar_lea.vmem %s1, 192
  %v441 = vld [vmem:[%s440] sm:$0xf]
  %v442 = vld [vmem:[%s440 + $0x4] sm:$0xf]
  %v443 = vld [vmem:[%s440 + $0x8] sm:$0xf]
  %v444 = vld [vmem:[%s440 + $0xc] sm:$0xf]
  %v445 = vld [vmem:[%s440 + $0x10] sm:$0xf]
  %v446 = vld [vmem:[%s440 + $0x14] sm:$0xf]
  %v447 = vld [vmem:[%s440 + $0x18] sm:$0xf]
  %v448 = vld [vmem:[%s440 + $0x1c] sm:$0xf]
  %v449 = vld [vmem:[%s440 + $0x20] sm:$0xf]
  %v450 = vld [vmem:[%s440 + $0x24] sm:$0xf]
  %v451 = vld [vmem:[%s440 + $0x28] sm:$0xf]
  %v452 = vld [vmem:[%s440 + $0x2c] sm:$0xf]
  %v453 = vld [vmem:[%s440 + $0x30] sm:$0xf]
  %v454 = vld [vmem:[%s440 + $0x34] sm:$0xf]
  %v455 = vld [vmem:[%s440 + $0x38] sm:$0xf]
  %v456 = vld [vmem:[%s440 + $0x3c] sm:$0xf]
  %v473 = vunpack.c.l.b16 %v441
  %v474 = vunpack.c.l.b16 %v442
  %v475 = vunpack.c.l.b16 %v443
  %v476 = vunpack.c.l.b16 %v444
  %v477 = vunpack.c.l.b16 %v445
  %v478 = vunpack.c.l.b16 %v446
  %v479 = vunpack.c.l.b16 %v447
  %v480 = vunpack.c.l.b16 %v448
  %v481 = vunpack.c.l.b16 %v449
  %v482 = vunpack.c.l.b16 %v450
  %v483 = vunpack.c.l.b16 %v451
  %v484 = vunpack.c.l.b16 %v452
  %v485 = vunpack.c.l.b16 %v453
  %v486 = vunpack.c.l.b16 %v454
  %v487 = vunpack.c.l.b16 %v455
  %v488 = vunpack.c.l.b16 %v456
  %v489 = vpack.c.b16 %v474, %v473
  %v490 = vpack.c.b16 %v476, %v475
  %v491 = vpack.c.b16 %v478, %v477
  %v492 = vpack.c.b16 %v480, %v479
  %v493 = vpack.c.b16 %v482, %v481
  %v494 = vpack.c.b16 %v484, %v483
  %v495 = vpack.c.b16 %v486, %v485
  %v496 = vpack.c.b16 %v488, %v487
  %505 = vmatprep.subr.bf16.mxu0 0
  %506 = vmatpush1.bf16.msra.mxu0 %v489
  %507 = vmatprep.subr.bf16.mxu0 0
  %508 = vmatpush1.bf16.msra.mxu0 %v490
  %509 = vmatprep.subr.bf16.mxu0 0
  %510 = vmatpush1.bf16.msra.mxu0 %v491
  %511 = vmatprep.subr.bf16.mxu0 0
  %512 = vmatpush1.bf16.msra.mxu0 %v492
  %513 = vmatprep.subr.bf16.mxu0 0
  %514 = vmatpush1.bf16.msra.mxu0 %v493
  %515 = vmatprep.subr.bf16.mxu0 0
  %516 = vmatpush1.bf16.msra.mxu0 %v494
  %517 = vmatprep.subr.bf16.mxu0 0
  %518 = vmatpush1.bf16.msra.mxu0 %v495
  %519 = vmatprep.subr.bf16.mxu0 0
  %520 = vmatpush1.bf16.msra.mxu0 %v496
  %521 = vmatprep.subr.bf16.mxu0 0
  %522 = vmatpush1.bf16.msra.mxu0 0
  %523 = vmatprep.subr.bf16.mxu0 0
  %524 = vmatpush1.bf16.msra.mxu0 0
  %525 = vmatprep.subr.bf16.mxu0 0
  %526 = vmatpush1.bf16.msra.mxu0 0
  %527 = vmatprep.subr.bf16.mxu0 0
  %528 = vmatpush1.bf16.msra.mxu0 0
  %529 = vmatprep.subr.bf16.mxu0 0
  %530 = vmatpush1.bf16.msra.mxu0 0
  %531 = vmatprep.subr.bf16.mxu0 0
  %532 = vmatpush1.bf16.msra.mxu0 0
  %533 = vmatprep.subr.bf16.mxu0 0
  %534 = vmatpush1.bf16.msra.mxu0 0
  %535 = vmatprep.subr.bf16.mxu0 0
  %536 = vmatpush1.bf16.msra.mxu0 0
  %537 = vmatprep.mubr.bf16.mxu0 0
  %538 = vmatmul.mubr.bf16.gmra.mrb[0].mxu0 %v437
  %v539 = vpop.f32.mrb[0].mxu0
  %v540 = vadd.f32 0.0, %v539
  %v541 = vpop.f32.mrb[0].mxu0
  %v542 = vpop.f32.mrb[0].mxu0
  %v543 = vadd.f32 0.0, %v542
  %v544 = vpop.f32.mrb[0].mxu0
  %545 = vmatprep.mubr.bf16.mxu0 0
  %546 = vmatmul.mubr.bf16.gmra.mrb[0].mxu0 %v438
  %v547 = vpop.f32.mrb[0].mxu0
  %v548 = vadd.f32 0.0, %v547
  %v549 = vpop.f32.mrb[0].mxu0
  %v550 = vpop.f32.mrb[0].mxu0
  %v551 = vadd.f32 0.0, %v550
  %v552 = vpop.f32.mrb[0].mxu0
  %553 = vmatprep.mubr.bf16.mxu0 0
  %554 = vmatmul.mubr.bf16.gmra.mrb[0].mxu0 %v439
  %v555 = vpop.f32.mrb[0].mxu0
  %v556 = vadd.f32 0.0, %v555
  %v557 = vpop.f32.mrb[0].mxu0
  %v558 = vpop.f32.mrb[0].mxu0
  %v559 = vadd.f32 0.0, %v558
  %v560 = vpop.f32.mrb[0].mxu0
  %561 = vdwg.mxu0
  %v562 = vadd.f32 %v424, %v540
  %v563 = vadd.f32 %v425, %v543
  %v564 = vadd.f32 %v426, %v548
  %v565 = vadd.f32 %v427, %v551
  %v566 = vadd.f32 %v428, %v556
  %v567 = vadd.f32 %v429, %v559
  %s568 = scalar_lea.vmem %s0, 32
  %v569 = vld [vmem:[%s568] sm:$0xff]
  %v570 = vld [vmem:[%s568 + $0x8] sm:$0xff]
  %v571 = vld [vmem:[%s568 + $0x10] sm:$0xff]
  %v572 = vld [vmem:[%s568 + $0x18] sm:$0xff]
  %v573 = vld [vmem:[%s568 + $0x20] sm:$0xff]
  %v574 = vld [vmem:[%s568 + $0x28] sm:$0xff]
  %v575 = vpack.c.bf16 %v570, %v569
  %v576 = vpack.c.bf16 %v572, %v571
  %v577 = vpack.c.bf16 %v574, %v573
  %s578 = scalar_lea.vmem %s1, 256
  %v579 = vld [vmem:[%s578] sm:$0xf]
  %v580 = vld [vmem:[%s578 + $0x4] sm:$0xf]
  %v581 = vld [vmem:[%s578 + $0x8] sm:$0xf]
  %v582 = vld [vmem:[%s578 + $0xc] sm:$0xf]
  %v583 = vld [vmem:[%s578 + $0x10] sm:$0xf]
  %v584 = vld [vmem:[%s578 + $0x14] sm:$0xf]
  %v585 = vld [vmem:[%s578 + $0x18] sm:$0xf]
  %v586 = vld [vmem:[%s578 + $0x1c] sm:$0xf]
  %v587 = vld [vmem:[%s578 + $0x20] sm:$0xf]
  %v588 = vld [vmem:[%s578 + $0x24] sm:$0xf]
  %v589 = vld [vmem:[%s578 + $0x28] sm:$0xf]
  %v590 = vld [vmem:[%s578 + $0x2c] sm:$0xf]
  %v591 = vld [vmem:[%s578 + $0x30] sm:$0xf]
  %v592 = vld [vmem:[%s578 + $0x34] sm:$0xf]
  %v593 = vld [vmem:[%s578 + $0x38] sm:$0xf]
  %v594 = vld [vmem:[%s578 + $0x3c] sm:$0xf]
  %v611 = vunpack.c.l.b16 %v579
  %v612 = vunpack.c.l.b16 %v580
  %v613 = vunpack.c.l.b16 %v581
  %v614 = vunpack.c.l.b16 %v582
  %v615 = vunpack.c.l.b16 %v583
  %v616 = vunpack.c.l.b16 %v584
  %v617 = vunpack.c.l.b16 %v585
  %v618 = vunpack.c.l.b16 %v586
  %v619 = vunpack.c.l.b16 %v587
  %v620 = vunpack.c.l.b16 %v588
  %v621 = vunpack.c.l.b16 %v589
  %v622 = vunpack.c.l.b16 %v590
  %v623 = vunpack.c.l.b16 %v591
  %v624 = vunpack.c.l.b16 %v592
  %v625 = vunpack.c.l.b16 %v593
  %v626 = vunpack.c.l.b16 %v594
  %v627 = vpack.c.b16 %v612, %v611
  %v628 = vpack.c.b16 %v614, %v613
  %v629 = vpack.c.b16 %v616, %v615
  %v630 = vpack.c.b16 %v618, %v617
  %v631 = vpack.c.b16 %v620, %v619
  %v632 = vpack.c.b16 %v622, %v621
  %v633 = vpack.c.b16 %v624, %v623
  %v634 = vpack.c.b16 %v626, %v625
  %643 = vmatprep.subr.bf16.mxu0 0
  %644 = vmatpush1.bf16.msra.mxu0 %v627
  %645 = vmatprep.subr.bf16.mxu0 0
  %646 = vmatpush1.bf16.msra.mxu0 %v628
  %647 = vmatprep.subr.bf16.mxu0 0
  %648 = vmatpush1.bf16.msra.mxu0 %v629
  %649 = vmatprep.subr.bf16.mxu0 0
  %650 = vmatpush1.bf16.msra.mxu0 %v630
  %651 = vmatprep.subr.bf16.mxu0 0
  %652 = vmatpush1.bf16.msra.mxu0 %v631
  %653 = vmatprep.subr.bf16.mxu0 0
  %654 = vmatpush1.bf16.msra.mxu0 %v632
  %655 = vmatprep.subr.bf16.mxu0 0
  %656 = vmatpush1.bf16.msra.mxu0 %v633
  %657 = vmatprep.subr.bf16.mxu0 0
  %658 = vmatpush1.bf16.msra.mxu0 %v634
  %659 = vmatprep.subr.bf16.mxu0 0
  %660 = vmatpush1.bf16.msra.mxu0 0
  %661 = vmatprep.subr.bf16.mxu0 0
  %662 = vmatpush1.bf16.msra.mxu0 0
  %663 = vmatprep.subr.bf16.mxu0 0
  %664 = vmatpush1.bf16.msra.mxu0 0
  %665 = vmatprep.subr.bf16.mxu0 0
  %666 = vmatpush1.bf16.msra.mxu0 0
  %667 = vmatprep.subr.bf16.mxu0 0
  %668 = vmatpush1.bf16.msra.mxu0 0
  %669 = vmatprep.subr.bf16.mxu0 0
  %670 = vmatpush1.bf16.msra.mxu0 0
  %671 = vmatprep.subr.bf16.mxu0 0
  %672 = vmatpush1.bf16.msra.mxu0 0
  %673 = vmatprep.subr.bf16.mxu0 0
  %674 = vmatpush1.bf16.msra.mxu0 0
  %675 = vmatprep.mubr.bf16.mxu0 0
  %676 = vmatmul.mubr.bf16.gmra.mrb[0].mxu0 %v575
  %v677 = vpop.f32.mrb[0].mxu0
  %v678 = vadd.f32 0.0, %v677
  %v679 = vpop.f32.mrb[0].mxu0
  %v680 = vpop.f32.mrb[0].mxu0
  %v681 = vadd.f32 0.0, %v680
  %v682 = vpop.f32.mrb[0].mxu0
  %683 = vmatprep.mubr.bf16.mxu0 0
  %684 = vmatmul.mubr.bf16.gmra.mrb[0].mxu0 %v576
  %v685 = vpop.f32.mrb[0].mxu0
  %v686 = vadd.f32 0.0, %v685
  %v687 = vpop.f32.mrb[0].mxu0
  %v688 = vpop.f32.mrb[0].mxu0
  %v689 = vadd.f32 0.0, %v688
  %v690 = vpop.f32.mrb[0].mxu0
  %691 = vmatprep.mubr.bf16.mxu0 0
  %692 = vmatmul.mubr.bf16.gmra.mrb[0].mxu0 %v577
  %v693 = vpop.f32.mrb[0].mxu0
  %v694 = vadd.f32 0.0, %v693
  %v695 = vpop.f32.mrb[0].mxu0
  %v696 = vpop.f32.mrb[0].mxu0
  %v697 = vadd.f32 0.0, %v696
  %v698 = vpop.f32.mrb[0].mxu0
  %699 = vdwg.mxu0
  %v700 = vadd.f32 %v562, %v678
  %v701 = vadd.f32 %v563, %v681
  %v702 = vadd.f32 %v564, %v686
  %v703 = vadd.f32 %v565, %v689
  %v704 = vadd.f32 %v566, %v694
  %v705 = vadd.f32 %v567, %v697
  %v706 = vld [vmem:[%s2] sm:$0x1]
  %v708 = vlaneseq
  %v709 = vshrl.u32 %v708, 7
  %v710 = vsub.s32 0, %v709
  %v711 = vrot.slane %v706, %v710
  %v713 = vadd.f32 %v700, %v711
  %v714 = vadd.f32 %v701, %v711
  %v715 = vadd.f32 %v702, %v711
  %v716 = vadd.f32 %v703, %v711
  %v717 = vadd.f32 %v704, %v711
  %v718 = vadd.f32 %v705, %v711
  %719 = vst [vmem:[#allocation2] sm:$0xff] %v713
  %720 = vst [vmem:[#allocation2 + $0x8] sm:$0xff] %v714
  %721 = vst [vmem:[#allocation2 + $0x10] sm:$0xff] %v715
  %722 = vst [vmem:[#allocation2 + $0x18] sm:$0xff] %v716
  %723 = vst [vmem:[#allocation2 + $0x20] sm:$0xff] %v717
  %724 = vst [vmem:[#allocation2 + $0x28] sm:$0xff] %v718
  %v725 = vld [vmem:[#allocation2] sm:$0xff]
  %v726 = vld [vmem:[#allocation2 + $0x8] sm:$0xff]
  %v727 = vld [vmem:[#allocation2 + $0x10] sm:$0xff]
  %v728 = vld [vmem:[#allocation2 + $0x18] sm:$0xff]
  %v729 = vld [vmem:[#allocation2 + $0x20] sm:$0xff]
  %v730 = vld [vmem:[#allocation2 + $0x28] sm:$0xff]
  %v731 = vpack.c.bf16 %v726, %v725
  %v732 = vpack.c.bf16 %v728, %v727
  %v733 = vpack.c.bf16 %v730, %v729
  %v734 = vld [vmem:[%s3] sm:$0xff]
  %v735 = vld [vmem:[%s3 + $0x8] sm:$0xff]
  %v736 = vld [vmem:[%s3 + $0x10] sm:$0xff]
  %v737 = vld [vmem:[%s3 + $0x18] sm:$0xff]
  %v738 = vld [vmem:[%s3 + $0x20] sm:$0xff]
  %v739 = vld [vmem:[%s3 + $0x28] sm:$0xff]
  %v740 = vld [vmem:[%s3 + $0x30] sm:$0xff]
  %v741 = vld [vmem:[%s3 + $0x38] sm:$0xff]
  %v742 = vld [vmem:[%s3 + $0x40] sm:$0xff]
  %v743 = vld [vmem:[%s3 + $0x48] sm:$0xff]
  %v744 = vld [vmem:[%s3 + $0x50] sm:$0xff]
  %v745 = vld [vmem:[%s3 + $0x58] sm:$0xff]
  %v746 = vld [vmem:[%s3 + $0x60] sm:$0xff]
  %v747 = vld [vmem:[%s3 + $0x68] sm:$0xff]
  %v748 = vld [vmem:[%s3 + $0x70] sm:$0xff]
  %v749 = vld [vmem:[%s3 + $0x78] sm:$0xff]
  %v750 = vld [vmem:[%s3 + $0x80] sm:$0xff]
  %v751 = vld [vmem:[%s3 + $0x88] sm:$0xff]
  %v752 = vld [vmem:[%s3 + $0x90] sm:$0xff]
  %v753 = vld [vmem:[%s3 + $0x98] sm:$0xff]
  %v754 = vld [vmem:[%s3 + $0xa0] sm:$0xff]
  %v755 = vld [vmem:[%s3 + $0xa8] sm:$0xff]
  %v756 = vld [vmem:[%s3 + $0xb0] sm:$0xff]
  %v757 = vld [vmem:[%s3 + $0xb8] sm:$0xff]
  %v758 = vld [vmem:[%s3 + $0xc0] sm:$0xff]
  %v759 = vld [vmem:[%s3 + $0xc8] sm:$0xff]
  %v760 = vld [vmem:[%s3 + $0xd0] sm:$0xff]
  %v761 = vld [vmem:[%s3 + $0xd8] sm:$0xff]
  %v762 = vld [vmem:[%s3 + $0xe0] sm:$0xff]
  %v763 = vld [vmem:[%s3 + $0xe8] sm:$0xff]
  %v764 = vld [vmem:[%s3 + $0xf0] sm:$0xff]
  %v765 = vld [vmem:[%s3 + $0xf8] sm:$0xff]
  %v766 = vld [vmem:[%s5] sm:$0xf]
  %v768 = vlaneseq
  %v769 = vshrl.u32 %v768, 7
  %v770 = vsub.s32 0, %v769
  %v771 = vrot.slane %v766, %v770
  %v772 = vlaneseq
  %v773 = vshrl.u32 %v772, 7
  %v774 = vsub.s32 1, %v773
  %v775 = vrot.slane %v766, %v774
  %v776 = vlaneseq
  %v777 = vshrl.u32 %v776, 7
  %v778 = vsub.s32 2, %v777
  %v779 = vrot.slane %v766, %v778
  %v780 = vlaneseq
  %v781 = vshrl.u32 %v780, 7
  %v782 = vsub.s32 3, %v781
  %v783 = vrot.slane %v766, %v782
  %v820 = vunpack.c.l.b16 %v734
  %v821 = vunpack.c.h.b16 %v734
  %v822 = vunpack.c.l.b16 %v735
  %v823 = vunpack.c.h.b16 %v735
  %v824 = vunpack.c.l.b16 %v736
  %v825 = vunpack.c.h.b16 %v736
  %v826 = vunpack.c.l.b16 %v737
  %v827 = vunpack.c.h.b16 %v737
  %v828 = vunpack.c.l.b16 %v738
  %v829 = vunpack.c.h.b16 %v738
  %v830 = vunpack.c.l.b16 %v739
  %v831 = vunpack.c.h.b16 %v739
  %v832 = vunpack.c.l.b16 %v740
  %v833 = vunpack.c.h.b16 %v740
  %v834 = vunpack.c.l.b16 %v741
  %v835 = vunpack.c.h.b16 %v741
  %v836 = vunpack.c.l.b16 %v742
  %v837 = vunpack.c.h.b16 %v742
  %v838 = vunpack.c.l.b16 %v743
  %v839 = vunpack.c.h.b16 %v743
  %v840 = vunpack.c.l.b16 %v744
  %v841 = vunpack.c.h.b16 %v744
  %v842 = vunpack.c.l.b16 %v745
  %v843 = vunpack.c.h.b16 %v745
  %v844 = vunpack.c.l.b16 %v746
  %v845 = vunpack.c.h.b16 %v746
  %v846 = vunpack.c.l.b16 %v747
  %v847 = vunpack.c.h.b16 %v747
  %v848 = vunpack.c.l.b16 %v748
  %v849 = vunpack.c.h.b16 %v748
  %v850 = vunpack.c.l.b16 %v749
  %v851 = vunpack.c.h.b16 %v749
  %v852 = vunpack.c.l.b16 %v750
  %v853 = vunpack.c.h.b16 %v750
  %v854 = vunpack.c.l.b16 %v751
  %v855 = vunpack.c.h.b16 %v751
  %v856 = vunpack.c.l.b16 %v752
  %v857 = vunpack.c.h.b16 %v752
  %v858 = vunpack.c.l.b16 %v753
  %v859 = vunpack.c.h.b16 %v753
  %v860 = vunpack.c.l.b16 %v754
  %v861 = vunpack.c.h.b16 %v754
  %v862 = vunpack.c.l.b16 %v755
  %v863 = vunpack.c.h.b16 %v755
  %v864 = vunpack.c.l.b16 %v756
  %v865 = vunpack.c.h.b16 %v756
  %v866 = vunpack.c.l.b16 %v757
  %v867 = vunpack.c.h.b16 %v757
  %v868 = vunpack.c.l.b16 %v758
  %v869 = vunpack.c.h.b16 %v758
  %v870 = vunpack.c.l.b16 %v759
  %v871 = vunpack.c.h.b16 %v759
  %v872 = vunpack.c.l.b16 %v760
  %v873 = vunpack.c.h.b16 %v760
  %v874 = vunpack.c.l.b16 %v761
  %v875 = vunpack.c.h.b16 %v761
  %v876 = vunpack.c.l.b16 %v762
  %v877 = vunpack.c.h.b16 %v762
  %v878 = vunpack.c.l.b16 %v763
  %v879 = vunpack.c.h.b16 %v763
  %v880 = vunpack.c.l.b16 %v764
  %v881 = vunpack.c.h.b16 %v764
  %v882 = vunpack.c.l.b16 %v765
  %v883 = vunpack.c.h.b16 %v765
  %v884 = vpack.c.b16 %v824, %v820
  %v885 = vpack.c.b16 %v825, %v821
  %v886 = vpack.c.b16 %v826, %v822
  %v887 = vpack.c.b16 %v827, %v823
  %v888 = vpack.c.b16 %v832, %v828
  %v889 = vpack.c.b16 %v833, %v829
  %v890 = vpack.c.b16 %v834, %v830
  %v891 = vpack.c.b16 %v835, %v831
  %v892 = vpack.c.b16 %v840, %v836
  %v893 = vpack.c.b16 %v841, %v837
  %v894 = vpack.c.b16 %v842, %v838
  %v895 = vpack.c.b16 %v843, %v839
  %v896 = vpack.c.b16 %v848, %v844
  %v897 = vpack.c.b16 %v849, %v845
  %v898 = vpack.c.b16 %v850, %v846
  %v899 = vpack.c.b16 %v851, %v847
  %v900 = vpack.c.b16 %v856, %v852
  %v901 = vpack.c.b16 %v857, %v853
  %v902 = vpack.c.b16 %v858, %v854
  %v903 = vpack.c.b16 %v859, %v855
  %v904 = vpack.c.b16 %v864, %v860
  %v905 = vpack.c.b16 %v865, %v861
  %v906 = vpack.c.b16 %v866, %v862
  %v907 = vpack.c.b16 %v867, %v863
  %v908 = vpack.c.b16 %v872, %v868
  %v909 = vpack.c.b16 %v873, %v869
  %v910 = vpack.c.b16 %v874, %v870
  %v911 = vpack.c.b16 %v875, %v871
  %v912 = vpack.c.b16 %v880, %v876
  %v913 = vpack.c.b16 %v881, %v877
  %v914 = vpack.c.b16 %v882, %v878
  %v915 = vpack.c.b16 %v883, %v879
  %948 = vmatprep.subr.bf16.mxu0 %v885
  %949 = vmatpush1.bf16.msra.mxu0 %v884
  %950 = vmatprep.subr.bf16.mxu0 %v889
  %951 = vmatpush1.bf16.msra.mxu0 %v888
  %952 = vmatprep.subr.bf16.mxu0 %v893
  %953 = vmatpush1.bf16.msra.mxu0 %v892
  %954 = vmatprep.subr.bf16.mxu0 %v897
  %955 = vmatpush1.bf16.msra.mxu0 %v896
  %956 = vmatprep.subr.bf16.mxu0 %v901
  %957 = vmatpush1.bf16.msra.mxu0 %v900
  %958 = vmatprep.subr.bf16.mxu0 %v905
  %959 = vmatpush1.bf16.msra.mxu0 %v904
  %960 = vmatprep.subr.bf16.mxu0 %v909
  %961 = vmatpush1.bf16.msra.mxu0 %v908
  %962 = vmatprep.subr.bf16.mxu0 %v913
  %963 = vmatpush1.bf16.msra.mxu0 %v912
  %964 = vmatprep.subr.bf16.mxu0 0
  %965 = vmatpush1.bf16.msra.mxu0 0
  %966 = vmatprep.subr.bf16.mxu0 0
  %967 = vmatpush1.bf16.msra.mxu0 0
  %968 = vmatprep.subr.bf16.mxu0 0
  %969 = vmatpush1.bf16.msra.mxu0 0
  %970 = vmatprep.subr.bf16.mxu0 0
  %971 = vmatpush1.bf16.msra.mxu0 0
  %972 = vmatprep.subr.bf16.mxu0 0
  %973 = vmatpush1.bf16.msra.mxu0 0
  %974 = vmatprep.subr.bf16.mxu0 0
  %975 = vmatpush1.bf16.msra.mxu0 0
  %976 = vmatprep.subr.bf16.mxu0 0
  %977 = vmatpush1.bf16.msra.mxu0 0
  %978 = vmatprep.subr.bf16.mxu0 0
  %979 = vmatpush1.bf16.msra.mxu0 0
  %980 = vmatprep.mubr.bf16.mxu0 0
  %981 = vmatmul.mubr.bf16.gmra.mrb[0].mxu0 %v731
  %v982 = vpop.f32.mrb[0].mxu0
  %v983 = vadd.f32 %v771, %v982
  %v984 = vpop.f32.mrb[0].mxu0
  %v985 = vadd.f32 %v775, %v984
  %v986 = vpop.f32.mrb[0].mxu0
  %v987 = vadd.f32 %v771, %v986
  %v988 = vpop.f32.mrb[0].mxu0
  %v989 = vadd.f32 %v775, %v988
  %990 = vmatprep.mubr.bf16.mxu0 0
  %991 = vmatmul.mubr.bf16.gmra.mrb[0].mxu0 %v732
  %v992 = vpop.f32.mrb[0].mxu0
  %v993 = vadd.f32 %v771, %v992
  %v994 = vpop.f32.mrb[0].mxu0
  %v995 = vadd.f32 %v775, %v994
  %v996 = vpop.f32.mrb[0].mxu0
  %v997 = vadd.f32 %v771, %v996
  %v998 = vpop.f32.mrb[0].mxu0
  %v999 = vadd.f32 %v775, %v998
  %1000 = vmatprep.mubr.bf16.mxu0 0
  %1001 = vmatmul.mubr.bf16.gmra.mrb[0].mxu0 %v733
  %v1002 = vpop.f32.mrb[0].mxu0
  %v1003 = vadd.f32 %v771, %v1002
  %v1004 = vpop.f32.mrb[0].mxu0
  %v1005 = vadd.f32 %v775, %v1004
  %v1006 = vpop.f32.mrb[0].mxu0
  %v1007 = vadd.f32 %v771, %v1006
  %v1008 = vpop.f32.mrb[0].mxu0
  %v1009 = vadd.f32 %v775, %v1008
  %1010 = vdwg.mxu0
  %1011 = vmatprep.subr.bf16.mxu0 %v887
  %1012 = vmatpush1.bf16.msra.mxu0 %v886
  %1013 = vmatprep.subr.bf16.mxu0 %v891
  %1014 = vmatpush1.bf16.msra.mxu0 %v890
  %1015 = vmatprep.subr.bf16.mxu0 %v895
  %1016 = vmatpush1.bf16.msra.mxu0 %v894
  %1017 = vmatprep.subr.bf16.mxu0 %v899
  %1018 = vmatpush1.bf16.msra.mxu0 %v898
  %1019 = vmatprep.subr.bf16.mxu0 %v903
  %1020 = vmatpush1.bf16.msra.mxu0 %v902
  %1021 = vmatprep.subr.bf16.mxu0 %v907
  %1022 = vmatpush1.bf16.msra.mxu0 %v906
  %1023 = vmatprep.subr.bf16.mxu0 %v911
  %1024 = vmatpush1.bf16.msra.mxu0 %v910
  %1025 = vmatprep.subr.bf16.mxu0 %v915
  %1026 = vmatpush1.bf16.msra.mxu0 %v914
  %1027 = vmatprep.subr.bf16.mxu0 0
  %1028 = vmatpush1.bf16.msra.mxu0 0
  %1029 = vmatprep.subr.bf16.mxu0 0
  %1030 = vmatpush1.bf16.msra.mxu0 0
  %1031 = vmatprep.subr.bf16.mxu0 0
  %1032 = vmatpush1.bf16.msra.mxu0 0
  %1033 = vmatprep.subr.bf16.mxu0 0
  %1034 = vmatpush1.bf16.msra.mxu0 0
  %1035 = vmatprep.subr.bf16.mxu0 0
  %1036 = vmatpush1.bf16.msra.mxu0 0
  %1037 = vmatprep.subr.bf16.mxu0 0
  %1038 = vmatpush1.bf16.msra.mxu0 0
  %1039 = vmatprep.subr.bf16.mxu0 0
  %1040 = vmatpush1.bf16.msra.mxu0 0
  %1041 = vmatprep.subr.bf16.mxu0 0
  %1042 = vmatpush1.bf16.msra.mxu0 0
  %1043 = vmatprep.mubr.bf16.mxu0 0
  %1044 = vmatmul.mubr.bf16.gmra.mrb[0].mxu0 %v731
  %v1045 = vpop.f32.mrb[0].mxu0
  %v1046 = vadd.f32 %v779, %v1045
  %v1047 = vpop.f32.mrb[0].mxu0
  %v1048 = vadd.f32 %v783, %v1047
  %v1049 = vpop.f32.mrb[0].mxu0
  %v1050 = vadd.f32 %v779, %v1049
  %v1051 = vpop.f32.mrb[0].mxu0
  %v1052 = vadd.f32 %v783, %v1051
  %1053 = vmatprep.mubr.bf16.mxu0 0
  %1054 = vmatmul.mubr.bf16.gmra.mrb[0].mxu0 %v732
  %v1055 = vpop.f32.mrb[0].mxu0
  %v1056 = vadd.f32 %v779, %v1055
  %v1057 = vpop.f32.mrb[0].mxu0
  %v1058 = vadd.f32 %v783, %v1057
  %v1059 = vpop.f32.mrb[0].mxu0
  %v1060 = vadd.f32 %v779, %v1059
  %v1061 = vpop.f32.mrb[0].mxu0
  %v1062 = vadd.f32 %v783, %v1061
  %1063 = vmatprep.mubr.bf16.mxu0 0
  %1064 = vmatmul.mubr.bf16.gmra.mrb[0].mxu0 %v733
  %v1065 = vpop.f32.mrb[0].mxu0
  %v1066 = vadd.f32 %v779, %v1065
  %v1067 = vpop.f32.mrb[0].mxu0
  %v1068 = vadd.f32 %v783, %v1067
  %v1069 = vpop.f32.mrb[0].mxu0
  %v1070 = vadd.f32 %v779, %v1069
  %v1071 = vpop.f32.mrb[0].mxu0
  %v1072 = vadd.f32 %v783, %v1071
  %1073 = vdwg.mxu0
  %1074 = vst [vmem:[#allocation3] sm:$0xff] %v983
  %1075 = vst [vmem:[#allocation3 + $0x8] sm:$0xff] %v985
  %1076 = vst [vmem:[#allocation3 + $0x10] sm:$0xff] %v1046
  %1077 = vst [vmem:[#allocation3 + $0x18] sm:$0xff] %v1048
  %1078 = vst [vmem:[#allocation3 + $0x20] sm:$0xff] %v987
  %1079 = vst [vmem:[#allocation3 + $0x28] sm:$0xff] %v989
  %1080 = vst [vmem:[#allocation3 + $0x30] sm:$0xff] %v1050
  %1081 = vst [vmem:[#allocation3 + $0x38] sm:$0xff] %v1052
  %1082 = vst [vmem:[#allocation3 + $0x40] sm:$0xff] %v993
  %1083 = vst [vmem:[#allocation3 + $0x48] sm:$0xff] %v995
  %1084 = vst [vmem:[#allocation3 + $0x50] sm:$0xff] %v1056
  %1085 = vst [vmem:[#allocation3 + $0x58] sm:$0xff] %v1058
  %1086 = vst [vmem:[#allocation3 + $0x60] sm:$0xff] %v997
  %1087 = vst [vmem:[#allocation3 + $0x68] sm:$0xff] %v999
  %1088 = vst [vmem:[#allocation3 + $0x70] sm:$0xff] %v1060
  %1089 = vst [vmem:[#allocation3 + $0x78] sm:$0xff] %v1062
  %1090 = vst [vmem:[#allocation3 + $0x80] sm:$0xff] %v1003
  %1091 = vst [vmem:[#allocation3 + $0x88] sm:$0xff] %v1005
  %1092 = vst [vmem:[#allocation3 + $0x90] sm:$0xff] %v1066
  %1093 = vst [vmem:[#allocation3 + $0x98] sm:$0xff] %v1068
  %1094 = vst [vmem:[#allocation3 + $0xa0] sm:$0xff] %v1007
  %1095 = vst [vmem:[#allocation3 + $0xa8] sm:$0xff] %v1009
  %1096 = vst [vmem:[#allocation3 + $0xb0] sm:$0xff] %v1070
  %1097 = vst [vmem:[#allocation3 + $0xb8] sm:$0xff] %v1072
  %v1098 = vld [vmem:[%s4] sm:$0xff]
  %v1099 = vld [vmem:[%s4 + $0x8] sm:$0xff]
  %v1100 = vld [vmem:[%s4 + $0x10] sm:$0xff]
  %v1101 = vld [vmem:[%s4 + $0x18] sm:$0xff]
  %v1102 = vld [vmem:[%s4 + $0x20] sm:$0xff]
  %v1103 = vld [vmem:[%s4 + $0x28] sm:$0xff]
  %v1104 = vld [vmem:[%s4 + $0x30] sm:$0xff]
  %v1105 = vld [vmem:[%s4 + $0x38] sm:$0xff]
  %v1106 = vld [vmem:[%s4 + $0x40] sm:$0xff]
  %v1107 = vld [vmem:[%s4 + $0x48] sm:$0xff]
  %v1108 = vld [vmem:[%s4 + $0x50] sm:$0xff]
  %v1109 = vld [vmem:[%s4 + $0x58] sm:$0xff]
  %v1110 = vld [vmem:[%s4 + $0x60] sm:$0xff]
  %v1111 = vld [vmem:[%s4 + $0x68] sm:$0xff]
  %v1112 = vld [vmem:[%s4 + $0x70] sm:$0xff]
  %v1113 = vld [vmem:[%s4 + $0x78] sm:$0xff]
  %v1114 = vld [vmem:[%s4 + $0x80] sm:$0xff]
  %v1115 = vld [vmem:[%s4 + $0x88] sm:$0xff]
  %v1116 = vld [vmem:[%s4 + $0x90] sm:$0xff]
  %v1117 = vld [vmem:[%s4 + $0x98] sm:$0xff]
  %v1118 = vld [vmem:[%s4 + $0xa0] sm:$0xff]
  %v1119 = vld [vmem:[%s4 + $0xa8] sm:$0xff]
  %v1120 = vld [vmem:[%s4 + $0xb0] sm:$0xff]
  %v1121 = vld [vmem:[%s4 + $0xb8] sm:$0xff]
  %v1122 = vld [vmem:[%s4 + $0xc0] sm:$0xff]
  %v1123 = vld [vmem:[%s4 + $0xc8] sm:$0xff]
  %v1124 = vld [vmem:[%s4 + $0xd0] sm:$0xff]
  %v1125 = vld [vmem:[%s4 + $0xd8] sm:$0xff]
  %v1126 = vld [vmem:[%s4 + $0xe0] sm:$0xff]
  %v1127 = vld [vmem:[%s4 + $0xe8] sm:$0xff]
  %v1128 = vld [vmem:[%s4 + $0xf0] sm:$0xff]
  %v1129 = vld [vmem:[%s4 + $0xf8] sm:$0xff]
  %v1130 = vld [vmem:[#allocation3] sm:$0xff]
  %v1131 = vld [vmem:[#allocation3 + $0x8] sm:$0xff]
  %v1132 = vld [vmem:[#allocation3 + $0x10] sm:$0xff]
  %v1133 = vld [vmem:[#allocation3 + $0x18] sm:$0xff]
  %v1166 = vunpack.c.l.b16 %v1098
  %v1167 = vunpack.c.h.b16 %v1098
  %v1168 = vunpack.c.l.b16 %v1099
  %v1169 = vunpack.c.h.b16 %v1099
  %v1170 = vunpack.c.l.b16 %v1100
  %v1171 = vunpack.c.h.b16 %v1100
  %v1172 = vunpack.c.l.b16 %v1101
  %v1173 = vunpack.c.h.b16 %v1101
  %v1174 = vunpack.c.l.b16 %v1102
  %v1175 = vunpack.c.h.b16 %v1102
  %v1176 = vunpack.c.l.b16 %v1103
  %v1177 = vunpack.c.h.b16 %v1103
  %v1178 = vunpack.c.l.b16 %v1104
  %v1179 = vunpack.c.h.b16 %v1104
  %v1180 = vunpack.c.l.b16 %v1105
  %v1181 = vunpack.c.h.b16 %v1105
  %v1182 = vunpack.c.l.b16 %v1106
  %v1183 = vunpack.c.h.b16 %v1106
  %v1184 = vunpack.c.l.b16 %v1107
  %v1185 = vunpack.c.h.b16 %v1107
  %v1186 = vunpack.c.l.b16 %v1108
  %v1187 = vunpack.c.h.b16 %v1108
  %v1188 = vunpack.c.l.b16 %v1109
  %v1189 = vunpack.c.h.b16 %v1109
  %v1190 = vunpack.c.l.b16 %v1110
  %v1191 = vunpack.c.h.b16 %v1110
  %v1192 = vunpack.c.l.b16 %v1111
  %v1193 = vunpack.c.h.b16 %v1111
  %v1194 = vunpack.c.l.b16 %v1112
  %v1195 = vunpack.c.h.b16 %v1112
  %v1196 = vunpack.c.l.b16 %v1113
  %v1197 = vunpack.c.h.b16 %v1113
  %v1198 = vunpack.c.l.b16 %v1114
  %v1199 = vunpack.c.h.b16 %v1114
  %v1200 = vunpack.c.l.b16 %v1115
  %v1201 = vunpack.c.h.b16 %v1115
  %v1202 = vunpack.c.l.b16 %v1116
  %v1203 = vunpack.c.h.b16 %v1116
  %v1204 = vunpack.c.l.b16 %v1117
  %v1205 = vunpack.c.h.b16 %v1117
  %v1206 = vunpack.c.l.b16 %v1118
  %v1207 = vunpack.c.h.b16 %v1118
  %v1208 = vunpack.c.l.b16 %v1119
  %v1209 = vunpack.c.h.b16 %v1119
  %v1210 = vunpack.c.l.b16 %v1120
  %v1211 = vunpack.c.h.b16 %v1120
  %v1212 = vunpack.c.l.b16 %v1121
  %v1213 = vunpack.c.h.b16 %v1121
  %v1214 = vunpack.c.l.b16 %v1122
  %v1215 = vunpack.c.h.b16 %v1122
  %v1216 = vunpack.c.l.b16 %v1123
  %v1217 = vunpack.c.h.b16 %v1123
  %v1218 = vunpack.c.l.b16 %v1124
  %v1219 = vunpack.c.h.b16 %v1124
  %v1220 = vunpack.c.l.b16 %v1125
  %v1221 = vunpack.c.h.b16 %v1125
  %v1222 = vunpack.c.l.b16 %v1126
  %v1223 = vunpack.c.h.b16 %v1126
  %v1224 = vunpack.c.l.b16 %v1127
  %v1225 = vunpack.c.h.b16 %v1127
  %v1226 = vunpack.c.l.b16 %v1128
  %v1227 = vunpack.c.h.b16 %v1128
  %v1228 = vunpack.c.l.b16 %v1129
  %v1229 = vunpack.c.h.b16 %v1129
  %v1230 = vpack.c.b16 %v1170, %v1166
  %v1231 = vpack.c.b16 %v1171, %v1167
  %v1232 = vpack.c.b16 %v1172, %v1168
  %v1233 = vpack.c.b16 %v1173, %v1169
  %v1234 = vpack.c.b16 %v1178, %v1174
  %v1235 = vpack.c.b16 %v1179, %v1175
  %v1236 = vpack.c.b16 %v1180, %v1176
  %v1237 = vpack.c.b16 %v1181, %v1177
  %v1238 = vpack.c.b16 %v1186, %v1182
  %v1239 = vpack.c.b16 %v1187, %v1183
  %v1240 = vpack.c.b16 %v1188, %v1184
  %v1241 = vpack.c.b16 %v1189, %v1185
  %v1242 = vpack.c.b16 %v1194, %v1190
  %v1243 = vpack.c.b16 %v1195, %v1191
  %v1244 = vpack.c.b16 %v1196, %v1192
  %v1245 = vpack.c.b16 %v1197, %v1193
  %v1246 = vpack.c.b16 %v1202, %v1198
  %v1247 = vpack.c.b16 %v1203, %v1199
  %v1248 = vpack.c.b16 %v1204, %v1200
  %v1249 = vpack.c.b16 %v1205, %v1201
  %v1250 = vpack.c.b16 %v1210, %v1206
  %v1251 = vpack.c.b16 %v1211, %v1207
  %v1252 = vpack.c.b16 %v1212, %v1208
  %v1253 = vpack.c.b16 %v1213, %v1209
  %v1254 = vpack.c.b16 %v1218, %v1214
  %v1255 = vpack.c.b16 %v1219, %v1215
  %v1256 = vpack.c.b16 %v1220, %v1216
  %v1257 = vpack.c.b16 %v1221, %v1217
  %v1258 = vpack.c.b16 %v1226, %v1222
  %v1259 = vpack.c.b16 %v1227, %v1223
  %v1260 = vpack.c.b16 %v1228, %v1224
  %v1261 = vpack.c.b16 %v1229, %v1225
  %1294 = vmatprep.subr.bf16.mxu0 %v1231
  %1295 = vmatpush1.bf16.msra.mxu0 %v1230
  %1296 = vmatprep.subr.bf16.mxu0 %v1235
  %1297 = vmatpush1.bf16.msra.mxu0 %v1234
  %1298 = vmatprep.subr.bf16.mxu0 %v1239
  %1299 = vmatpush1.bf16.msra.mxu0 %v1238
  %1300 = vmatprep.subr.bf16.mxu0 %v1243
  %1301 = vmatpush1.bf16.msra.mxu0 %v1242
  %1302 = vmatprep.subr.bf16.mxu0 %v1247
  %1303 = vmatpush1.bf16.msra.mxu0 %v1246
  %1304 = vmatprep.subr.bf16.mxu0 %v1251
  %1305 = vmatpush1.bf16.msra.mxu0 %v1250
  %1306 = vmatprep.subr.bf16.mxu0 %v1255
  %1307 = vmatpush1.bf16.msra.mxu0 %v1254
  %1308 = vmatprep.subr.bf16.mxu0 %v1259
  %1309 = vmatpush1.bf16.msra.mxu0 %v1258
  %1310 = vmatprep.subr.bf16.mxu0 0
  %1311 = vmatpush1.bf16.msra.mxu0 0
  %1312 = vmatprep.subr.bf16.mxu0 0
  %1313 = vmatpush1.bf16.msra.mxu0 0
  %1314 = vmatprep.subr.bf16.mxu0 0
  %1315 = vmatpush1.bf16.msra.mxu0 0
  %1316 = vmatprep.subr.bf16.mxu0 0
  %1317 = vmatpush1.bf16.msra.mxu0 0
  %1318 = vmatprep.subr.bf16.mxu0 0
  %1319 = vmatpush1.bf16.msra.mxu0 0
  %1320 = vmatprep.subr.bf16.mxu0 0
  %1321 = vmatpush1.bf16.msra.mxu0 0
  %1322 = vmatprep.subr.bf16.mxu0 0
  %1323 = vmatpush1.bf16.msra.mxu0 0
  %1324 = vmatprep.subr.bf16.mxu0 0
  %1325 = vmatpush1.bf16.msra.mxu0 0
  %1326 = vmatprep.mubr.bf16.mxu0 0
  %1327 = vmatmul.mubr.bf16.gmra.mrb[0].mxu0 0
  %v1328 = vpop.f32.mrb[0].mxu0
  %v1329 = vadd.f32 0.0, %v1328
  %v1330 = vpop.f32.mrb[0].mxu0
  %v1331 = vadd.f32 0.0, %v1330
  %v1332 = vpop.f32.mrb[0].mxu0
  %v1333 = vpop.f32.mrb[0].mxu0
  %1334 = vdwg.mxu0
  %1335 = vmatprep.subr.bf16.mxu0 %v1233
  %1336 = vmatpush1.bf16.msra.mxu0 %v1232
  %1337 = vmatprep.subr.bf16.mxu0 %v1237
  %1338 = vmatpush1.bf16.msra.mxu0 %v1236
  %1339 = vmatprep.subr.bf16.mxu0 %v1241
  %1340 = vmatpush1.bf16.msra.mxu0 %v1240
  %1341 = vmatprep.subr.bf16.mxu0 %v1245
  %1342 = vmatpush1.bf16.msra.mxu0 %v1244
  %1343 = vmatprep.subr.bf16.mxu0 %v1249
  %1344 = vmatpush1.bf16.msra.mxu0 %v1248
  %1345 = vmatprep.subr.bf16.mxu0 %v1253
  %1346 = vmatpush1.bf16.msra.mxu0 %v1252
  %1347 = vmatprep.subr.bf16.mxu0 %v1257
  %1348 = vmatpush1.bf16.msra.mxu0 %v1256
  %1349 = vmatprep.subr.bf16.mxu0 %v1261
  %1350 = vmatpush1.bf16.msra.mxu0 %v1260
  %1351 = vmatprep.subr.bf16.mxu0 0
  %1352 = vmatpush1.bf16.msra.mxu0 0
  %1353 = vmatprep.subr.bf16.mxu0 0
  %1354 = vmatpush1.bf16.msra.mxu0 0
  %1355 = vmatprep.subr.bf16.mxu0 0
  %1356 = vmatpush1.bf16.msra.mxu0 0
  %1357 = vmatprep.subr.bf16.mxu0 0
  %1358 = vmatpush1.bf16.msra.mxu0 0
  %1359 = vmatprep.subr.bf16.mxu0 0
  %1360 = vmatpush1.bf16.msra.mxu0 0
  %1361 = vmatprep.subr.bf16.mxu0 0
  %1362 = vmatpush1.bf16.msra.mxu0 0
  %1363 = vmatprep.subr.bf16.mxu0 0
  %1364 = vmatpush1.bf16.msra.mxu0 0
  %1365 = vmatprep.subr.bf16.mxu0 0
  %1366 = vmatpush1.bf16.msra.mxu0 0
  %1367 = vmatprep.mubr.bf16.mxu0 0
  %1368 = vmatmul.mubr.bf16.gmra.mrb[0].mxu0 0
  %v1369 = vpop.f32.mrb[0].mxu0
  %v1370 = vadd.f32 0.0, %v1369
  %v1371 = vpop.f32.mrb[0].mxu0
  %v1372 = vadd.f32 0.0, %v1371
  %v1373 = vpop.f32.mrb[0].mxu0
  %v1374 = vpop.f32.mrb[0].mxu0
  %1375 = vdwg.mxu0
  %v1376 = vadd.f32 %v1130, %v1329
  %v1377 = vadd.f32 %v1131, %v1331
  %v1378 = vadd.f32 %v1132, %v1370
  %v1379 = vadd.f32 %v1133, %v1372
  %v1380 = vxor.u32 %v1376, 2147483648
  %v1381 = vmul.f32 %v1380, 1.442695
  %v1382 = vpow.pop %v1381
  %v1383 = vadd.f32 %v1382, 1.0
  %v1384 = vrcp.pop %v1383
  %v1385 = vmul.f32 1.0, %v1384
  %v1386 = vxor.u32 %v1377, 2147483648
  %v1387 = vmul.f32 %v1386, 1.442695
  %v1388 = vpow.pop %v1387
  %v1389 = vadd.f32 %v1388, 1.0
  %v1390 = vrcp.pop %v1389
  %v1391 = vmul.f32 1.0, %v1390
  %v1392 = vtanh.pop %v1378
  %v1393 = vxor.u32 %v1379, 2147483648
  %v1394 = vmul.f32 %v1393, 1.442695
  %v1395 = vpow.pop %v1394
  %v1396 = vadd.f32 %v1395, 1.0
  %v1397 = vrcp.pop %v1396
  %v1398 = vmul.f32 1.0, %v1397
  %v1399 = vmul.f32 %v1391, 0.0
  %v1400 = vmul.f32 %v1385, %v1392
  %v1401 = vadd.f32 %v1399, %v1400
  %v1402 = vtanh.pop %v1401
  %v1403 = vmul.f32 %v1398, %v1402
  %1404 = vst [vmem:[#allocation2] sm:$0xff] %v1403
  %s1405 = scalar_lea.vmem [#allocation3], 32
  %v1406 = vld [vmem:[%s1405] sm:$0xff]
  %v1407 = vld [vmem:[%s1405 + $0x8] sm:$0xff]
  %v1408 = vld [vmem:[%s1405 + $0x10] sm:$0xff]
  %v1409 = vld [vmem:[%s1405 + $0x18] sm:$0xff]
  %v1410 = vpack.c.bf16 %v1403, %v1403
  %1411 = vmatprep.subr.bf16.mxu0 %v1231
  %1412 = vmatpush1.bf16.msra.mxu0 %v1230
  %1413 = vmatprep.subr.bf16.mxu0 %v1235
  %1414 = vmatpush1.bf16.msra.mxu0 %v1234
  %1415 = vmatprep.subr.bf16.mxu0 %v1239
  %1416 = vmatpush1.bf16.msra.mxu0 %v1238
  %1417 = vmatprep.subr.bf16.mxu0 %v1243
  %1418 = vmatpush1.bf16.msra.mxu0 %v1242
  %1419 = vmatprep.subr.bf16.mxu0 %v1247
  %1420 = vmatpush1.bf16.msra.mxu0 %v1246
  %1421 = vmatprep.subr.bf16.mxu0 %v1251
  %1422 = vmatpush1.bf16.msra.mxu0 %v1250
  %1423 = vmatprep.subr.bf16.mxu0 %v1255
  %1424 = vmatpush1.bf16.msra.mxu0 %v1254
  %1425 = vmatprep.subr.bf16.mxu0 %v1259
  %1426 = vmatpush1.bf16.msra.mxu0 %v1258
  %1427 = vmatprep.subr.bf16.mxu0 0
  %1428 = vmatpush1.bf16.msra.mxu0 0
  %1429 = vmatprep.subr.bf16.mxu0 0
  %1430 = vmatpush1.bf16.msra.mxu0 0
  %1431 = vmatprep.subr.bf16.mxu0 0
  %1432 = vmatpush1.bf16.msra.mxu0 0
  %1433 = vmatprep.subr.bf16.mxu0 0
  %1434 = vmatpush1.bf16.msra.mxu0 0
  %1435 = vmatprep.subr.bf16.mxu0 0
  %1436 = vmatpush1.bf16.msra.mxu0 0
  %1437 = vmatprep.subr.bf16.mxu0 0
  %1438 = vmatpush1.bf16.msra.mxu0 0
  %1439 = vmatprep.subr.bf16.mxu0 0
  %1440 = vmatpush1.bf16.msra.mxu0 0
  %1441 = vmatprep.subr.bf16.mxu0 0
  %1442 = vmatpush1.bf16.msra.mxu0 0
  %1443 = vmatprep.mubr.bf16.mxu0 0
  %1444 = vmatmul.mubr.bf16.gmra.mrb[0].mxu0 %v1410
  %v1445 = vpop.f32.mrb[0].mxu0
  %v1446 = vadd.f32 0.0, %v1445
  %v1447 = vpop.f32.mrb[0].mxu0
  %v1448 = vadd.f32 0.0, %v1447
  %v1449 = vpop.f32.mrb[0].mxu0
  %v1450 = vpop.f32.mrb[0].mxu0
  %1451 = vdwg.mxu0
  %1452 = vmatprep.subr.bf16.mxu0 %v1233
  %1453 = vmatpush1.bf16.msra.mxu0 %v1232
  %1454 = vmatprep.subr.bf16.mxu0 %v1237
  %1455 = vmatpush1.bf16.msra.mxu0 %v1236
  %1456 = vmatprep.subr.bf16.mxu0 %v1241
  %1457 = vmatpush1.bf16.msra.mxu0 %v1240
  %1458 = vmatprep.subr.bf16.mxu0 %v1245
  %1459 = vmatpush1.bf16.msra.mxu0 %v1244
  %1460 = vmatprep.subr.bf16.mxu0 %v1249
  %1461 = vmatpush1.bf16.msra.mxu0 %v1248
  %1462 = vmatprep.subr.bf16.mxu0 %v1253
  %1463 = vmatpush1.bf16.msra.mxu0 %v1252
  %1464 = vmatprep.subr.bf16.mxu0 %v1257
  %1465 = vmatpush1.bf16.msra.mxu0 %v1256
  %1466 = vmatprep.subr.bf16.mxu0 %v1261
  %1467 = vmatpush1.bf16.msra.mxu0 %v1260
  %1468 = vmatprep.subr.bf16.mxu0 0
  %1469 = vmatpush1.bf16.msra.mxu0 0
  %1470 = vmatprep.subr.bf16.mxu0 0
  %1471 = vmatpush1.bf16.msra.mxu0 0
  %1472 = vmatprep.subr.bf16.mxu0 0
  %1473 = vmatpush1.bf16.msra.mxu0 0
  %1474 = vmatprep.subr.bf16.mxu0 0
  %1475 = vmatpush1.bf16.msra.mxu0 0
  %1476 = vmatprep.subr.bf16.mxu0 0
  %1477 = vmatpush1.bf16.msra.mxu0 0
  %1478 = vmatprep.subr.bf16.mxu0 0
  %1479 = vmatpush1.bf16.msra.mxu0 0
  %1480 = vmatprep.subr.bf16.mxu0 0
  %1481 = vmatpush1.bf16.msra.mxu0 0
  %1482 = vmatprep.subr.bf16.mxu0 0
  %1483 = vmatpush1.bf16.msra.mxu0 0
  %1484 = vmatprep.mubr.bf16.mxu0 0
  %1485 = vmatmul.mubr.bf16.gmra.mrb[0].mxu0 %v1410
  %v1486 = vpop.f32.mrb[0].mxu0
  %v1487 = vadd.f32 0.0, %v1486
  %v1488 = vpop.f32.mrb[0].mxu0
  %v1489 = vadd.f32 0.0, %v1488
  %v1490 = vpop.f32.mrb[0].mxu0
  %v1491 = vpop.f32.mrb[0].mxu0
  %1492 = vdwg.mxu0
  %v1493 = vadd.f32 %v1406, %v1446
  %v1494 = vadd.f32 %v1407, %v1448
  %v1495 = vadd.f32 %v1408, %v1487
  %v1496 = vadd.f32 %v1409, %v1489
  %v1497 = vxor.u32 %v1493, 2147483648
  %v1498 = vmul.f32 %v1497, 1.442695
  %v1499 = vpow.pop %v1498
  %v1500 = vadd.f32 %v1499, 1.0
  %v1501 = vrcp.pop %v1500
  %v1502 = vmul.f32 1.0, %v1501
  %v1503 = vxor.u32 %v1494, 2147483648
  %v1504 = vmul.f32 %v1503, 1.442695
  %v1505 = vpow.pop %v1504
  %v1506 = vadd.f32 %v1505, 1.0
  %v1507 = vrcp.pop %v1506
  %v1508 = vmul.f32 1.0, %v1507
  %v1509 = vtanh.pop %v1495
  %v1510 = vxor.u32 %v1496, 2147483648
  %v1511 = vmul.f32 %v1510, 1.442695
  %v1512 = vpow.pop %v1511
  %v1513 = vadd.f32 %v1512, 1.0
  %v1514 = vrcp.pop %v1513
  %v1515 = vmul.f32 1.0, %v1514
  %v1516 = vmul.f32 %v1508, %v1401
  %v1517 = vmul.f32 %v1502, %v1509
  %v1518 = vadd.f32 %v1516, %v1517
  %v1519 = vtanh.pop %v1518
  %v1520 = vmul.f32 %v1515, %v1519
  %s1521 = scalar_lea.vmem [#allocation2], 8
  %1522 = vst [vmem:[%s1521] sm:$0xff] %v1520
  %s1523 = scalar_lea.vmem [#allocation3], 64
  %v1524 = vld [vmem:[%s1523] sm:$0xff]
  %v1525 = vld [vmem:[%s1523 + $0x8] sm:$0xff]
  %v1526 = vld [vmem:[%s1523 + $0x10] sm:$0xff]
  %v1527 = vld [vmem:[%s1523 + $0x18] sm:$0xff]
  %v1528 = vpack.c.bf16 %v1520, %v1520
  %1529 = vmatprep.subr.bf16.mxu0 %v1231
  %1530 = vmatpush1.bf16.msra.mxu0 %v1230
  %1531 = vmatprep.subr.bf16.mxu0 %v1235
  %1532 = vmatpush1.bf16.msra.mxu0 %v1234
  %1533 = vmatprep.subr.bf16.mxu0 %v1239
  %1534 = vmatpush1.bf16.msra.mxu0 %v1238
  %1535 = vmatprep.subr.bf16.mxu0 %v1243
  %1536 = vmatpush1.bf16.msra.mxu0 %v1242
  %1537 = vmatprep.subr.bf16.mxu0 %v1247
  %1538 = vmatpush1.bf16.msra.mxu0 %v1246
  %1539 = vmatprep.subr.bf16.mxu0 %v1251
  %1540 = vmatpush1.bf16.msra.mxu0 %v1250
  %1541 = vmatprep.subr.bf16.mxu0 %v1255
  %1542 = vmatpush1.bf16.msra.mxu0 %v1254
  %1543 = vmatprep.subr.bf16.mxu0 %v1259
  %1544 = vmatpush1.bf16.msra.mxu0 %v1258
  %1545 = vmatprep.subr.bf16.mxu0 0
  %1546 = vmatpush1.bf16.msra.mxu0 0
  %1547 = vmatprep.subr.bf16.mxu0 0
  %1548 = vmatpush1.bf16.msra.mxu0 0
  %1549 = vmatprep.subr.bf16.mxu0 0
  %1550 = vmatpush1.bf16.msra.mxu0 0
  %1551 = vmatprep.subr.bf16.mxu0 0
  %1552 = vmatpush1.bf16.msra.mxu0 0
  %1553 = vmatprep.subr.bf16.mxu0 0
  %1554 = vmatpush1.bf16.msra.mxu0 0
  %1555 = vmatprep.subr.bf16.mxu0 0
  %1556 = vmatpush1.bf16.msra.mxu0 0
  %1557 = vmatprep.subr.bf16.mxu0 0
  %1558 = vmatpush1.bf16.msra.mxu0 0
  %1559 = vmatprep.subr.bf16.mxu0 0
  %1560 = vmatpush1.bf16.msra.mxu0 0
  %1561 = vmatprep.mubr.bf16.mxu0 0
  %1562 = vmatmul.mubr.bf16.gmra.mrb[0].mxu0 %v1528
  %v1563 = vpop.f32.mrb[0].mxu0
  %v1564 = vadd.f32 0.0, %v1563
  %v1565 = vpop.f32.mrb[0].mxu0
  %v1566 = vadd.f32 0.0, %v1565
  %v1567 = vpop.f32.mrb[0].mxu0
  %v1568 = vpop.f32.mrb[0].mxu0
  %1569 = vdwg.mxu0
  %1570 = vmatprep.subr.bf16.mxu0 %v1233
  %1571 = vmatpush1.bf16.msra.mxu0 %v1232
  %1572 = vmatprep.subr.bf16.mxu0 %v1237
  %1573 = vmatpush1.bf16.msra.mxu0 %v1236
  %1574 = vmatprep.subr.bf16.mxu0 %v1241
  %1575 = vmatpush1.bf16.msra.mxu0 %v1240
  %1576 = vmatprep.subr.bf16.mxu0 %v1245
  %1577 = vmatpush1.bf16.msra.mxu0 %v1244
  %1578 = vmatprep.subr.bf16.mxu0 %v1249
  %1579 = vmatpush1.bf16.msra.mxu0 %v1248
  %1580 = vmatprep.subr.bf16.mxu0 %v1253
  %1581 = vmatpush1.bf16.msra.mxu0 %v1252
  %1582 = vmatprep.subr.bf16.mxu0 %v1257
  %1583 = vmatpush1.bf16.msra.mxu0 %v1256
  %1584 = vmatprep.subr.bf16.mxu0 %v1261
  %1585 = vmatpush1.bf16.msra.mxu0 %v1260
  %1586 = vmatprep.subr.bf16.mxu0 0
  %1587 = vmatpush1.bf16.msra.mxu0 0
  %1588 = vmatprep.subr.bf16.mxu0 0
  %1589 = vmatpush1.bf16.msra.mxu0 0
  %1590 = vmatprep.subr.bf16.mxu0 0
  %1591 = vmatpush1.bf16.msra.mxu0 0
  %1592 = vmatprep.subr.bf16.mxu0 0
  %1593 = vmatpush1.bf16.msra.mxu0 0
  %1594 = vmatprep.subr.bf16.mxu0 0
  %1595 = vmatpush1.bf16.msra.mxu0 0
  %1596 = vmatprep.subr.bf16.mxu0 0
  %1597 = vmatpush1.bf16.msra.mxu0 0
  %1598 = vmatprep.subr.bf16.mxu0 0
  %1599 = vmatpush1.bf16.msra.mxu0 0
  %1600 = vmatprep.subr.bf16.mxu0 0
  %1601 = vmatpush1.bf16.msra.mxu0 0
  %1602 = vmatprep.mubr.bf16.mxu0 0
  %1603 = vmatmul.mubr.bf16.gmra.mrb[0].mxu0 %v1528
  %v1604 = vpop.f32.mrb[0].mxu0
  %v1605 = vadd.f32 0.0, %v1604
  %v1606 = vpop.f32.mrb[0].mxu0
  %v1607 = vadd.f32 0.0, %v1606
  %v1608 = vpop.f32.mrb[0].mxu0
  %v1609 = vpop.f32.mrb[0].mxu0
  %1610 = vdwg.mxu0
  %v1611 = vadd.f32 %v1524, %v1564
  %v1612 = vadd.f32 %v1525, %v1566
  %v1613 = vadd.f32 %v1526, %v1605
  %v1614 = vadd.f32 %v1527, %v1607
  %v1615 = vxor.u32 %v1611, 2147483648
  %v1616 = vmul.f32 %v1615, 1.442695
  %v1617 = vpow.pop %v1616
  %v1618 = vadd.f32 %v1617, 1.0
  %v1619 = vrcp.pop %v1618
  %v1620 = vmul.f32 1.0, %v1619
  %v1621 = vxor.u32 %v1612, 2147483648
  %v1622 = vmul.f32 %v1621, 1.442695
  %v1623 = vpow.pop %v1622
  %v1624 = vadd.f32 %v1623, 1.0
  %v1625 = vrcp.pop %v1624
  %v1626 = vmul.f32 1.0, %v1625
  %v1627 = vtanh.pop %v1613
  %v1628 = vxor.u32 %v1614, 2147483648
  %v1629 = vmul.f32 %v1628, 1.442695
  %v1630 = vpow.pop %v1629
  %v1631 = vadd.f32 %v1630, 1.0
  %v1632 = vrcp.pop %v1631
  %v1633 = vmul.f32 1.0, %v1632
  %v1634 = vmul.f32 %v1626, %v1518
  %v1635 = vmul.f32 %v1620, %v1627
  %v1636 = vadd.f32 %v1634, %v1635
  %v1637 = vtanh.pop %v1636
  %v1638 = vmul.f32 %v1633, %v1637
  %s1639 = scalar_lea.vmem [#allocation2], 16
  %1640 = vst [vmem:[%s1639] sm:$0xff] %v1638
  %s1641 = scalar_lea.vmem [#allocation3], 96
  %v1642 = vld [vmem:[%s1641] sm:$0xff]
  %v1643 = vld [vmem:[%s1641 + $0x8] sm:$0xff]
  %v1644 = vld [vmem:[%s1641 + $0x10] sm:$0xff]
  %v1645 = vld [vmem:[%s1641 + $0x18] sm:$0xff]
  %v1646 = vpack.c.bf16 %v1638, %v1638
  %1647 = vmatprep.subr.bf16.mxu0 %v1231
  %1648 = vmatpush1.bf16.msra.mxu0 %v1230
  %1649 = vmatprep.subr.bf16.mxu0 %v1235
  %1650 = vmatpush1.bf16.msra.mxu0 %v1234
  %1651 = vmatprep.subr.bf16.mxu0 %v1239
  %1652 = vmatpush1.bf16.msra.mxu0 %v1238
  %1653 = vmatprep.subr.bf16.mxu0 %v1243
  %1654 = vmatpush1.bf16.msra.mxu0 %v1242
  %1655 = vmatprep.subr.bf16.mxu0 %v1247
  %1656 = vmatpush1.bf16.msra.mxu0 %v1246
  %1657 = vmatprep.subr.bf16.mxu0 %v1251
  %1658 = vmatpush1.bf16.msra.mxu0 %v1250
  %1659 = vmatprep.subr.bf16.mxu0 %v1255
  %1660 = vmatpush1.bf16.msra.mxu0 %v1254
  %1661 = vmatprep.subr.bf16.mxu0 %v1259
  %1662 = vmatpush1.bf16.msra.mxu0 %v1258
  %1663 = vmatprep.subr.bf16.mxu0 0
  %1664 = vmatpush1.bf16.msra.mxu0 0
  %1665 = vmatprep.subr.bf16.mxu0 0
  %1666 = vmatpush1.bf16.msra.mxu0 0
  %1667 = vmatprep.subr.bf16.mxu0 0
  %1668 = vmatpush1.bf16.msra.mxu0 0
  %1669 = vmatprep.subr.bf16.mxu0 0
  %1670 = vmatpush1.bf16.msra.mxu0 0
  %1671 = vmatprep.subr.bf16.mxu0 0
  %1672 = vmatpush1.bf16.msra.mxu0 0
  %1673 = vmatprep.subr.bf16.mxu0 0
  %1674 = vmatpush1.bf16.msra.mxu0 0
  %1675 = vmatprep.subr.bf16.mxu0 0
  %1676 = vmatpush1.bf16.msra.mxu0 0
  %1677 = vmatprep.subr.bf16.mxu0 0
  %1678 = vmatpush1.bf16.msra.mxu0 0
  %1679 = vmatprep.mubr.bf16.mxu0 0
  %1680 = vmatmul.mubr.bf16.gmra.mrb[0].mxu0 %v1646
  %v1681 = vpop.f32.mrb[0].mxu0
  %v1682 = vadd.f32 0.0, %v1681
  %v1683 = vpop.f32.mrb[0].mxu0
  %v1684 = vadd.f32 0.0, %v1683
  %v1685 = vpop.f32.mrb[0].mxu0
  %v1686 = vpop.f32.mrb[0].mxu0
  %1687 = vdwg.mxu0
  %1688 = vmatprep.subr.bf16.mxu0 %v1233
  %1689 = vmatpush1.bf16.msra.mxu0 %v1232
  %1690 = vmatprep.subr.bf16.mxu0 %v1237
  %1691 = vmatpush1.bf16.msra.mxu0 %v1236
  %1692 = vmatprep.subr.bf16.mxu0 %v1241
  %1693 = vmatpush1.bf16.msra.mxu0 %v1240
  %1694 = vmatprep.subr.bf16.mxu0 %v1245
  %1695 = vmatpush1.bf16.msra.mxu0 %v1244
  %1696 = vmatprep.subr.bf16.mxu0 %v1249
  %1697 = vmatpush1.bf16.msra.mxu0 %v1248
  %1698 = vmatprep.subr.bf16.mxu0 %v1253
  %1699 = vmatpush1.bf16.msra.mxu0 %v1252
  %1700 = vmatprep.subr.bf16.mxu0 %v1257
  %1701 = vmatpush1.bf16.msra.mxu0 %v1256
  %1702 = vmatprep.subr.bf16.mxu0 %v1261
  %1703 = vmatpush1.bf16.msra.mxu0 %v1260
  %1704 = vmatprep.subr.bf16.mxu0 0
  %1705 = vmatpush1.bf16.msra.mxu0 0
  %1706 = vmatprep.subr.bf16.mxu0 0
  %1707 = vmatpush1.bf16.msra.mxu0 0
  %1708 = vmatprep.subr.bf16.mxu0 0
  %1709 = vmatpush1.bf16.msra.mxu0 0
  %1710 = vmatprep.subr.bf16.mxu0 0
  %1711 = vmatpush1.bf16.msra.mxu0 0
  %1712 = vmatprep.subr.bf16.mxu0 0
  %1713 = vmatpush1.bf16.msra.mxu0 0
  %1714 = vmatprep.subr.bf16.mxu0 0
  %1715 = vmatpush1.bf16.msra.mxu0 0
  %1716 = vmatprep.subr.bf16.mxu0 0
  %1717 = vmatpush1.bf16.msra.mxu0 0
  %1718 = vmatprep.subr.bf16.mxu0 0
  %1719 = vmatpush1.bf16.msra.mxu0 0
  %1720 = vmatprep.mubr.bf16.mxu0 0
  %1721 = vmatmul.mubr.bf16.gmra.mrb[0].mxu0 %v1646
  %v1722 = vpop.f32.mrb[0].mxu0
  %v1723 = vadd.f32 0.0, %v1722
  %v1724 = vpop.f32.mrb[0].mxu0
  %v1725 = vadd.f32 0.0, %v1724
  %v1726 = vpop.f32.mrb[0].mxu0
  %v1727 = vpop.f32.mrb[0].mxu0
  %1728 = vdwg.mxu0
  %v1729 = vadd.f32 %v1642, %v1682
  %v1730 = vadd.f32 %v1643, %v1684
  %v1731 = vadd.f32 %v1644, %v1723
  %v1732 = vadd.f32 %v1645, %v1725
  %v1733 = vxor.u32 %v1729, 2147483648
  %v1734 = vmul.f32 %v1733, 1.442695
  %v1735 = vpow.pop %v1734
  %v1736 = vadd.f32 %v1735, 1.0
  %v1737 = vrcp.pop %v1736
  %v1738 = vmul.f32 1.0, %v1737
  %v1739 = vxor.u32 %v1730, 2147483648
  %v1740 = vmul.f32 %v1739, 1.442695
  %v1741 = vpow.pop %v1740
  %v1742 = vadd.f32 %v1741, 1.0
  %v1743 = vrcp.pop %v1742
  %v1744 = vmul.f32 1.0, %v1743
  %v1745 = vtanh.pop %v1731
  %v1746 = vxor.u32 %v1732, 2147483648
  %v1747 = vmul.f32 %v1746, 1.442695
  %v1748 = vpow.pop %v1747
  %v1749 = vadd.f32 %v1748, 1.0
  %v1750 = vrcp.pop %v1749
  %v1751 = vmul.f32 1.0, %v1750
  %v1752 = vmul.f32 %v1744, %v1636
  %v1753 = vmul.f32 %v1738, %v1745
  %v1754 = vadd.f32 %v1752, %v1753
  %v1755 = vtanh.pop %v1754
  %v1756 = vmul.f32 %v1751, %v1755
  %s1757 = scalar_lea.vmem [#allocation2], 24
  %1758 = vst [vmem:[%s1757] sm:$0xff] %v1756
  %s1759 = scalar_lea.vmem [#allocation3], 128
  %v1760 = vld [vmem:[%s1759] sm:$0xff]
  %v1761 = vld [vmem:[%s1759 + $0x8] sm:$0xff]
  %v1762 = vld [vmem:[%s1759 + $0x10] sm:$0xff]
  %v1763 = vld [vmem:[%s1759 + $0x18] sm:$0xff]
  %v1764 = vpack.c.bf16 %v1756, %v1756
  %1765 = vmatprep.subr.bf16.mxu0 %v1231
  %1766 = vmatpush1.bf16.msra.mxu0 %v1230
  %1767 = vmatprep.subr.bf16.mxu0 %v1235
  %1768 = vmatpush1.bf16.msra.mxu0 %v1234
  %1769 = vmatprep.subr.bf16.mxu0 %v1239
  %1770 = vmatpush1.bf16.msra.mxu0 %v1238
  %1771 = vmatprep.subr.bf16.mxu0 %v1243
  %1772 = vmatpush1.bf16.msra.mxu0 %v1242
  %1773 = vmatprep.subr.bf16.mxu0 %v1247
  %1774 = vmatpush1.bf16.msra.mxu0 %v1246
  %1775 = vmatprep.subr.bf16.mxu0 %v1251
  %1776 = vmatpush1.bf16.msra.mxu0 %v1250
  %1777 = vmatprep.subr.bf16.mxu0 %v1255
  %1778 = vmatpush1.bf16.msra.mxu0 %v1254
  %1779 = vmatprep.subr.bf16.mxu0 %v1259
  %1780 = vmatpush1.bf16.msra.mxu0 %v1258
  %1781 = vmatprep.subr.bf16.mxu0 0
  %1782 = vmatpush1.bf16.msra.mxu0 0
  %1783 = vmatprep.subr.bf16.mxu0 0
  %1784 = vmatpush1.bf16.msra.mxu0 0
  %1785 = vmatprep.subr.bf16.mxu0 0
  %1786 = vmatpush1.bf16.msra.mxu0 0
  %1787 = vmatprep.subr.bf16.mxu0 0
  %1788 = vmatpush1.bf16.msra.mxu0 0
  %1789 = vmatprep.subr.bf16.mxu0 0
  %1790 = vmatpush1.bf16.msra.mxu0 0
  %1791 = vmatprep.subr.bf16.mxu0 0
  %1792 = vmatpush1.bf16.msra.mxu0 0
  %1793 = vmatprep.subr.bf16.mxu0 0
  %1794 = vmatpush1.bf16.msra.mxu0 0
  %1795 = vmatprep.subr.bf16.mxu0 0
  %1796 = vmatpush1.bf16.msra.mxu0 0
  %1797 = vmatprep.mubr.bf16.mxu0 0
  %1798 = vmatmul.mubr.bf16.gmra.mrb[0].mxu0 %v1764
  %v1799 = vpop.f32.mrb[0].mxu0
  %v1800 = vadd.f32 0.0, %v1799
  %v1801 = vpop.f32.mrb[0].mxu0
  %v1802 = vadd.f32 0.0, %v1801
  %v1803 = vpop.f32.mrb[0].mxu0
  %v1804 = vpop.f32.mrb[0].mxu0
  %1805 = vdwg.mxu0
  %1806 = vmatprep.subr.bf16.mxu0 %v1233
  %1807 = vmatpush1.bf16.msra.mxu0 %v1232
  %1808 = vmatprep.subr.bf16.mxu0 %v1237
  %1809 = vmatpush1.bf16.msra.mxu0 %v1236
  %1810 = vmatprep.subr.bf16.mxu0 %v1241
  %1811 = vmatpush1.bf16.msra.mxu0 %v1240
  %1812 = vmatprep.subr.bf16.mxu0 %v1245
  %1813 = vmatpush1.bf16.msra.mxu0 %v1244
  %1814 = vmatprep.subr.bf16.mxu0 %v1249
  %1815 = vmatpush1.bf16.msra.mxu0 %v1248
  %1816 = vmatprep.subr.bf16.mxu0 %v1253
  %1817 = vmatpush1.bf16.msra.mxu0 %v1252
  %1818 = vmatprep.subr.bf16.mxu0 %v1257
  %1819 = vmatpush1.bf16.msra.mxu0 %v1256
  %1820 = vmatprep.subr.bf16.mxu0 %v1261
  %1821 = vmatpush1.bf16.msra.mxu0 %v1260
  %1822 = vmatprep.subr.bf16.mxu0 0
  %1823 = vmatpush1.bf16.msra.mxu0 0
  %1824 = vmatprep.subr.bf16.mxu0 0
  %1825 = vmatpush1.bf16.msra.mxu0 0
  %1826 = vmatprep.subr.bf16.mxu0 0
  %1827 = vmatpush1.bf16.msra.mxu0 0
  %1828 = vmatprep.subr.bf16.mxu0 0
  %1829 = vmatpush1.bf16.msra.mxu0 0
  %1830 = vmatprep.subr.bf16.mxu0 0
  %1831 = vmatpush1.bf16.msra.mxu0 0
  %1832 = vmatprep.subr.bf16.mxu0 0
  %1833 = vmatpush1.bf16.msra.mxu0 0
  %1834 = vmatprep.subr.bf16.mxu0 0
  %1835 = vmatpush1.bf16.msra.mxu0 0
  %1836 = vmatprep.subr.bf16.mxu0 0
  %1837 = vmatpush1.bf16.msra.mxu0 0
  %1838 = vmatprep.mubr.bf16.mxu0 0
  %1839 = vmatmul.mubr.bf16.gmra.mrb[0].mxu0 %v1764
  %v1840 = vpop.f32.mrb[0].mxu0
  %v1841 = vadd.f32 0.0, %v1840
  %v1842 = vpop.f32.mrb[0].mxu0
  %v1843 = vadd.f32 0.0, %v1842
  %v1844 = vpop.f32.mrb[0].mxu0
  %v1845 = vpop.f32.mrb[0].mxu0
  %1846 = vdwg.mxu0
  %v1847 = vadd.f32 %v1760, %v1800
  %v1848 = vadd.f32 %v1761, %v1802
  %v1849 = vadd.f32 %v1762, %v1841
  %v1850 = vadd.f32 %v1763, %v1843
  %v1851 = vxor.u32 %v1847, 2147483648
  %v1852 = vmul.f32 %v1851, 1.442695
  %v1853 = vpow.pop %v1852
  %v1854 = vadd.f32 %v1853, 1.0
  %v1855 = vrcp.pop %v1854
  %v1856 = vmul.f32 1.0, %v1855
  %v1857 = vxor.u32 %v1848, 2147483648
  %v1858 = vmul.f32 %v1857, 1.442695
  %v1859 = vpow.pop %v1858
  %v1860 = vadd.f32 %v1859, 1.0
  %v1861 = vrcp.pop %v1860
  %v1862 = vmul.f32 1.0, %v1861
  %v1863 = vtanh.pop %v1849
  %v1864 = vxor.u32 %v1850, 2147483648
  %v1865 = vmul.f32 %v1864, 1.442695
  %v1866 = vpow.pop %v1865
  %v1867 = vadd.f32 %v1866, 1.0
  %v1868 = vrcp.pop %v1867
  %v1869 = vmul.f32 1.0, %v1868
  %v1870 = vmul.f32 %v1862, %v1754
  %v1871 = vmul.f32 %v1856, %v1863
  %v1872 = vadd.f32 %v1870, %v1871
  %v1873 = vtanh.pop %v1872
  %v1874 = vmul.f32 %v1869, %v1873
  %s1875 = scalar_lea.vmem [#allocation2], 32
  %1876 = vst [vmem:[%s1875] sm:$0xff] %v1874
  %s1877 = scalar_lea.vmem [#allocation3], 160
  %v1878 = vld [vmem:[%s1877] sm:$0xff]
  %v1879 = vld [vmem:[%s1877 + $0x8] sm:$0xff]
  %v1880 = vld [vmem:[%s1877 + $0x10] sm:$0xff]
  %v1881 = vld [vmem:[%s1877 + $0x18] sm:$0xff]
  %v1882 = vpack.c.bf16 %v1874, %v1874
  %1883 = vmatprep.subr.bf16.mxu0 %v1231
  %1884 = vmatpush1.bf16.msra.mxu0 %v1230
  %1885 = vmatprep.subr.bf16.mxu0 %v1235
  %1886 = vmatpush1.bf16.msra.mxu0 %v1234
  %1887 = vmatprep.subr.bf16.mxu0 %v1239
  %1888 = vmatpush1.bf16.msra.mxu0 %v1238
  %1889 = vmatprep.subr.bf16.mxu0 %v1243
  %1890 = vmatpush1.bf16.msra.mxu0 %v1242
  %1891 = vmatprep.subr.bf16.mxu0 %v1247
  %1892 = vmatpush1.bf16.msra.mxu0 %v1246
  %1893 = vmatprep.subr.bf16.mxu0 %v1251
  %1894 = vmatpush1.bf16.msra.mxu0 %v1250
  %1895 = vmatprep.subr.bf16.mxu0 %v1255
  %1896 = vmatpush1.bf16.msra.mxu0 %v1254
  %1897 = vmatprep.subr.bf16.mxu0 %v1259
  %1898 = vmatpush1.bf16.msra.mxu0 %v1258
  %1899 = vmatprep.subr.bf16.mxu0 0
  %1900 = vmatpush1.bf16.msra.mxu0 0
  %1901 = vmatprep.subr.bf16.mxu0 0
  %1902 = vmatpush1.bf16.msra.mxu0 0
  %1903 = vmatprep.subr.bf16.mxu0 0
  %1904 = vmatpush1.bf16.msra.mxu0 0
  %1905 = vmatprep.subr.bf16.mxu0 0
  %1906 = vmatpush1.bf16.msra.mxu0 0
  %1907 = vmatprep.subr.bf16.mxu0 0
  %1908 = vmatpush1.bf16.msra.mxu0 0
  %1909 = vmatprep.subr.bf16.mxu0 0
  %1910 = vmatpush1.bf16.msra.mxu0 0
  %1911 = vmatprep.subr.bf16.mxu0 0
  %1912 = vmatpush1.bf16.msra.mxu0 0
  %1913 = vmatprep.subr.bf16.mxu0 0
  %1914 = vmatpush1.bf16.msra.mxu0 0
  %1915 = vmatprep.mubr.bf16.mxu0 0
  %1916 = vmatmul.mubr.bf16.gmra.mrb[0].mxu0 %v1882
  %v1917 = vpop.f32.mrb[0].mxu0
  %v1918 = vadd.f32 0.0, %v1917
  %v1919 = vpop.f32.mrb[0].mxu0
  %v1920 = vadd.f32 0.0, %v1919
  %v1921 = vpop.f32.mrb[0].mxu0
  %v1922 = vpop.f32.mrb[0].mxu0
  %1923 = vdwg.mxu0
  %1924 = vmatprep.subr.bf16.mxu0 %v1233
  %1925 = vmatpush1.bf16.msra.mxu0 %v1232
  %1926 = vmatprep.subr.bf16.mxu0 %v1237
  %1927 = vmatpush1.bf16.msra.mxu0 %v1236
  %1928 = vmatprep.subr.bf16.mxu0 %v1241
  %1929 = vmatpush1.bf16.msra.mxu0 %v1240
  %1930 = vmatprep.subr.bf16.mxu0 %v1245
  %1931 = vmatpush1.bf16.msra.mxu0 %v1244
  %1932 = vmatprep.subr.bf16.mxu0 %v1249
  %1933 = vmatpush1.bf16.msra.mxu0 %v1248
  %1934 = vmatprep.subr.bf16.mxu0 %v1253
  %1935 = vmatpush1.bf16.msra.mxu0 %v1252
  %1936 = vmatprep.subr.bf16.mxu0 %v1257
  %1937 = vmatpush1.bf16.msra.mxu0 %v1256
  %1938 = vmatprep.subr.bf16.mxu0 %v1261
  %1939 = vmatpush1.bf16.msra.mxu0 %v1260
  %1940 = vmatprep.subr.bf16.mxu0 0
  %1941 = vmatpush1.bf16.msra.mxu0 0
  %1942 = vmatprep.subr.bf16.mxu0 0
  %1943 = vmatpush1.bf16.msra.mxu0 0
  %1944 = vmatprep.subr.bf16.mxu0 0
  %1945 = vmatpush1.bf16.msra.mxu0 0
  %1946 = vmatprep.subr.bf16.mxu0 0
  %1947 = vmatpush1.bf16.msra.mxu0 0
  %1948 = vmatprep.subr.bf16.mxu0 0
  %1949 = vmatpush1.bf16.msra.mxu0 0
  %1950 = vmatprep.subr.bf16.mxu0 0
  %1951 = vmatpush1.bf16.msra.mxu0 0
  %1952 = vmatprep.subr.bf16.mxu0 0
  %1953 = vmatpush1.bf16.msra.mxu0 0
  %1954 = vmatprep.subr.bf16.mxu0 0
  %1955 = vmatpush1.bf16.msra.mxu0 0
  %1956 = vmatprep.mubr.bf16.mxu0 0
  %1957 = vmatmul.mubr.bf16.gmra.mrb[0].mxu0 %v1882
  %v1958 = vpop.f32.mrb[0].mxu0
  %v1959 = vadd.f32 0.0, %v1958
  %v1960 = vpop.f32.mrb[0].mxu0
  %v1961 = vadd.f32 0.0, %v1960
  %v1962 = vpop.f32.mrb[0].mxu0
  %v1963 = vpop.f32.mrb[0].mxu0
  %1964 = vdwg.mxu0
  %v1965 = vadd.f32 %v1878, %v1918
  %v1966 = vadd.f32 %v1879, %v1920
  %v1967 = vadd.f32 %v1880, %v1959
  %v1968 = vadd.f32 %v1881, %v1961
  %v1969 = vxor.u32 %v1965, 2147483648
  %v1970 = vmul.f32 %v1969, 1.442695
  %v1971 = vpow.pop %v1970
  %v1972 = vadd.f32 %v1971, 1.0
  %v1973 = vrcp.pop %v1972
  %v1974 = vmul.f32 1.0, %v1973
  %v1975 = vxor.u32 %v1966, 2147483648
  %v1976 = vmul.f32 %v1975, 1.442695
  %v1977 = vpow.pop %v1976
  %v1978 = vadd.f32 %v1977, 1.0
  %v1979 = vrcp.pop %v1978
  %v1980 = vmul.f32 1.0, %v1979
  %v1981 = vtanh.pop %v1967
  %v1982 = vxor.u32 %v1968, 2147483648
  %v1983 = vmul.f32 %v1982, 1.442695
  %v1984 = vpow.pop %v1983
  %v1985 = vadd.f32 %v1984, 1.0
  %v1986 = vrcp.pop %v1985
  %v1987 = vmul.f32 1.0, %v1986
  %v1988 = vmul.f32 %v1980, %v1872
  %v1989 = vmul.f32 %v1974, %v1981
  %v1990 = vadd.f32 %v1988, %v1989
  %v1991 = vtanh.pop %v1990
  %v1992 = vmul.f32 %v1987, %v1991
  %s1993 = scalar_lea.vmem [#allocation2], 40
  %1994 = vst [vmem:[%s1993] sm:$0xff] %v1992
  %v1995 = vld [vmem:[#allocation2] sm:$0xff]
  %v1996 = vld [vmem:[#allocation2 + $0x8] sm:$0xff]
  %v1997 = vld [vmem:[#allocation2 + $0x10] sm:$0xff]
  %v1998 = vld [vmem:[#allocation2 + $0x18] sm:$0xff]
  %v1999 = vld [vmem:[#allocation2 + $0x20] sm:$0xff]
  %v2000 = vld [vmem:[#allocation2 + $0x28] sm:$0xff]
  %v2001 = vpack.c.bf16 %v1996, %v1995
  %v2002 = vpack.c.bf16 %v1998, %v1997
  %v2003 = vpack.c.bf16 %v2000, %v1999
  %s2004 = scalar_lea.vmem %s3, 256
  %v2005 = vld [vmem:[%s2004] sm:$0xff]
  %v2006 = vld [vmem:[%s2004 + $0x8] sm:$0xff]
  %v2007 = vld [vmem:[%s2004 + $0x10] sm:$0xff]
  %v2008 = vld [vmem:[%s2004 + $0x18] sm:$0xff]
  %v2009 = vld [vmem:[%s2004 + $0x20] sm:$0xff]
  %v2010 = vld [vmem:[%s2004 + $0x28] sm:$0xff]
  %v2011 = vld [vmem:[%s2004 + $0x30] sm:$0xff]
  %v2012 = vld [vmem:[%s2004 + $0x38] sm:$0xff]
  %v2013 = vld [vmem:[%s2004 + $0x40] sm:$0xff]
  %v2014 = vld [vmem:[%s2004 + $0x48] sm:$0xff]
  %v2015 = vld [vmem:[%s2004 + $0x50] sm:$0xff]
  %v2016 = vld [vmem:[%s2004 + $0x58] sm:$0xff]
  %v2017 = vld [vmem:[%s2004 + $0x60] sm:$0xff]
  %v2018 = vld [vmem:[%s2004 + $0x68] sm:$0xff]
  %v2019 = vld [vmem:[%s2004 + $0x70] sm:$0xff]
  %v2020 = vld [vmem:[%s2004 + $0x78] sm:$0xff]
  %v2021 = vld [vmem:[%s2004 + $0x80] sm:$0xff]
  %v2022 = vld [vmem:[%s2004 + $0x88] sm:$0xff]
  %v2023 = vld [vmem:[%s2004 + $0x90] sm:$0xff]
  %v2024 = vld [vmem:[%s2004 + $0x98] sm:$0xff]
  %v2025 = vld [vmem:[%s2004 + $0xa0] sm:$0xff]
  %v2026 = vld [vmem:[%s2004 + $0xa8] sm:$0xff]
  %v2027 = vld [vmem:[%s2004 + $0xb0] sm:$0xff]
  %v2028 = vld [vmem:[%s2004 + $0xb8] sm:$0xff]
  %v2029 = vld [vmem:[%s2004 + $0xc0] sm:$0xff]
  %v2030 = vld [vmem:[%s2004 + $0xc8] sm:$0xff]
  %v2031 = vld [vmem:[%s2004 + $0xd0] sm:$0xff]
  %v2032 = vld [vmem:[%s2004 + $0xd8] sm:$0xff]
  %v2033 = vld [vmem:[%s2004 + $0xe0] sm:$0xff]
  %v2034 = vld [vmem:[%s2004 + $0xe8] sm:$0xff]
  %v2035 = vld [vmem:[%s2004 + $0xf0] sm:$0xff]
  %v2036 = vld [vmem:[%s2004 + $0xf8] sm:$0xff]
  %s2037 = scalar_lea.vmem %s5, 4
  %v2038 = vld [vmem:[%s2037] sm:$0xf]
  %v2040 = vlaneseq
  %v2041 = vshrl.u32 %v2040, 7
  %v2042 = vsub.s32 0, %v2041
  %v2043 = vrot.slane %v2038, %v2042
  %v2044 = vlaneseq
  %v2045 = vshrl.u32 %v2044, 7
  %v2046 = vsub.s32 1, %v2045
  %v2047 = vrot.slane %v2038, %v2046
  %v2048 = vlaneseq
  %v2049 = vshrl.u32 %v2048, 7
  %v2050 = vsub.s32 2, %v2049
  %v2051 = vrot.slane %v2038, %v2050
  %v2052 = vlaneseq
  %v2053 = vshrl.u32 %v2052, 7
  %v2054 = vsub.s32 3, %v2053
  %v2055 = vrot.slane %v2038, %v2054
  %v2092 = vunpack.c.l.b16 %v2005
  %v2093 = vunpack.c.h.b16 %v2005
  %v2094 = vunpack.c.l.b16 %v2006
  %v2095 = vunpack.c.h.b16 %v2006
  %v2096 = vunpack.c.l.b16 %v2007
  %v2097 = vunpack.c.h.b16 %v2007
  %v2098 = vunpack.c.l.b16 %v2008
  %v2099 = vunpack.c.h.b16 %v2008
  %v2100 = vunpack.c.l.b16 %v2009
  %v2101 = vunpack.c.h.b16 %v2009
  %v2102 = vunpack.c.l.b16 %v2010
  %v2103 = vunpack.c.h.b16 %v2010
  %v2104 = vunpack.c.l.b16 %v2011
  %v2105 = vunpack.c.h.b16 %v2011
  %v2106 = vunpack.c.l.b16 %v2012
  %v2107 = vunpack.c.h.b16 %v2012
  %v2108 = vunpack.c.l.b16 %v2013
  %v2109 = vunpack.c.h.b16 %v2013
  %v2110 = vunpack.c.l.b16 %v2014
  %v2111 = vunpack.c.h.b16 %v2014
  %v2112 = vunpack.c.l.b16 %v2015
  %v2113 = vunpack.c.h.b16 %v2015
  %v2114 = vunpack.c.l.b16 %v2016
  %v2115 = vunpack.c.h.b16 %v2016
  %v2116 = vunpack.c.l.b16 %v2017
  %v2117 = vunpack.c.h.b16 %v2017
  %v2118 = vunpack.c.l.b16 %v2018
  %v2119 = vunpack.c.h.b16 %v2018
  %v2120 = vunpack.c.l.b16 %v2019
  %v2121 = vunpack.c.h.b16 %v2019
  %v2122 = vunpack.c.l.b16 %v2020
  %v2123 = vunpack.c.h.b16 %v2020
  %v2124 = vunpack.c.l.b16 %v2021
  %v2125 = vunpack.c.h.b16 %v2021
  %v2126 = vunpack.c.l.b16 %v2022
  %v2127 = vunpack.c.h.b16 %v2022
  %v2128 = vunpack.c.l.b16 %v2023
  %v2129 = vunpack.c.h.b16 %v2023
  %v2130 = vunpack.c.l.b16 %v2024
  %v2131 = vunpack.c.h.b16 %v2024
  %v2132 = vunpack.c.l.b16 %v2025
  %v2133 = vunpack.c.h.b16 %v2025
  %v2134 = vunpack.c.l.b16 %v2026
  %v2135 = vunpack.c.h.b16 %v2026
  %v2136 = vunpack.c.l.b16 %v2027
  %v2137 = vunpack.c.h.b16 %v2027
  %v2138 = vunpack.c.l.b16 %v2028
  %v2139 = vunpack.c.h.b16 %v2028
  %v2140 = vunpack.c.l.b16 %v2029
  %v2141 = vunpack.c.h.b16 %v2029
  %v2142 = vunpack.c.l.b16 %v2030
  %v2143 = vunpack.c.h.b16 %v2030
  %v2144 = vunpack.c.l.b16 %v2031
  %v2145 = vunpack.c.h.b16 %v2031
  %v2146 = vunpack.c.l.b16 %v2032
  %v2147 = vunpack.c.h.b16 %v2032
  %v2148 = vunpack.c.l.b16 %v2033
  %v2149 = vunpack.c.h.b16 %v2033
  %v2150 = vunpack.c.l.b16 %v2034
  %v2151 = vunpack.c.h.b16 %v2034
  %v2152 = vunpack.c.l.b16 %v2035
  %v2153 = vunpack.c.h.b16 %v2035
  %v2154 = vunpack.c.l.b16 %v2036
  %v2155 = vunpack.c.h.b16 %v2036
  %v2156 = vpack.c.b16 %v2096, %v2092
  %v2157 = vpack.c.b16 %v2097, %v2093
  %v2158 = vpack.c.b16 %v2098, %v2094
  %v2159 = vpack.c.b16 %v2099, %v2095
  %v2160 = vpack.c.b16 %v2104, %v2100
  %v2161 = vpack.c.b16 %v2105, %v2101
  %v2162 = vpack.c.b16 %v2106, %v2102
  %v2163 = vpack.c.b16 %v2107, %v2103
  %v2164 = vpack.c.b16 %v2112, %v2108
  %v2165 = vpack.c.b16 %v2113, %v2109
  %v2166 = vpack.c.b16 %v2114, %v2110
  %v2167 = vpack.c.b16 %v2115, %v2111
  %v2168 = vpack.c.b16 %v2120, %v2116
  %v2169 = vpack.c.b16 %v2121, %v2117
  %v2170 = vpack.c.b16 %v2122, %v2118
  %v2171 = vpack.c.b16 %v2123, %v2119
  %v2172 = vpack.c.b16 %v2128, %v2124
  %v2173 = vpack.c.b16 %v2129, %v2125
  %v2174 = vpack.c.b16 %v2130, %v2126
  %v2175 = vpack.c.b16 %v2131, %v2127
  %v2176 = vpack.c.b16 %v2136, %v2132
  %v2177 = vpack.c.b16 %v2137, %v2133
  %v2178 = vpack.c.b16 %v2138, %v2134
  %v2179 = vpack.c.b16 %v2139, %v2135
  %v2180 = vpack.c.b16 %v2144, %v2140
  %v2181 = vpack.c.b16 %v2145, %v2141
  %v2182 = vpack.c.b16 %v2146, %v2142
  %v2183 = vpack.c.b16 %v2147, %v2143
  %v2184 = vpack.c.b16 %v2152, %v2148
  %v2185 = vpack.c.b16 %v2153, %v2149
  %v2186 = vpack.c.b16 %v2154, %v2150
  %v2187 = vpack.c.b16 %v2155, %v2151
  %2220 = vmatprep.subr.bf16.mxu0 %v2157
  %2221 = vmatpush1.bf16.msra.mxu0 %v2156
  %2222 = vmatprep.subr.bf16.mxu0 %v2161
  %2223 = vmatpush1.bf16.msra.mxu0 %v2160
  %2224 = vmatprep.subr.bf16.mxu0 %v2165
  %2225 = vmatpush1.bf16.msra.mxu0 %v2164
  %2226 = vmatprep.subr.bf16.mxu0 %v2169
  %2227 = vmatpush1.bf16.msra.mxu0 %v2168
  %2228 = vmatprep.subr.bf16.mxu0 %v2173
  %2229 = vmatpush1.bf16.msra.mxu0 %v2172
  %2230 = vmatprep.subr.bf16.mxu0 %v2177
  %2231 = vmatpush1.bf16.msra.mxu0 %v2176
  %2232 = vmatprep.subr.bf16.mxu0 %v2181
  %2233 = vmatpush1.bf16.msra.mxu0 %v2180
  %2234 = vmatprep.subr.bf16.mxu0 %v2185
  %2235 = vmatpush1.bf16.msra.mxu0 %v2184
  %2236 = vmatprep.subr.bf16.mxu0 0
  %2237 = vmatpush1.bf16.msra.mxu0 0
  %2238 = vmatprep.subr.bf16.mxu0 0
  %2239 = vmatpush1.bf16.msra.mxu0 0
  %2240 = vmatprep.subr.bf16.mxu0 0
  %2241 = vmatpush1.bf16.msra.mxu0 0
  %2242 = vmatprep.subr.bf16.mxu0 0
  %2243 = vmatpush1.bf16.msra.mxu0 0
  %2244 = vmatprep.subr.bf16.mxu0 0
  %2245 = vmatpush1.bf16.msra.mxu0 0
  %2246 = vmatprep.subr.bf16.mxu0 0
  %2247 = vmatpush1.bf16.msra.mxu0 0
  %2248 = vmatprep.subr.bf16.mxu0 0
  %2249 = vmatpush1.bf16.msra.mxu0 0
  %2250 = vmatprep.subr.bf16.mxu0 0
  %2251 = vmatpush1.bf16.msra.mxu0 0
  %2252 = vmatprep.mubr.bf16.mxu0 0
  %2253 = vmatmul.mubr.bf16.gmra.mrb[0].mxu0 %v2001
  %v2254 = vpop.f32.mrb[0].mxu0
  %v2255 = vadd.f32 %v2043, %v2254
  %v2256 = vpop.f32.mrb[0].mxu0
  %v2257 = vadd.f32 %v2047, %v2256
  %v2258 = vpop.f32.mrb[0].mxu0
  %v2259 = vadd.f32 %v2043, %v2258
  %v2260 = vpop.f32.mrb[0].mxu0
  %v2261 = vadd.f32 %v2047, %v2260
  %2262 = vmatprep.mubr.bf16.mxu0 0
  %2263 = vmatmul.mubr.bf16.gmra.mrb[0].mxu0 %v2002
  %v2264 = vpop.f32.mrb[0].mxu0
  %v2265 = vadd.f32 %v2043, %v2264
  %v2266 = vpop.f32.mrb[0].mxu0
  %v2267 = vadd.f32 %v2047, %v2266
  %v2268 = vpop.f32.mrb[0].mxu0
  %v2269 = vadd.f32 %v2043, %v2268
  %v2270 = vpop.f32.mrb[0].mxu0
  %v2271 = vadd.f32 %v2047, %v2270
  %2272 = vmatprep.mubr.bf16.mxu0 0
  %2273 = vmatmul.mubr.bf16.gmra.mrb[0].mxu0 %v2003
  %v2274 = vpop.f32.mrb[0].mxu0
  %v2275 = vadd.f32 %v2043, %v2274
  %v2276 = vpop.f32.mrb[0].mxu0
  %v2277 = vadd.f32 %v2047, %v2276
  %v2278 = vpop.f32.mrb[0].mxu0
  %v2279 = vadd.f32 %v2043, %v2278
  %v2280 = vpop.f32.mrb[0].mxu0
  %v2281 = vadd.f32 %v2047, %v2280
  %2282 = vdwg.mxu0
  %2283 = vmatprep.subr.bf16.mxu0 %v2159
  %2284 = vmatpush1.bf16.msra.mxu0 %v2158
  %2285 = vmatprep.subr.bf16.mxu0 %v2163
  %2286 = vmatpush1.bf16.msra.mxu0 %v2162
  %2287 = vmatprep.subr.bf16.mxu0 %v2167
  %2288 = vmatpush1.bf16.msra.mxu0 %v2166
  %2289 = vmatprep.subr.bf16.mxu0 %v2171
  %2290 = vmatpush1.bf16.msra.mxu0 %v2170
  %2291 = vmatprep.subr.bf16.mxu0 %v2175
  %2292 = vmatpush1.bf16.msra.mxu0 %v2174
  %2293 = vmatprep.subr.bf16.mxu0 %v2179
  %2294 = vmatpush1.bf16.msra.mxu0 %v2178
  %2295 = vmatprep.subr.bf16.mxu0 %v2183
  %2296 = vmatpush1.bf16.msra.mxu0 %v2182
  %2297 = vmatprep.subr.bf16.mxu0 %v2187
  %2298 = vmatpush1.bf16.msra.mxu0 %v2186
  %2299 = vmatprep.subr.bf16.mxu0 0
  %2300 = vmatpush1.bf16.msra.mxu0 0
  %2301 = vmatprep.subr.bf16.mxu0 0
  %2302 = vmatpush1.bf16.msra.mxu0 0
  %2303 = vmatprep.subr.bf16.mxu0 0
  %2304 = vmatpush1.bf16.msra.mxu0 0
  %2305 = vmatprep.subr.bf16.mxu0 0
  %2306 = vmatpush1.bf16.msra.mxu0 0
  %2307 = vmatprep.subr.bf16.mxu0 0
  %2308 = vmatpush1.bf16.msra.mxu0 0
  %2309 = vmatprep.subr.bf16.mxu0 0
  %2310 = vmatpush1.bf16.msra.mxu0 0
  %2311 = vmatprep.subr.bf16.mxu0 0
  %2312 = vmatpush1.bf16.msra.mxu0 0
  %2313 = vmatprep.subr.bf16.mxu0 0
  %2314 = vmatpush1.bf16.msra.mxu0 0
  %2315 = vmatprep.mubr.bf16.mxu0 0
  %2316 = vmatmul.mubr.bf16.gmra.mrb[0].mxu0 %v2001
  %v2317 = vpop.f32.mrb[0].mxu0
  %v2318 = vadd.f32 %v2051, %v2317
  %v2319 = vpop.f32.mrb[0].mxu0
  %v2320 = vadd.f32 %v2055, %v2319
  %v2321 = vpop.f32.mrb[0].mxu0
  %v2322 = vadd.f32 %v2051, %v2321
  %v2323 = vpop.f32.mrb[0].mxu0
  %v2324 = vadd.f32 %v2055, %v2323
  %2325 = vmatprep.mubr.bf16.mxu0 0
  %2326 = vmatmul.mubr.bf16.gmra.mrb[0].mxu0 %v2002
  %v2327 = vpop.f32.mrb[0].mxu0
  %v2328 = vadd.f32 %v2051, %v2327
  %v2329 = vpop.f32.mrb[0].mxu0
  %v2330 = vadd.f32 %v2055, %v2329
  %v2331 = vpop.f32.mrb[0].mxu0
  %v2332 = vadd.f32 %v2051, %v2331
  %v2333 = vpop.f32.mrb[0].mxu0
  %v2334 = vadd.f32 %v2055, %v2333
  %2335 = vmatprep.mubr.bf16.mxu0 0
  %2336 = vmatmul.mubr.bf16.gmra.mrb[0].mxu0 %v2003
  %v2337 = vpop.f32.mrb[0].mxu0
  %v2338 = vadd.f32 %v2051, %v2337
  %v2339 = vpop.f32.mrb[0].mxu0
  %v2340 = vadd.f32 %v2055, %v2339
  %v2341 = vpop.f32.mrb[0].mxu0
  %v2342 = vadd.f32 %v2051, %v2341
  %v2343 = vpop.f32.mrb[0].mxu0
  %v2344 = vadd.f32 %v2055, %v2343
  %2345 = vdwg.mxu0
  %2346 = vst [vmem:[#allocation3] sm:$0xff] %v2255
  %2347 = vst [vmem:[#allocation3 + $0x8] sm:$0xff] %v2257
  %2348 = vst [vmem:[#allocation3 + $0x10] sm:$0xff] %v2318
  %2349 = vst [vmem:[#allocation3 + $0x18] sm:$0xff] %v2320
  %2350 = vst [vmem:[#allocation3 + $0x20] sm:$0xff] %v2259
  %2351 = vst [vmem:[#allocation3 + $0x28] sm:$0xff] %v2261
  %2352 = vst [vmem:[#allocation3 + $0x30] sm:$0xff] %v2322
  %2353 = vst [vmem:[#allocation3 + $0x38] sm:$0xff] %v2324
  %2354 = vst [vmem:[#allocation3 + $0x40] sm:$0xff] %v2265
  %2355 = vst [vmem:[#allocation3 + $0x48] sm:$0xff] %v2267
  %2356 = vst [vmem:[#allocation3 + $0x50] sm:$0xff] %v2328
  %2357 = vst [vmem:[#allocation3 + $0x58] sm:$0xff] %v2330
  %2358 = vst [vmem:[#allocation3 + $0x60] sm:$0xff] %v2269
  %2359 = vst [vmem:[#allocation3 + $0x68] sm:$0xff] %v2271
  %2360 = vst [vmem:[#allocation3 + $0x70] sm:$0xff] %v2332
  %2361 = vst [vmem:[#allocation3 + $0x78] sm:$0xff] %v2334
  %2362 = vst [vmem:[#allocation3 + $0x80] sm:$0xff] %v2275
  %2363 = vst [vmem:[#allocation3 + $0x88] sm:$0xff] %v2277
  %2364 = vst [vmem:[#allocation3 + $0x90] sm:$0xff] %v2338
  %2365 = vst [vmem:[#allocation3 + $0x98] sm:$0xff] %v2340
  %2366 = vst [vmem:[#allocation3 + $0xa0] sm:$0xff] %v2279
  %2367 = vst [vmem:[#allocation3 + $0xa8] sm:$0xff] %v2281
  %2368 = vst [vmem:[#allocation3 + $0xb0] sm:$0xff] %v2342
  %2369 = vst [vmem:[#allocation3 + $0xb8] sm:$0xff] %v2344
  %s2370 = scalar_lea.vmem %s4, 256
  %v2371 = vld [vmem:[%s2370] sm:$0xff]
  %v2372 = vld [vmem:[%s2370 + $0x8] sm:$0xff]
  %v2373 = vld [vmem:[%s2370 + $0x10] sm:$0xff]
  %v2374 = vld [vmem:[%s2370 + $0x18] sm:$0xff]
  %v2375 = vld [vmem:[%s2370 + $0x20] sm:$0xff]
  %v2376 = vld [vmem:[%s2370 + $0x28] sm:$0xff]
  %v2377 = vld [vmem:[%s2370 + $0x30] sm:$0xff]
  %v2378 = vld [vmem:[%s2370 + $0x38] sm:$0xff]
  %v2379 = vld [vmem:[%s2370 + $0x40] sm:$0xff]
  %v2380 = vld [vmem:[%s2370 + $0x48] sm:$0xff]
  %v2381 = vld [vmem:[%s2370 + $0x50] sm:$0xff]
  %v2382 = vld [vmem:[%s2370 + $0x58] sm:$0xff]
  %v2383 = vld [vmem:[%s2370 + $0x60] sm:$0xff]
  %v2384 = vld [vmem:[%s2370 + $0x68] sm:$0xff]
  %v2385 = vld [vmem:[%s2370 + $0x70] sm:$0xff]
  %v2386 = vld [vmem:[%s2370 + $0x78] sm:$0xff]
  %v2387 = vld [vmem:[%s2370 + $0x80] sm:$0xff]
  %v2388 = vld [vmem:[%s2370 + $0x88] sm:$0xff]
  %v2389 = vld [vmem:[%s2370 + $0x90] sm:$0xff]
  %v2390 = vld [vmem:[%s2370 + $0x98] sm:$0xff]
  %v2391 = vld [vmem:[%s2370 + $0xa0] sm:$0xff]
  %v2392 = vld [vmem:[%s2370 + $0xa8] sm:$0xff]
  %v2393 = vld [vmem:[%s2370 + $0xb0] sm:$0xff]
  %v2394 = vld [vmem:[%s2370 + $0xb8] sm:$0xff]
  %v2395 = vld [vmem:[%s2370 + $0xc0] sm:$0xff]
  %v2396 = vld [vmem:[%s2370 + $0xc8] sm:$0xff]
  %v2397 = vld [vmem:[%s2370 + $0xd0] sm:$0xff]
  %v2398 = vld [vmem:[%s2370 + $0xd8] sm:$0xff]
  %v2399 = vld [vmem:[%s2370 + $0xe0] sm:$0xff]
  %v2400 = vld [vmem:[%s2370 + $0xe8] sm:$0xff]
  %v2401 = vld [vmem:[%s2370 + $0xf0] sm:$0xff]
  %v2402 = vld [vmem:[%s2370 + $0xf8] sm:$0xff]
  %v2403 = vld [vmem:[#allocation3] sm:$0xff]
  %v2404 = vld [vmem:[#allocation3 + $0x8] sm:$0xff]
  %v2405 = vld [vmem:[#allocation3 + $0x10] sm:$0xff]
  %v2406 = vld [vmem:[#allocation3 + $0x18] sm:$0xff]
  %v2439 = vunpack.c.l.b16 %v2371
  %v2440 = vunpack.c.h.b16 %v2371
  %v2441 = vunpack.c.l.b16 %v2372
  %v2442 = vunpack.c.h.b16 %v2372
  %v2443 = vunpack.c.l.b16 %v2373
  %v2444 = vunpack.c.h.b16 %v2373
  %v2445 = vunpack.c.l.b16 %v2374
  %v2446 = vunpack.c.h.b16 %v2374
  %v2447 = vunpack.c.l.b16 %v2375
  %v2448 = vunpack.c.h.b16 %v2375
  %v2449 = vunpack.c.l.b16 %v2376
  %v2450 = vunpack.c.h.b16 %v2376
  %v2451 = vunpack.c.l.b16 %v2377
  %v2452 = vunpack.c.h.b16 %v2377
  %v2453 = vunpack.c.l.b16 %v2378
  %v2454 = vunpack.c.h.b16 %v2378
  %v2455 = vunpack.c.l.b16 %v2379
  %v2456 = vunpack.c.h.b16 %v2379
  %v2457 = vunpack.c.l.b16 %v2380
  %v2458 = vunpack.c.h.b16 %v2380
  %v2459 = vunpack.c.l.b16 %v2381
  %v2460 = vunpack.c.h.b16 %v2381
  %v2461 = vunpack.c.l.b16 %v2382
  %v2462 = vunpack.c.h.b16 %v2382
  %v2463 = vunpack.c.l.b16 %v2383
  %v2464 = vunpack.c.h.b16 %v2383
  %v2465 = vunpack.c.l.b16 %v2384
  %v2466 = vunpack.c.h.b16 %v2384
  %v2467 = vunpack.c.l.b16 %v2385
  %v2468 = vunpack.c.h.b16 %v2385
  %v2469 = vunpack.c.l.b16 %v2386
  %v2470 = vunpack.c.h.b16 %v2386
  %v2471 = vunpack.c.l.b16 %v2387
  %v2472 = vunpack.c.h.b16 %v2387
  %v2473 = vunpack.c.l.b16 %v2388
  %v2474 = vunpack.c.h.b16 %v2388
  %v2475 = vunpack.c.l.b16 %v2389
  %v2476 = vunpack.c.h.b16 %v2389
  %v2477 = vunpack.c.l.b16 %v2390
  %v2478 = vunpack.c.h.b16 %v2390
  %v2479 = vunpack.c.l.b16 %v2391
  %v2480 = vunpack.c.h.b16 %v2391
  %v2481 = vunpack.c.l.b16 %v2392
  %v2482 = vunpack.c.h.b16 %v2392
  %v2483 = vunpack.c.l.b16 %v2393
  %v2484 = vunpack.c.h.b16 %v2393
  %v2485 = vunpack.c.l.b16 %v2394
  %v2486 = vunpack.c.h.b16 %v2394
  %v2487 = vunpack.c.l.b16 %v2395
  %v2488 = vunpack.c.h.b16 %v2395
  %v2489 = vunpack.c.l.b16 %v2396
  %v2490 = vunpack.c.h.b16 %v2396
  %v2491 = vunpack.c.l.b16 %v2397
  %v2492 = vunpack.c.h.b16 %v2397
  %v2493 = vunpack.c.l.b16 %v2398
  %v2494 = vunpack.c.h.b16 %v2398
  %v2495 = vunpack.c.l.b16 %v2399
  %v2496 = vunpack.c.h.b16 %v2399
  %v2497 = vunpack.c.l.b16 %v2400
  %v2498 = vunpack.c.h.b16 %v2400
  %v2499 = vunpack.c.l.b16 %v2401
  %v2500 = vunpack.c.h.b16 %v2401
  %v2501 = vunpack.c.l.b16 %v2402
  %v2502 = vunpack.c.h.b16 %v2402
  %v2503 = vpack.c.b16 %v2443, %v2439
  %v2504 = vpack.c.b16 %v2444, %v2440
  %v2505 = vpack.c.b16 %v2445, %v2441
  %v2506 = vpack.c.b16 %v2446, %v2442
  %v2507 = vpack.c.b16 %v2451, %v2447
  %v2508 = vpack.c.b16 %v2452, %v2448
  %v2509 = vpack.c.b16 %v2453, %v2449
  %v2510 = vpack.c.b16 %v2454, %v2450
  %v2511 = vpack.c.b16 %v2459, %v2455
  %v2512 = vpack.c.b16 %v2460, %v2456
  %v2513 = vpack.c.b16 %v2461, %v2457
  %v2514 = vpack.c.b16 %v2462, %v2458
  %v2515 = vpack.c.b16 %v2467, %v2463
  %v2516 = vpack.c.b16 %v2468, %v2464
  %v2517 = vpack.c.b16 %v2469, %v2465
  %v2518 = vpack.c.b16 %v2470, %v2466
  %v2519 = vpack.c.b16 %v2475, %v2471
  %v2520 = vpack.c.b16 %v2476, %v2472
  %v2521 = vpack.c.b16 %v2477, %v2473
  %v2522 = vpack.c.b16 %v2478, %v2474
  %v2523 = vpack.c.b16 %v2483, %v2479
  %v2524 = vpack.c.b16 %v2484, %v2480
  %v2525 = vpack.c.b16 %v2485, %v2481
  %v2526 = vpack.c.b16 %v2486, %v2482
  %v2527 = vpack.c.b16 %v2491, %v2487
  %v2528 = vpack.c.b16 %v2492, %v2488
  %v2529 = vpack.c.b16 %v2493, %v2489
  %v2530 = vpack.c.b16 %v2494, %v2490
  %v2531 = vpack.c.b16 %v2499, %v2495
  %v2532 = vpack.c.b16 %v2500, %v2496
  %v2533 = vpack.c.b16 %v2501, %v2497
  %v2534 = vpack.c.b16 %v2502, %v2498
  %2567 = vmatprep.subr.bf16.mxu0 %v2504
  %2568 = vmatpush1.bf16.msra.mxu0 %v2503
  %2569 = vmatprep.subr.bf16.mxu0 %v2508
  %2570 = vmatpush1.bf16.msra.mxu0 %v2507
  %2571 = vmatprep.subr.bf16.mxu0 %v2512
  %2572 = vmatpush1.bf16.msra.mxu0 %v2511
  %2573 = vmatprep.subr.bf16.mxu0 %v2516
  %2574 = vmatpush1.bf16.msra.mxu0 %v2515
  %2575 = vmatprep.subr.bf16.mxu0 %v2520
  %2576 = vmatpush1.bf16.msra.mxu0 %v2519
  %2577 = vmatprep.subr.bf16.mxu0 %v2524
  %2578 = vmatpush1.bf16.msra.mxu0 %v2523
  %2579 = vmatprep.subr.bf16.mxu0 %v2528
  %2580 = vmatpush1.bf16.msra.mxu0 %v2527
  %2581 = vmatprep.subr.bf16.mxu0 %v2532
  %2582 = vmatpush1.bf16.msra.mxu0 %v2531
  %2583 = vmatprep.subr.bf16.mxu0 0
  %2584 = vmatpush1.bf16.msra.mxu0 0
  %2585 = vmatprep.subr.bf16.mxu0 0
  %2586 = vmatpush1.bf16.msra.mxu0 0
  %2587 = vmatprep.subr.bf16.mxu0 0
  %2588 = vmatpush1.bf16.msra.mxu0 0
  %2589 = vmatprep.subr.bf16.mxu0 0
  %2590 = vmatpush1.bf16.msra.mxu0 0
  %2591 = vmatprep.subr.bf16.mxu0 0
  %2592 = vmatpush1.bf16.msra.mxu0 0
  %2593 = vmatprep.subr.bf16.mxu0 0
  %2594 = vmatpush1.bf16.msra.mxu0 0
  %2595 = vmatprep.subr.bf16.mxu0 0
  %2596 = vmatpush1.bf16.msra.mxu0 0
  %2597 = vmatprep.subr.bf16.mxu0 0
  %2598 = vmatpush1.bf16.msra.mxu0 0
  %2599 = vmatprep.mubr.bf16.mxu0 0
  %2600 = vmatmul.mubr.bf16.gmra.mrb[0].mxu0 0
  %v2601 = vpop.f32.mrb[0].mxu0
  %v2602 = vadd.f32 0.0, %v2601
  %v2603 = vpop.f32.mrb[0].mxu0
  %v2604 = vadd.f32 0.0, %v2603
  %v2605 = vpop.f32.mrb[0].mxu0
  %v2606 = vpop.f32.mrb[0].mxu0
  %2607 = vdwg.mxu0
  %2608 = vmatprep.subr.bf16.mxu0 %v2506
  %2609 = vmatpush1.bf16.msra.mxu0 %v2505
  %2610 = vmatprep.subr.bf16.mxu0 %v2510
  %2611 = vmatpush1.bf16.msra.mxu0 %v2509
  %2612 = vmatprep.subr.bf16.mxu0 %v2514
  %2613 = vmatpush1.bf16.msra.mxu0 %v2513
  %2614 = vmatprep.subr.bf16.mxu0 %v2518
  %2615 = vmatpush1.bf16.msra.mxu0 %v2517
  %2616 = vmatprep.subr.bf16.mxu0 %v2522
  %2617 = vmatpush1.bf16.msra.mxu0 %v2521
  %2618 = vmatprep.subr.bf16.mxu0 %v2526
  %2619 = vmatpush1.bf16.msra.mxu0 %v2525
  %2620 = vmatprep.subr.bf16.mxu0 %v2530
  %2621 = vmatpush1.bf16.msra.mxu0 %v2529
  %2622 = vmatprep.subr.bf16.mxu0 %v2534
  %2623 = vmatpush1.bf16.msra.mxu0 %v2533
  %2624 = vmatprep.subr.bf16.mxu0 0
  %2625 = vmatpush1.bf16.msra.mxu0 0
  %2626 = vmatprep.subr.bf16.mxu0 0
  %2627 = vmatpush1.bf16.msra.mxu0 0
  %2628 = vmatprep.subr.bf16.mxu0 0
  %2629 = vmatpush1.bf16.msra.mxu0 0
  %2630 = vmatprep.subr.bf16.mxu0 0
  %2631 = vmatpush1.bf16.msra.mxu0 0
  %2632 = vmatprep.subr.bf16.mxu0 0
  %2633 = vmatpush1.bf16.msra.mxu0 0
  %2634 = vmatprep.subr.bf16.mxu0 0
  %2635 = vmatpush1.bf16.msra.mxu0 0
  %2636 = vmatprep.subr.bf16.mxu0 0
  %2637 = vmatpush1.bf16.msra.mxu0 0
  %2638 = vmatprep.subr.bf16.mxu0 0
  %2639 = vmatpush1.bf16.msra.mxu0 0
  %2640 = vmatprep.mubr.bf16.mxu0 0
  %2641 = vmatmul.mubr.bf16.gmra.mrb[0].mxu0 0
  %v2642 = vpop.f32.mrb[0].mxu0
  %v2643 = vadd.f32 0.0, %v2642
  %v2644 = vpop.f32.mrb[0].mxu0
  %v2645 = vadd.f32 0.0, %v2644
  %v2646 = vpop.f32.mrb[0].mxu0
  %v2647 = vpop.f32.mrb[0].mxu0
  %2648 = vdwg.mxu0
  %v2649 = vadd.f32 %v2403, %v2602
  %v2650 = vadd.f32 %v2404, %v2604
  %v2651 = vadd.f32 %v2405, %v2643
  %v2652 = vadd.f32 %v2406, %v2645
  %v2653 = vxor.u32 %v2649, 2147483648
  %v2654 = vmul.f32 %v2653, 1.442695
  %v2655 = vpow.pop %v2654
  %v2656 = vadd.f32 %v2655, 1.0
  %v2657 = vrcp.pop %v2656
  %v2658 = vmul.f32 1.0, %v2657
  %v2659 = vxor.u32 %v2650, 2147483648
  %v2660 = vmul.f32 %v2659, 1.442695
  %v2661 = vpow.pop %v2660
  %v2662 = vadd.f32 %v2661, 1.0
  %v2663 = vrcp.pop %v2662
  %v2664 = vmul.f32 1.0, %v2663
  %v2665 = vtanh.pop %v2651
  %v2666 = vxor.u32 %v2652, 2147483648
  %v2667 = vmul.f32 %v2666, 1.442695
  %v2668 = vpow.pop %v2667
  %v2669 = vadd.f32 %v2668, 1.0
  %v2670 = vrcp.pop %v2669
  %v2671 = vmul.f32 1.0, %v2670
  %v2672 = vmul.f32 %v2664, 0.0
  %v2673 = vmul.f32 %v2658, %v2665
  %v2674 = vadd.f32 %v2672, %v2673
  %v2675 = vtanh.pop %v2674
  %v2676 = vmul.f32 %v2671, %v2675
  %v2677 = vld [vmem:[%s1405] sm:$0xff]
  %v2678 = vld [vmem:[%s1405 + $0x8] sm:$0xff]
  %v2679 = vld [vmem:[%s1405 + $0x10] sm:$0xff]
  %v2680 = vld [vmem:[%s1405 + $0x18] sm:$0xff]
  %v2681 = vpack.c.bf16 %v2676, %v2676
  %2682 = vmatprep.subr.bf16.mxu0 %v2504
  %2683 = vmatpush1.bf16.msra.mxu0 %v2503
  %2684 = vmatprep.subr.bf16.mxu0 %v2508
  %2685 = vmatpush1.bf16.msra.mxu0 %v2507
  %2686 = vmatprep.subr.bf16.mxu0 %v2512
  %2687 = vmatpush1.bf16.msra.mxu0 %v2511
  %2688 = vmatprep.subr.bf16.mxu0 %v2516
  %2689 = vmatpush1.bf16.msra.mxu0 %v2515
  %2690 = vmatprep.subr.bf16.mxu0 %v2520
  %2691 = vmatpush1.bf16.msra.mxu0 %v2519
  %2692 = vmatprep.subr.bf16.mxu0 %v2524
  %2693 = vmatpush1.bf16.msra.mxu0 %v2523
  %2694 = vmatprep.subr.bf16.mxu0 %v2528
  %2695 = vmatpush1.bf16.msra.mxu0 %v2527
  %2696 = vmatprep.subr.bf16.mxu0 %v2532
  %2697 = vmatpush1.bf16.msra.mxu0 %v2531
  %2698 = vmatprep.subr.bf16.mxu0 0
  %2699 = vmatpush1.bf16.msra.mxu0 0
  %2700 = vmatprep.subr.bf16.mxu0 0
  %2701 = vmatpush1.bf16.msra.mxu0 0
  %2702 = vmatprep.subr.bf16.mxu0 0
  %2703 = vmatpush1.bf16.msra.mxu0 0
  %2704 = vmatprep.subr.bf16.mxu0 0
  %2705 = vmatpush1.bf16.msra.mxu0 0
  %2706 = vmatprep.subr.bf16.mxu0 0
  %2707 = vmatpush1.bf16.msra.mxu0 0
  %2708 = vmatprep.subr.bf16.mxu0 0
  %2709 = vmatpush1.bf16.msra.mxu0 0
  %2710 = vmatprep.subr.bf16.mxu0 0
  %2711 = vmatpush1.bf16.msra.mxu0 0
  %2712 = vmatprep.subr.bf16.mxu0 0
  %2713 = vmatpush1.bf16.msra.mxu0 0
  %2714 = vmatprep.mubr.bf16.mxu0 0
  %2715 = vmatmul.mubr.bf16.gmra.mrb[0].mxu0 %v2681
  %v2716 = vpop.f32.mrb[0].mxu0
  %v2717 = vadd.f32 0.0, %v2716
  %v2718 = vpop.f32.mrb[0].mxu0
  %v2719 = vadd.f32 0.0, %v2718
  %v2720 = vpop.f32.mrb[0].mxu0
  %v2721 = vpop.f32.mrb[0].mxu0
  %2722 = vdwg.mxu0
  %2723 = vmatprep.subr.bf16.mxu0 %v2506
  %2724 = vmatpush1.bf16.msra.mxu0 %v2505
  %2725 = vmatprep.subr.bf16.mxu0 %v2510
  %2726 = vmatpush1.bf16.msra.mxu0 %v2509
  %2727 = vmatprep.subr.bf16.mxu0 %v2514
  %2728 = vmatpush1.bf16.msra.mxu0 %v2513
  %2729 = vmatprep.subr.bf16.mxu0 %v2518
  %2730 = vmatpush1.bf16.msra.mxu0 %v2517
  %2731 = vmatprep.subr.bf16.mxu0 %v2522
  %2732 = vmatpush1.bf16.msra.mxu0 %v2521
  %2733 = vmatprep.subr.bf16.mxu0 %v2526
  %2734 = vmatpush1.bf16.msra.mxu0 %v2525
  %2735 = vmatprep.subr.bf16.mxu0 %v2530
  %2736 = vmatpush1.bf16.msra.mxu0 %v2529
  %2737 = vmatprep.subr.bf16.mxu0 %v2534
  %2738 = vmatpush1.bf16.msra.mxu0 %v2533
  %2739 = vmatprep.subr.bf16.mxu0 0
  %2740 = vmatpush1.bf16.msra.mxu0 0
  %2741 = vmatprep.subr.bf16.mxu0 0
  %2742 = vmatpush1.bf16.msra.mxu0 0
  %2743 = vmatprep.subr.bf16.mxu0 0
  %2744 = vmatpush1.bf16.msra.mxu0 0
  %2745 = vmatprep.subr.bf16.mxu0 0
  %2746 = vmatpush1.bf16.msra.mxu0 0
  %2747 = vmatprep.subr.bf16.mxu0 0
  %2748 = vmatpush1.bf16.msra.mxu0 0
  %2749 = vmatprep.subr.bf16.mxu0 0
  %2750 = vmatpush1.bf16.msra.mxu0 0
  %2751 = vmatprep.subr.bf16.mxu0 0
  %2752 = vmatpush1.bf16.msra.mxu0 0
  %2753 = vmatprep.subr.bf16.mxu0 0
  %2754 = vmatpush1.bf16.msra.mxu0 0
  %2755 = vmatprep.mubr.bf16.mxu0 0
  %2756 = vmatmul.mubr.bf16.gmra.mrb[0].mxu0 %v2681
  %v2757 = vpop.f32.mrb[0].mxu0
  %v2758 = vadd.f32 0.0, %v2757
  %v2759 = vpop.f32.mrb[0].mxu0
  %v2760 = vadd.f32 0.0, %v2759
  %v2761 = vpop.f32.mrb[0].mxu0
  %v2762 = vpop.f32.mrb[0].mxu0
  %2763 = vdwg.mxu0
  %v2764 = vadd.f32 %v2677, %v2717
  %v2765 = vadd.f32 %v2678, %v2719
  %v2766 = vadd.f32 %v2679, %v2758
  %v2767 = vadd.f32 %v2680, %v2760
  %v2768 = vxor.u32 %v2764, 2147483648
  %v2769 = vmul.f32 %v2768, 1.442695
  %v2770 = vpow.pop %v2769
  %v2771 = vadd.f32 %v2770, 1.0
  %v2772 = vrcp.pop %v2771
  %v2773 = vmul.f32 1.0, %v2772
  %v2774 = vxor.u32 %v2765, 2147483648
  %v2775 = vmul.f32 %v2774, 1.442695
  %v2776 = vpow.pop %v2775
  %v2777 = vadd.f32 %v2776, 1.0
  %v2778 = vrcp.pop %v2777
  %v2779 = vmul.f32 1.0, %v2778
  %v2780 = vtanh.pop %v2766
  %v2781 = vxor.u32 %v2767, 2147483648
  %v2782 = vmul.f32 %v2781, 1.442695
  %v2783 = vpow.pop %v2782
  %v2784 = vadd.f32 %v2783, 1.0
  %v2785 = vrcp.pop %v2784
  %v2786 = vmul.f32 1.0, %v2785
  %v2787 = vmul.f32 %v2779, %v2674
  %v2788 = vmul.f32 %v2773, %v2780
  %v2789 = vadd.f32 %v2787, %v2788
  %v2790 = vtanh.pop %v2789
  %v2791 = vmul.f32 %v2786, %v2790
  %v2792 = vld [vmem:[%s1523] sm:$0xff]
  %v2793 = vld [vmem:[%s1523 + $0x8] sm:$0xff]
  %v2794 = vld [vmem:[%s1523 + $0x10] sm:$0xff]
  %v2795 = vld [vmem:[%s1523 + $0x18] sm:$0xff]
  %v2796 = vpack.c.bf16 %v2791, %v2791
  %2797 = vmatprep.subr.bf16.mxu0 %v2504
  %2798 = vmatpush1.bf16.msra.mxu0 %v2503
  %2799 = vmatprep.subr.bf16.mxu0 %v2508
  %2800 = vmatpush1.bf16.msra.mxu0 %v2507
  %2801 = vmatprep.subr.bf16.mxu0 %v2512
  %2802 = vmatpush1.bf16.msra.mxu0 %v2511
  %2803 = vmatprep.subr.bf16.mxu0 %v2516
  %2804 = vmatpush1.bf16.msra.mxu0 %v2515
  %2805 = vmatprep.subr.bf16.mxu0 %v2520
  %2806 = vmatpush1.bf16.msra.mxu0 %v2519
  %2807 = vmatprep.subr.bf16.mxu0 %v2524
  %2808 = vmatpush1.bf16.msra.mxu0 %v2523
  %2809 = vmatprep.subr.bf16.mxu0 %v2528
  %2810 = vmatpush1.bf16.msra.mxu0 %v2527
  %2811 = vmatprep.subr.bf16.mxu0 %v2532
  %2812 = vmatpush1.bf16.msra.mxu0 %v2531
  %2813 = vmatprep.subr.bf16.mxu0 0
  %2814 = vmatpush1.bf16.msra.mxu0 0
  %2815 = vmatprep.subr.bf16.mxu0 0
  %2816 = vmatpush1.bf16.msra.mxu0 0
  %2817 = vmatprep.subr.bf16.mxu0 0
  %2818 = vmatpush1.bf16.msra.mxu0 0
  %2819 = vmatprep.subr.bf16.mxu0 0
  %2820 = vmatpush1.bf16.msra.mxu0 0
  %2821 = vmatprep.subr.bf16.mxu0 0
  %2822 = vmatpush1.bf16.msra.mxu0 0
  %2823 = vmatprep.subr.bf16.mxu0 0
  %2824 = vmatpush1.bf16.msra.mxu0 0
  %2825 = vmatprep.subr.bf16.mxu0 0
  %2826 = vmatpush1.bf16.msra.mxu0 0
  %2827 = vmatprep.subr.bf16.mxu0 0
  %2828 = vmatpush1.bf16.msra.mxu0 0
  %2829 = vmatprep.mubr.bf16.mxu0 0
  %2830 = vmatmul.mubr.bf16.gmra.mrb[0].mxu0 %v2796
  %v2831 = vpop.f32.mrb[0].mxu0
  %v2832 = vadd.f32 0.0, %v2831
  %v2833 = vpop.f32.mrb[0].mxu0
  %v2834 = vadd.f32 0.0, %v2833
  %v2835 = vpop.f32.mrb[0].mxu0
  %v2836 = vpop.f32.mrb[0].mxu0
  %2837 = vdwg.mxu0
  %2838 = vmatprep.subr.bf16.mxu0 %v2506
  %2839 = vmatpush1.bf16.msra.mxu0 %v2505
  %2840 = vmatprep.subr.bf16.mxu0 %v2510
  %2841 = vmatpush1.bf16.msra.mxu0 %v2509
  %2842 = vmatprep.subr.bf16.mxu0 %v2514
  %2843 = vmatpush1.bf16.msra.mxu0 %v2513
  %2844 = vmatprep.subr.bf16.mxu0 %v2518
  %2845 = vmatpush1.bf16.msra.mxu0 %v2517
  %2846 = vmatprep.subr.bf16.mxu0 %v2522
  %2847 = vmatpush1.bf16.msra.mxu0 %v2521
  %2848 = vmatprep.subr.bf16.mxu0 %v2526
  %2849 = vmatpush1.bf16.msra.mxu0 %v2525
  %2850 = vmatprep.subr.bf16.mxu0 %v2530
  %2851 = vmatpush1.bf16.msra.mxu0 %v2529
  %2852 = vmatprep.subr.bf16.mxu0 %v2534
  %2853 = vmatpush1.bf16.msra.mxu0 %v2533
  %2854 = vmatprep.subr.bf16.mxu0 0
  %2855 = vmatpush1.bf16.msra.mxu0 0
  %2856 = vmatprep.subr.bf16.mxu0 0
  %2857 = vmatpush1.bf16.msra.mxu0 0
  %2858 = vmatprep.subr.bf16.mxu0 0
  %2859 = vmatpush1.bf16.msra.mxu0 0
  %2860 = vmatprep.subr.bf16.mxu0 0
  %2861 = vmatpush1.bf16.msra.mxu0 0
  %2862 = vmatprep.subr.bf16.mxu0 0
  %2863 = vmatpush1.bf16.msra.mxu0 0
  %2864 = vmatprep.subr.bf16.mxu0 0
  %2865 = vmatpush1.bf16.msra.mxu0 0
  %2866 = vmatprep.subr.bf16.mxu0 0
  %2867 = vmatpush1.bf16.msra.mxu0 0
  %2868 = vmatprep.subr.bf16.mxu0 0
  %2869 = vmatpush1.bf16.msra.mxu0 0
  %2870 = vmatprep.mubr.bf16.mxu0 0
  %2871 = vmatmul.mubr.bf16.gmra.mrb[0].mxu0 %v2796
  %v2872 = vpop.f32.mrb[0].mxu0
  %v2873 = vadd.f32 0.0, %v2872
  %v2874 = vpop.f32.mrb[0].mxu0
  %v2875 = vadd.f32 0.0, %v2874
  %v2876 = vpop.f32.mrb[0].mxu0
  %v2877 = vpop.f32.mrb[0].mxu0
  %2878 = vdwg.mxu0
  %v2879 = vadd.f32 %v2792, %v2832
  %v2880 = vadd.f32 %v2793, %v2834
  %v2881 = vadd.f32 %v2794, %v2873
  %v2882 = vadd.f32 %v2795, %v2875
  %v2883 = vxor.u32 %v2879, 2147483648
  %v2884 = vmul.f32 %v2883, 1.442695
  %v2885 = vpow.pop %v2884
  %v2886 = vadd.f32 %v2885, 1.0
  %v2887 = vrcp.pop %v2886
  %v2888 = vmul.f32 1.0, %v2887
  %v2889 = vxor.u32 %v2880, 2147483648
  %v2890 = vmul.f32 %v2889, 1.442695
  %v2891 = vpow.pop %v2890
  %v2892 = vadd.f32 %v2891, 1.0
  %v2893 = vrcp.pop %v2892
  %v2894 = vmul.f32 1.0, %v2893
  %v2895 = vtanh.pop %v2881
  %v2896 = vxor.u32 %v2882, 2147483648
  %v2897 = vmul.f32 %v2896, 1.442695
  %v2898 = vpow.pop %v2897
  %v2899 = vadd.f32 %v2898, 1.0
  %v2900 = vrcp.pop %v2899
  %v2901 = vmul.f32 1.0, %v2900
  %v2902 = vmul.f32 %v2894, %v2789
  %v2903 = vmul.f32 %v2888, %v2895
  %v2904 = vadd.f32 %v2902, %v2903
  %v2905 = vtanh.pop %v2904
  %v2906 = vmul.f32 %v2901, %v2905
  %v2907 = vld [vmem:[%s1641] sm:$0xff]
  %v2908 = vld [vmem:[%s1641 + $0x8] sm:$0xff]
  %v2909 = vld [vmem:[%s1641 + $0x10] sm:$0xff]
  %v2910 = vld [vmem:[%s1641 + $0x18] sm:$0xff]
  %v2911 = vpack.c.bf16 %v2906, %v2906
  %2912 = vmatprep.subr.bf16.mxu0 %v2504
  %2913 = vmatpush1.bf16.msra.mxu0 %v2503
  %2914 = vmatprep.subr.bf16.mxu0 %v2508
  %2915 = vmatpush1.bf16.msra.mxu0 %v2507
  %2916 = vmatprep.subr.bf16.mxu0 %v2512
  %2917 = vmatpush1.bf16.msra.mxu0 %v2511
  %2918 = vmatprep.subr.bf16.mxu0 %v2516
  %2919 = vmatpush1.bf16.msra.mxu0 %v2515
  %2920 = vmatprep.subr.bf16.mxu0 %v2520
  %2921 = vmatpush1.bf16.msra.mxu0 %v2519
  %2922 = vmatprep.subr.bf16.mxu0 %v2524
  %2923 = vmatpush1.bf16.msra.mxu0 %v2523
  %2924 = vmatprep.subr.bf16.mxu0 %v2528
  %2925 = vmatpush1.bf16.msra.mxu0 %v2527
  %2926 = vmatprep.subr.bf16.mxu0 %v2532
  %2927 = vmatpush1.bf16.msra.mxu0 %v2531
  %2928 = vmatprep.subr.bf16.mxu0 0
  %2929 = vmatpush1.bf16.msra.mxu0 0
  %2930 = vmatprep.subr.bf16.mxu0 0
  %2931 = vmatpush1.bf16.msra.mxu0 0
  %2932 = vmatprep.subr.bf16.mxu0 0
  %2933 = vmatpush1.bf16.msra.mxu0 0
  %2934 = vmatprep.subr.bf16.mxu0 0
  %2935 = vmatpush1.bf16.msra.mxu0 0
  %2936 = vmatprep.subr.bf16.mxu0 0
  %2937 = vmatpush1.bf16.msra.mxu0 0
  %2938 = vmatprep.subr.bf16.mxu0 0
  %2939 = vmatpush1.bf16.msra.mxu0 0
  %2940 = vmatprep.subr.bf16.mxu0 0
  %2941 = vmatpush1.bf16.msra.mxu0 0
  %2942 = vmatprep.subr.bf16.mxu0 0
  %2943 = vmatpush1.bf16.msra.mxu0 0
  %2944 = vmatprep.mubr.bf16.mxu0 0
  %2945 = vmatmul.mubr.bf16.gmra.mrb[0].mxu0 %v2911
  %v2946 = vpop.f32.mrb[0].mxu0
  %v2947 = vadd.f32 0.0, %v2946
  %v2948 = vpop.f32.mrb[0].mxu0
  %v2949 = vadd.f32 0.0, %v2948
  %v2950 = vpop.f32.mrb[0].mxu0
  %v2951 = vpop.f32.mrb[0].mxu0
  %2952 = vdwg.mxu0
  %2953 = vmatprep.subr.bf16.mxu0 %v2506
  %2954 = vmatpush1.bf16.msra.mxu0 %v2505
  %2955 = vmatprep.subr.bf16.mxu0 %v2510
  %2956 = vmatpush1.bf16.msra.mxu0 %v2509
  %2957 = vmatprep.subr.bf16.mxu0 %v2514
  %2958 = vmatpush1.bf16.msra.mxu0 %v2513
  %2959 = vmatprep.subr.bf16.mxu0 %v2518
  %2960 = vmatpush1.bf16.msra.mxu0 %v2517
  %2961 = vmatprep.subr.bf16.mxu0 %v2522
  %2962 = vmatpush1.bf16.msra.mxu0 %v2521
  %2963 = vmatprep.subr.bf16.mxu0 %v2526
  %2964 = vmatpush1.bf16.msra.mxu0 %v2525
  %2965 = vmatprep.subr.bf16.mxu0 %v2530
  %2966 = vmatpush1.bf16.msra.mxu0 %v2529
  %2967 = vmatprep.subr.bf16.mxu0 %v2534
  %2968 = vmatpush1.bf16.msra.mxu0 %v2533
  %2969 = vmatprep.subr.bf16.mxu0 0
  %2970 = vmatpush1.bf16.msra.mxu0 0
  %2971 = vmatprep.subr.bf16.mxu0 0
  %2972 = vmatpush1.bf16.msra.mxu0 0
  %2973 = vmatprep.subr.bf16.mxu0 0
  %2974 = vmatpush1.bf16.msra.mxu0 0
  %2975 = vmatprep.subr.bf16.mxu0 0
  %2976 = vmatpush1.bf16.msra.mxu0 0
  %2977 = vmatprep.subr.bf16.mxu0 0
  %2978 = vmatpush1.bf16.msra.mxu0 0
  %2979 = vmatprep.subr.bf16.mxu0 0
  %2980 = vmatpush1.bf16.msra.mxu0 0
  %2981 = vmatprep.subr.bf16.mxu0 0
  %2982 = vmatpush1.bf16.msra.mxu0 0
  %2983 = vmatprep.subr.bf16.mxu0 0
  %2984 = vmatpush1.bf16.msra.mxu0 0
  %2985 = vmatprep.mubr.bf16.mxu0 0
  %2986 = vmatmul.mubr.bf16.gmra.mrb[0].mxu0 %v2911
  %v2987 = vpop.f32.mrb[0].mxu0
  %v2988 = vadd.f32 0.0, %v2987
  %v2989 = vpop.f32.mrb[0].mxu0
  %v2990 = vadd.f32 0.0, %v2989
  %v2991 = vpop.f32.mrb[0].mxu0
  %v2992 = vpop.f32.mrb[0].mxu0
  %2993 = vdwg.mxu0
  %v2994 = vadd.f32 %v2907, %v2947
  %v2995 = vadd.f32 %v2908, %v2949
  %v2996 = vadd.f32 %v2909, %v2988
  %v2997 = vadd.f32 %v2910, %v2990
  %v2998 = vxor.u32 %v2994, 2147483648
  %v2999 = vmul.f32 %v2998, 1.442695
  %v3000 = vpow.pop %v2999
  %v3001 = vadd.f32 %v3000, 1.0
  %v3002 = vrcp.pop %v3001
  %v3003 = vmul.f32 1.0, %v3002
  %v3004 = vxor.u32 %v2995, 2147483648
  %v3005 = vmul.f32 %v3004, 1.442695
  %v3006 = vpow.pop %v3005
  %v3007 = vadd.f32 %v3006, 1.0
  %v3008 = vrcp.pop %v3007
  %v3009 = vmul.f32 1.0, %v3008
  %v3010 = vtanh.pop %v2996
  %v3011 = vxor.u32 %v2997, 2147483648
  %v3012 = vmul.f32 %v3011, 1.442695
  %v3013 = vpow.pop %v3012
  %v3014 = vadd.f32 %v3013, 1.0
  %v3015 = vrcp.pop %v3014
  %v3016 = vmul.f32 1.0, %v3015
  %v3017 = vmul.f32 %v3009, %v2904
  %v3018 = vmul.f32 %v3003, %v3010
  %v3019 = vadd.f32 %v3017, %v3018
  %v3020 = vtanh.pop %v3019
  %v3021 = vmul.f32 %v3016, %v3020
  %v3022 = vld [vmem:[%s1759] sm:$0xff]
  %v3023 = vld [vmem:[%s1759 + $0x8] sm:$0xff]
  %v3024 = vld [vmem:[%s1759 + $0x10] sm:$0xff]
  %v3025 = vld [vmem:[%s1759 + $0x18] sm:$0xff]
  %v3026 = vpack.c.bf16 %v3021, %v3021
  %3027 = vmatprep.subr.bf16.mxu0 %v2504
  %3028 = vmatpush1.bf16.msra.mxu0 %v2503
  %3029 = vmatprep.subr.bf16.mxu0 %v2508
  %3030 = vmatpush1.bf16.msra.mxu0 %v2507
  %3031 = vmatprep.subr.bf16.mxu0 %v2512
  %3032 = vmatpush1.bf16.msra.mxu0 %v2511
  %3033 = vmatprep.subr.bf16.mxu0 %v2516
  %3034 = vmatpush1.bf16.msra.mxu0 %v2515
  %3035 = vmatprep.subr.bf16.mxu0 %v2520
  %3036 = vmatpush1.bf16.msra.mxu0 %v2519
  %3037 = vmatprep.subr.bf16.mxu0 %v2524
  %3038 = vmatpush1.bf16.msra.mxu0 %v2523
  %3039 = vmatprep.subr.bf16.mxu0 %v2528
  %3040 = vmatpush1.bf16.msra.mxu0 %v2527
  %3041 = vmatprep.subr.bf16.mxu0 %v2532
  %3042 = vmatpush1.bf16.msra.mxu0 %v2531
  %3043 = vmatprep.subr.bf16.mxu0 0
  %3044 = vmatpush1.bf16.msra.mxu0 0
  %3045 = vmatprep.subr.bf16.mxu0 0
  %3046 = vmatpush1.bf16.msra.mxu0 0
  %3047 = vmatprep.subr.bf16.mxu0 0
  %3048 = vmatpush1.bf16.msra.mxu0 0
  %3049 = vmatprep.subr.bf16.mxu0 0
  %3050 = vmatpush1.bf16.msra.mxu0 0
  %3051 = vmatprep.subr.bf16.mxu0 0
  %3052 = vmatpush1.bf16.msra.mxu0 0
  %3053 = vmatprep.subr.bf16.mxu0 0
  %3054 = vmatpush1.bf16.msra.mxu0 0
  %3055 = vmatprep.subr.bf16.mxu0 0
  %3056 = vmatpush1.bf16.msra.mxu0 0
  %3057 = vmatprep.subr.bf16.mxu0 0
  %3058 = vmatpush1.bf16.msra.mxu0 0
  %3059 = vmatprep.mubr.bf16.mxu0 0
  %3060 = vmatmul.mubr.bf16.gmra.mrb[0].mxu0 %v3026
  %v3061 = vpop.f32.mrb[0].mxu0
  %v3062 = vadd.f32 0.0, %v3061
  %v3063 = vpop.f32.mrb[0].mxu0
  %v3064 = vadd.f32 0.0, %v3063
  %v3065 = vpop.f32.mrb[0].mxu0
  %v3066 = vpop.f32.mrb[0].mxu0
  %3067 = vdwg.mxu0
  %3068 = vmatprep.subr.bf16.mxu0 %v2506
  %3069 = vmatpush1.bf16.msra.mxu0 %v2505
  %3070 = vmatprep.subr.bf16.mxu0 %v2510
  %3071 = vmatpush1.bf16.msra.mxu0 %v2509
  %3072 = vmatprep.subr.bf16.mxu0 %v2514
  %3073 = vmatpush1.bf16.msra.mxu0 %v2513
  %3074 = vmatprep.subr.bf16.mxu0 %v2518
  %3075 = vmatpush1.bf16.msra.mxu0 %v2517
  %3076 = vmatprep.subr.bf16.mxu0 %v2522
  %3077 = vmatpush1.bf16.msra.mxu0 %v2521
  %3078 = vmatprep.subr.bf16.mxu0 %v2526
  %3079 = vmatpush1.bf16.msra.mxu0 %v2525
  %3080 = vmatprep.subr.bf16.mxu0 %v2530
  %3081 = vmatpush1.bf16.msra.mxu0 %v2529
  %3082 = vmatprep.subr.bf16.mxu0 %v2534
  %3083 = vmatpush1.bf16.msra.mxu0 %v2533
  %3084 = vmatprep.subr.bf16.mxu0 0
  %3085 = vmatpush1.bf16.msra.mxu0 0
  %3086 = vmatprep.subr.bf16.mxu0 0
  %3087 = vmatpush1.bf16.msra.mxu0 0
  %3088 = vmatprep.subr.bf16.mxu0 0
  %3089 = vmatpush1.bf16.msra.mxu0 0
  %3090 = vmatprep.subr.bf16.mxu0 0
  %3091 = vmatpush1.bf16.msra.mxu0 0
  %3092 = vmatprep.subr.bf16.mxu0 0
  %3093 = vmatpush1.bf16.msra.mxu0 0
  %3094 = vmatprep.subr.bf16.mxu0 0
  %3095 = vmatpush1.bf16.msra.mxu0 0
  %3096 = vmatprep.subr.bf16.mxu0 0
  %3097 = vmatpush1.bf16.msra.mxu0 0
  %3098 = vmatprep.subr.bf16.mxu0 0
  %3099 = vmatpush1.bf16.msra.mxu0 0
  %3100 = vmatprep.mubr.bf16.mxu0 0
  %3101 = vmatmul.mubr.bf16.gmra.mrb[0].mxu0 %v3026
  %v3102 = vpop.f32.mrb[0].mxu0
  %v3103 = vadd.f32 0.0, %v3102
  %v3104 = vpop.f32.mrb[0].mxu0
  %v3105 = vadd.f32 0.0, %v3104
  %v3106 = vpop.f32.mrb[0].mxu0
  %v3107 = vpop.f32.mrb[0].mxu0
  %3108 = vdwg.mxu0
  %v3109 = vadd.f32 %v3022, %v3062
  %v3110 = vadd.f32 %v3023, %v3064
  %v3111 = vadd.f32 %v3024, %v3103
  %v3112 = vadd.f32 %v3025, %v3105
  %v3113 = vxor.u32 %v3109, 2147483648
  %v3114 = vmul.f32 %v3113, 1.442695
  %v3115 = vpow.pop %v3114
  %v3116 = vadd.f32 %v3115, 1.0
  %v3117 = vrcp.pop %v3116
  %v3118 = vmul.f32 1.0, %v3117
  %v3119 = vxor.u32 %v3110, 2147483648
  %v3120 = vmul.f32 %v3119, 1.442695
  %v3121 = vpow.pop %v3120
  %v3122 = vadd.f32 %v3121, 1.0
  %v3123 = vrcp.pop %v3122
  %v3124 = vmul.f32 1.0, %v3123
  %v3125 = vtanh.pop %v3111
  %v3126 = vxor.u32 %v3112, 2147483648
  %v3127 = vmul.f32 %v3126, 1.442695
  %v3128 = vpow.pop %v3127
  %v3129 = vadd.f32 %v3128, 1.0
  %v3130 = vrcp.pop %v3129
  %v3131 = vmul.f32 1.0, %v3130
  %v3132 = vmul.f32 %v3124, %v3019
  %v3133 = vmul.f32 %v3118, %v3125
  %v3134 = vadd.f32 %v3132, %v3133
  %v3135 = vtanh.pop %v3134
  %v3136 = vmul.f32 %v3131, %v3135
  %v3137 = vld [vmem:[%s1877] sm:$0xff]
  %v3138 = vld [vmem:[%s1877 + $0x8] sm:$0xff]
  %v3139 = vld [vmem:[%s1877 + $0x10] sm:$0xff]
  %v3140 = vld [vmem:[%s1877 + $0x18] sm:$0xff]
  %v3141 = vpack.c.bf16 %v3136, %v3136
  %3142 = vmatprep.subr.bf16.mxu0 %v2504
  %3143 = vmatpush1.bf16.msra.mxu0 %v2503
  %3144 = vmatprep.subr.bf16.mxu0 %v2508
  %3145 = vmatpush1.bf16.msra.mxu0 %v2507
  %3146 = vmatprep.subr.bf16.mxu0 %v2512
  %3147 = vmatpush1.bf16.msra.mxu0 %v2511
  %3148 = vmatprep.subr.bf16.mxu0 %v2516
  %3149 = vmatpush1.bf16.msra.mxu0 %v2515
  %3150 = vmatprep.subr.bf16.mxu0 %v2520
  %3151 = vmatpush1.bf16.msra.mxu0 %v2519
  %3152 = vmatprep.subr.bf16.mxu0 %v2524
  %3153 = vmatpush1.bf16.msra.mxu0 %v2523
  %3154 = vmatprep.subr.bf16.mxu0 %v2528
  %3155 = vmatpush1.bf16.msra.mxu0 %v2527
  %3156 = vmatprep.subr.bf16.mxu0 %v2532
  %3157 = vmatpush1.bf16.msra.mxu0 %v2531
  %3158 = vmatprep.subr.bf16.mxu0 0
  %3159 = vmatpush1.bf16.msra.mxu0 0
  %3160 = vmatprep.subr.bf16.mxu0 0
  %3161 = vmatpush1.bf16.msra.mxu0 0
  %3162 = vmatprep.subr.bf16.mxu0 0
  %3163 = vmatpush1.bf16.msra.mxu0 0
  %3164 = vmatprep.subr.bf16.mxu0 0
  %3165 = vmatpush1.bf16.msra.mxu0 0
  %3166 = vmatprep.subr.bf16.mxu0 0
  %3167 = vmatpush1.bf16.msra.mxu0 0
  %3168 = vmatprep.subr.bf16.mxu0 0
  %3169 = vmatpush1.bf16.msra.mxu0 0
  %3170 = vmatprep.subr.bf16.mxu0 0
  %3171 = vmatpush1.bf16.msra.mxu0 0
  %3172 = vmatprep.subr.bf16.mxu0 0
  %3173 = vmatpush1.bf16.msra.mxu0 0
  %3174 = vmatprep.mubr.bf16.mxu0 0
  %3175 = vmatmul.mubr.bf16.gmra.mrb[0].mxu0 %v3141
  %v3176 = vpop.f32.mrb[0].mxu0
  %v3177 = vadd.f32 0.0, %v3176
  %v3178 = vpop.f32.mrb[0].mxu0
  %v3179 = vadd.f32 0.0, %v3178
  %v3180 = vpop.f32.mrb[0].mxu0
  %v3181 = vpop.f32.mrb[0].mxu0
  %3182 = vdwg.mxu0
  %3183 = vmatprep.subr.bf16.mxu0 %v2506
  %3184 = vmatpush1.bf16.msra.mxu0 %v2505
  %3185 = vmatprep.subr.bf16.mxu0 %v2510
  %3186 = vmatpush1.bf16.msra.mxu0 %v2509
  %3187 = vmatprep.subr.bf16.mxu0 %v2514
  %3188 = vmatpush1.bf16.msra.mxu0 %v2513
  %3189 = vmatprep.subr.bf16.mxu0 %v2518
  %3190 = vmatpush1.bf16.msra.mxu0 %v2517
  %3191 = vmatprep.subr.bf16.mxu0 %v2522
  %3192 = vmatpush1.bf16.msra.mxu0 %v2521
  %3193 = vmatprep.subr.bf16.mxu0 %v2526
  %3194 = vmatpush1.bf16.msra.mxu0 %v2525
  %3195 = vmatprep.subr.bf16.mxu0 %v2530
  %3196 = vmatpush1.bf16.msra.mxu0 %v2529
  %3197 = vmatprep.subr.bf16.mxu0 %v2534
  %3198 = vmatpush1.bf16.msra.mxu0 %v2533
  %3199 = vmatprep.subr.bf16.mxu0 0
  %3200 = vmatpush1.bf16.msra.mxu0 0
  %3201 = vmatprep.subr.bf16.mxu0 0
  %3202 = vmatpush1.bf16.msra.mxu0 0
  %3203 = vmatprep.subr.bf16.mxu0 0
  %3204 = vmatpush1.bf16.msra.mxu0 0
  %3205 = vmatprep.subr.bf16.mxu0 0
  %3206 = vmatpush1.bf16.msra.mxu0 0
  %3207 = vmatprep.subr.bf16.mxu0 0
  %3208 = vmatpush1.bf16.msra.mxu0 0
  %3209 = vmatprep.subr.bf16.mxu0 0
  %3210 = vmatpush1.bf16.msra.mxu0 0
  %3211 = vmatprep.subr.bf16.mxu0 0
  %3212 = vmatpush1.bf16.msra.mxu0 0
  %3213 = vmatprep.subr.bf16.mxu0 0
  %3214 = vmatpush1.bf16.msra.mxu0 0
  %3215 = vmatprep.mubr.bf16.mxu0 0
  %3216 = vmatmul.mubr.bf16.gmra.mrb[0].mxu0 %v3141
  %v3217 = vpop.f32.mrb[0].mxu0
  %v3218 = vadd.f32 0.0, %v3217
  %v3219 = vpop.f32.mrb[0].mxu0
  %v3220 = vadd.f32 0.0, %v3219
  %v3221 = vpop.f32.mrb[0].mxu0
  %v3222 = vpop.f32.mrb[0].mxu0
  %3223 = vdwg.mxu0
  %v3224 = vadd.f32 %v3137, %v3177
  %v3225 = vadd.f32 %v3138, %v3179
  %v3226 = vadd.f32 %v3139, %v3218
  %v3227 = vadd.f32 %v3140, %v3220
  %v3228 = vxor.u32 %v3224, 2147483648
  %v3229 = vmul.f32 %v3228, 1.442695
  %v3230 = vpow.pop %v3229
  %v3231 = vadd.f32 %v3230, 1.0
  %v3232 = vrcp.pop %v3231
  %v3233 = vmul.f32 1.0, %v3232
  %v3234 = vxor.u32 %v3225, 2147483648
  %v3235 = vmul.f32 %v3234, 1.442695
  %v3236 = vpow.pop %v3235
  %v3237 = vadd.f32 %v3236, 1.0
  %v3238 = vrcp.pop %v3237
  %v3239 = vmul.f32 1.0, %v3238
  %v3240 = vtanh.pop %v3226
  %v3241 = vxor.u32 %v3227, 2147483648
  %v3242 = vmul.f32 %v3241, 1.442695
  %v3243 = vpow.pop %v3242
  %v3244 = vadd.f32 %v3243, 1.0
  %v3245 = vrcp.pop %v3244
  %v3246 = vmul.f32 1.0, %v3245
  %v3247 = vmul.f32 %v3239, %v3134
  %v3248 = vmul.f32 %v3233, %v3240
  %v3249 = vadd.f32 %v3247, %v3248
  %v3250 = vtanh.pop %v3249
  %v3251 = vmul.f32 %v3246, %v3250
  %v3252 = vpack.c.bf16 %v3251, %v3251
  %v3253 = vld [vmem:[%s6] sm:$0xf]
  %v3254 = vld [vmem:[%s6 + $0x4] sm:$0xf]
  %v3255 = vld [vmem:[%s6 + $0x8] sm:$0xf]
  %v3256 = vld [vmem:[%s6 + $0xc] sm:$0xf]
  %v3257 = vld [vmem:[%s6 + $0x10] sm:$0xf]
  %v3258 = vld [vmem:[%s6 + $0x14] sm:$0xf]
  %v3259 = vld [vmem:[%s6 + $0x18] sm:$0xf]
  %v3260 = vld [vmem:[%s6 + $0x1c] sm:$0xf]
  %v3261 = vld [vmem:[%s6 + $0x20] sm:$0xf]
  %v3262 = vld [vmem:[%s6 + $0x24] sm:$0xf]
  %v3263 = vld [vmem:[%s6 + $0x28] sm:$0xf]
  %v3264 = vld [vmem:[%s6 + $0x2c] sm:$0xf]
  %v3265 = vld [vmem:[%s6 + $0x30] sm:$0xf]
  %v3266 = vld [vmem:[%s6 + $0x34] sm:$0xf]
  %v3267 = vld [vmem:[%s6 + $0x38] sm:$0xf]
  %v3268 = vld [vmem:[%s6 + $0x3c] sm:$0xf]
  %v3269 = vld [vmem:[%s7] sm:$0x1]
  %v3271 = vlaneseq
  %v3272 = vshrl.u32 %v3271, 7
  %v3273 = vsub.s32 0, %v3272
  %v3274 = vrot.slane %v3269, %v3273
  %v3292 = vunpack.c.l.b16 %v3253
  %v3293 = vunpack.c.l.b16 %v3254
  %v3294 = vunpack.c.l.b16 %v3255
  %v3295 = vunpack.c.l.b16 %v3256
  %v3296 = vunpack.c.l.b16 %v3257
  %v3297 = vunpack.c.l.b16 %v3258
  %v3298 = vunpack.c.l.b16 %v3259
  %v3299 = vunpack.c.l.b16 %v3260
  %v3300 = vunpack.c.l.b16 %v3261
  %v3301 = vunpack.c.l.b16 %v3262
  %v3302 = vunpack.c.l.b16 %v3263
  %v3303 = vunpack.c.l.b16 %v3264
  %v3304 = vunpack.c.l.b16 %v3265
  %v3305 = vunpack.c.l.b16 %v3266
  %v3306 = vunpack.c.l.b16 %v3267
  %v3307 = vunpack.c.l.b16 %v3268
  %v3308 = vpack.c.b16 %v3293, %v3292
  %v3309 = vpack.c.b16 %v3295, %v3294
  %v3310 = vpack.c.b16 %v3297, %v3296
  %v3311 = vpack.c.b16 %v3299, %v3298
  %v3312 = vpack.c.b16 %v3301, %v3300
  %v3313 = vpack.c.b16 %v3303, %v3302
  %v3314 = vpack.c.b16 %v3305, %v3304
  %v3315 = vpack.c.b16 %v3307, %v3306
  %3324 = vmatprep.subr.bf16.mxu0 0
  %3325 = vmatpush1.bf16.msra.mxu0 %v3308
  %3326 = vmatprep.subr.bf16.mxu0 0
  %3327 = vmatpush1.bf16.msra.mxu0 %v3309
  %3328 = vmatprep.subr.bf16.mxu0 0
  %3329 = vmatpush1.bf16.msra.mxu0 %v3310
  %3330 = vmatprep.subr.bf16.mxu0 0
  %3331 = vmatpush1.bf16.msra.mxu0 %v3311
  %3332 = vmatprep.subr.bf16.mxu0 0
  %3333 = vmatpush1.bf16.msra.mxu0 %v3312
  %3334 = vmatprep.subr.bf16.mxu0 0
  %3335 = vmatpush1.bf16.msra.mxu0 %v3313
  %3336 = vmatprep.subr.bf16.mxu0 0
  %3337 = vmatpush1.bf16.msra.mxu0 %v3314
  %3338 = vmatprep.subr.bf16.mxu0 0
  %3339 = vmatpush1.bf16.msra.mxu0 %v3315
  %3340 = vmatprep.subr.bf16.mxu0 0
  %3341 = vmatpush1.bf16.msra.mxu0 0
  %3342 = vmatprep.subr.bf16.mxu0 0
  %3343 = vmatpush1.bf16.msra.mxu0 0
  %3344 = vmatprep.subr.bf16.mxu0 0
  %3345 = vmatpush1.bf16.msra.mxu0 0
  %3346 = vmatprep.subr.bf16.mxu0 0
  %3347 = vmatpush1.bf16.msra.mxu0 0
  %3348 = vmatprep.subr.bf16.mxu0 0
  %3349 = vmatpush1.bf16.msra.mxu0 0
  %3350 = vmatprep.subr.bf16.mxu0 0
  %3351 = vmatpush1.bf16.msra.mxu0 0
  %3352 = vmatprep.subr.bf16.mxu0 0
  %3353 = vmatpush1.bf16.msra.mxu0 0
  %3354 = vmatprep.subr.bf16.mxu0 0
  %3355 = vmatpush1.bf16.msra.mxu0 0
  %3356 = vmatprep.mubr.bf16.mxu0 0
  %3357 = vmatmul.mubr.bf16.gmra.mrb[0].mxu0 %v3252
  %v3358 = vpop.f32.mrb[0].mxu0
  %v3359 = vadd.f32 %v3274, %v3358
  %v3360 = vpop.f32.mrb[0].mxu0
  %v3361 = vpop.f32.mrb[0].mxu0
  %v3362 = vpop.f32.mrb[0].mxu0
  %3363 = vdwg.mxu0
  %3364 = vst [vmem:[%s8] sm:$0xff] %v3359
  // Predicated region
  $region34: #{lstm_model_dynamic.1} parent=0 // pred_check
    _
  $region35: #{lstm_model_dynamic.1} parent=0 // pred_check_branch
    %3366 = sbr.rel (0) target = $region37
  $region36: #{lstm_model_dynamic.1} parent=0 // pred_region
    _
  $region37: #{lstm_model_dynamic.1} parent=0 // pred_fallthru
    _
  // Predicated region
  $region38: #{lstm_model_dynamic.1} parent=0 // pred_check
    _
  $region39: #{lstm_model_dynamic.1} parent=0 // pred_check_branch
    %3368 = sbr.rel (0) target = $region41
  $region40: #{lstm_model_dynamic.1} parent=0 // pred_region
    _
  $region41: #{lstm_model_dynamic.1} parent=0 // pred_fallthru
    _

</llo_original>
